<compile_context>
chip_gen: v6e
topology: v6e:2x2x1
jax: 0.10.0
libtpu: 0.0.40
codegen_flags: <defaults>
</compile_context>

<pallas_src>
import numpy as np
import jax
import jax.numpy as jnp
from jax.experimental import pallas as pl
from jax.experimental.pallas import tpu as pltpu

BT = 8  # batch tile per grid step (multiple of the 8-sublane granule)


# ------------------------------ Pallas kernel -------------------------------

def _net_kernel(x_ref, w1e_ref, w1o_ref, b1_ref, w2e_ref, w2o_ref, b2_ref,
                wfc_ref, bfc_ref, out_ref):
    """Fused forward pass for one batch tile.

    x_ref   : (28, BT, 28)  input rows x batch x input cols
    w1e/w1o : (5, 28, 120)  conv1 banded weights (even / odd output columns)
    b1      : (1, 120)      conv1 bias, packed as lanes = (col q, oc)
    w2e/w2o : (5, 120, 80)  conv2 banded weights
    b2      : (1, 80)
    wfc     : (4, 80, 10)   fc weights, pre-permuted to the in-kernel layout
    bfc     : (1, 10)
    out_ref : (BT, 10)
    """
    f32 = jnp.float32
    x = x_ref[...]                                       # (28, BT, 28)

    # ---- conv1 (k=5, 1->10): 5 banded matmuls per output-column parity -----
    c1e = jnp.zeros((24 * BT, 120), f32)
    c1o = jnp.zeros((24 * BT, 120), f32)
    for kh in range(5):
        lhs = x[kh:kh + 24].reshape(24 * BT, 28)         # (192, 28)
        c1e += jnp.dot(lhs, w1e_ref[kh], preferred_element_type=f32)
        c1o += jnp.dot(lhs, w1o_ref[kh], preferred_element_type=f32)
    # 2x2 max-pool: column pairs = (even, odd) parity, row pairs = adjacent
    # row groups.  Then bias + ReLU (epilogue, VPU work).
    m1 = jnp.maximum(c1e, c1o).reshape(12, 2, BT, 120)
    h1 = jnp.maximum(m1[:, 0], m1[:, 1]) + b1_ref[...]
    h1 = jnp.maximum(h1, 0.0)                            # (12, BT, 120)

    # ---- conv2 (k=5, 10->20): same structure --------------------------------
    c2e = jnp.zeros((8 * BT, 80), f32)
    c2o = jnp.zeros((8 * BT, 80), f32)
    for kh in range(5):
        lhs = h1[kh:kh + 8].reshape(8 * BT, 120)         # (64, 120)
        c2e += jnp.dot(lhs, w2e_ref[kh], preferred_element_type=f32)
        c2o += jnp.dot(lhs, w2o_ref[kh], preferred_element_type=f32)
    m2 = jnp.maximum(c2e, c2o).reshape(4, 2, BT, 80)
    h2 = jnp.maximum(m2[:, 0], m2[:, 1]) + b2_ref[...]
    h2 = jnp.maximum(h2, 0.0)                            # (4, BT, 80)

    # ---- fc (320 -> 10): accumulate over the 4 pooled rows -------------------
    acc = jnp.zeros((BT, 10), f32)
    for p in range(4):
        acc += jnp.dot(h2[p], wfc_ref[p], preferred_element_type=f32)
    out_ref[...] = acc + bfc_ref[...]


# ------------------------- host-side parameter prep -------------------------

def init_params(key):
    ks = jax.random.split(key, 6)
    return {
        "conv1_w": 0.1 * jax.random.normal(ks[0], (10, 1, 5, 5), jnp.float32),
        "conv1_b": 0.1 * jax.random.normal(ks[1], (10,), jnp.float32),
        "conv2_w": 0.1 * jax.random.normal(ks[2], (20, 10, 5, 5), jnp.float32),
        "conv2_b": 0.1 * jax.random.normal(ks[3], (20,), jnp.float32),
        "fc_w":    0.1 * jax.random.normal(ks[4], (10, 320), jnp.float32),
        "fc_b":    0.1 * jax.random.normal(ks[5], (10,), jnp.float32),
    }


def prepare_params(params):
    """One-time repack of PyTorch-layout weights into the banded matmul
    operands consumed by the fused kernel (host/numpy, zero runtime cost)."""
    w1 = np.asarray(params["conv1_w"], np.float32)   # (10, 1, 5, 5)
    b1 = np.asarray(params["conv1_b"], np.float32)
    w2 = np.asarray(params["conv2_w"], np.float32)   # (20, 10, 5, 5)
    b2 = np.asarray(params["conv2_b"], np.float32)
    fw = np.asarray(params["fc_w"], np.float32)      # (10, 320)
    fb = np.asarray(params["fc_b"], np.float32)

    # conv1: output column j = 2*q + par reads input column 2*q + par + kw.
    # W1[par, kh, w_in, q*10 + oc] = w1[oc, 0, kh, kw]
    W1 = np.zeros((2, 5, 28, 12 * 10), np.float32)
    for par in range(2):
        for kh in range(5):
            for q in range(12):
                for kw in range(5):
                    W1[par, kh, 2 * q + par + kw, q * 10:(q + 1) * 10] = \
                        w1[:, 0, kh, kw]
    b1p = np.tile(b1, 12).reshape(1, 120)            # lane = q*10 + oc

    # conv2: h1 lanes are (q1, ic) = q1*10 + ic; output lanes (q2, oc) = q2*20 + oc.
    # W2[par, kh, q1*10 + ic, q2*20 + oc] = w2[oc, ic, kh, kw], q1 = 2*q2 + par + kw
    W2 = np.zeros((2, 5, 120, 4 * 20), np.float32)
    for par in range(2):
        for kh in range(5):
            for q2 in range(4):
                for kw in range(5):
                    q1 = 2 * q2 + par + kw
                    W2[par, kh, q1 * 10:(q1 + 1) * 10,
                       q2 * 20:(q2 + 1) * 20] = w2[:, :, kh, kw].T
    b2p = np.tile(b2, 4).reshape(1, 80)

    # fc: PyTorch flattens (C, H, W); our h2 lanes are (q2, oc) per pooled row
    # p2, so permute fc_w's columns once here (no runtime flatten transpose).
    fwr = fw.reshape(10, 20, 4, 4)                   # (n, oc, p2, q2)
    Wfc = np.zeros((4, 80, 10), np.float32)
    for p2 in range(4):
        for q2 in range(4):
            Wfc[p2, q2 * 20:(q2 + 1) * 20, :] = fwr[:, :, p2, q2].T
    bfc = fb.reshape(1, 10)

    return {
        "w1e": jnp.asarray(W1[0]), "w1o": jnp.asarray(W1[1]),
        "b1": jnp.asarray(b1p),
        "w2e": jnp.asarray(W2[0]), "w2o": jnp.asarray(W2[1]),
        "b2": jnp.asarray(b2p),
        "wfc": jnp.asarray(Wfc), "bfc": jnp.asarray(bfc),
    }


# --------------------------------- wrapper -----------------------------------

def net_forward(x_nchw, prep):
    """Pallas forward pass of Net.  x_nchw: (B, 1, 28, 28) f32 -> (B, 10)."""
    B = x_nchw.shape[0]
    # Only wrapper-side layout op: (B, 1, 28, 28) -> (28, B, 28).
    x_t = jnp.transpose(x_nchw[:, 0, :, :], (1, 0, 2)).astype(jnp.float32)
    b_pad = ((B + BT - 1) // BT) * BT
    if b_pad != B:
        x_t = jnp.pad(x_t, ((0, 0), (0, b_pad - B), (0, 0)))

    out = pl.pallas_call(
        _net_kernel,
        out_shape=jax.ShapeDtypeStruct((b_pad, 10), jnp.float32),
        grid=(b_pad // BT,),
        in_specs=[
            pl.BlockSpec((28, BT, 28), lambda i: (0, i, 0)),   # input batch tile
            pl.BlockSpec((5, 28, 120), lambda i: (0, 0, 0)),   # conv1 even
            pl.BlockSpec((5, 28, 120), lambda i: (0, 0, 0)),   # conv1 odd
            pl.BlockSpec((1, 120), lambda i: (0, 0)),          # conv1 bias
            pl.BlockSpec((5, 120, 80), lambda i: (0, 0, 0)),   # conv2 even
            pl.BlockSpec((5, 120, 80), lambda i: (0, 0, 0)),   # conv2 odd
            pl.BlockSpec((1, 80), lambda i: (0, 0)),           # conv2 bias
            pl.BlockSpec((4, 80, 10), lambda i: (0, 0, 0)),    # fc weight
            pl.BlockSpec((1, 10), lambda i: (0, 0)),           # fc bias
        ],
        out_specs=pl.BlockSpec((BT, 10), lambda i: (i, 0)),
        compiler_params=pltpu.CompilerParams(
            dimension_semantics=("parallel",),
            vmem_limit_bytes=32 * 1024 * 1024,
        ),
    )(x_t, prep["w1e"], prep["w1o"], prep["b1"],
      prep["w2e"], prep["w2o"], prep["b2"], prep["wfc"], prep["bfc"])
    return out[:B]


# --------------------------- pure-JAX reference ------------------------------

def net_forward_ref(x_nchw, params):
    """Independent pure-JAX reference with PyTorch semantics."""
    hi = jax.lax.Precision.HIGHEST
    x = x_nchw.astype(jnp.float32)

    def conv(inp, w, b):
        y = jax.lax.conv_general_dilated(
            inp, w, window_strides=(1, 1), padding="VALID",
            dimension_numbers=("NCHW", "OIHW", "NCHW"), precision=hi)
        return y + b[None, :, None, None]

    def pool_relu(v):
        p = jax.lax.reduce_window(v, -jnp.inf, jax.lax.max,
                                  (1, 1, 2, 2), (1, 1, 2, 2), "VALID")
        return jnp.maximum(p, 0.0)

    h1 = pool_relu(conv(x, params["conv1_w"], params["conv1_b"]))
    h2 = pool_relu(conv(h1, params["conv2_w"], params["conv2_b"]))
    flat = h2.reshape(x.shape[0], -1)                       # (B, 320), (C,H,W) order
    return jnp.dot(flat, params["fc_w"].T, precision=hi) + params["fc_b"][None, :]


# ------------------------------------ main -----------------------------------

if __name__ == "__main__":
    key = jax.random.PRNGKey(0)
    k_params, k_x = jax.random.split(key)
    params = init_params(k_params)

    # MNIST-style input implied by fc(320, 10); batch matches the module spec.
    B = 64
    x = jax.random.normal(k_x, (B, 1, 28, 28), jnp.float32)

    prep = prepare_params(params)
    out = jax.block_until_ready(net_forward(x, prep))
    ref = jax.block_until_ready(net_forward_ref(x, params))

    assert out.shape == (B, 10) and out.dtype == jnp.float32
    max_err = float(jnp.max(jnp.abs(out - ref)))
    assert jnp.allclose(out, ref, rtol=2e-3, atol=2e-3), f"max abs err {max_err}"
    print("KERNEL_OK")
</pallas_src>

<mosaic_0001>
module attributes {stable_mosaic.version = 11 : i64} {
  func.func @_net_kernel(%arg0: i32, %arg1: memref<28x8x28xf32, #tpu.memory_space<vmem>>, %arg2: memref<5x28x120xf32, #tpu.memory_space<vmem>>, %arg3: memref<5x28x120xf32, #tpu.memory_space<vmem>>, %arg4: memref<1x120xf32, #tpu.memory_space<vmem>>, %arg5: memref<5x120x80xf32, #tpu.memory_space<vmem>>, %arg6: memref<5x120x80xf32, #tpu.memory_space<vmem>>, %arg7: memref<1x80xf32, #tpu.memory_space<vmem>>, %arg8: memref<4x80x10xf32, #tpu.memory_space<vmem>>, %arg9: memref<1x10xf32, #tpu.memory_space<vmem>>, %arg10: memref<8x10xf32, #tpu.memory_space<vmem>>) attributes {dimension_semantics = [#tpu.dimension_semantics<parallel>], iteration_bounds = array<i64: 8>, scalar_prefetch = 0 : i64, scratch_operands = 0 : i64, tpu.core_type = #tpu.core_type<tc>, window_params = [{transform_indices = @transform_0, window_bounds = array<i64: 28, 8, 28>}, {pipeline_mode = #tpu.pipeline_mode<synchronous>, transform_indices = @transform_1, window_bounds = array<i64: 5, 28, 120>}, {pipeline_mode = #tpu.pipeline_mode<synchronous>, transform_indices = @transform_2, window_bounds = array<i64: 5, 28, 120>}, {pipeline_mode = #tpu.pipeline_mode<synchronous>, transform_indices = @transform_3, window_bounds = array<i64: 1, 120>}, {pipeline_mode = #tpu.pipeline_mode<synchronous>, transform_indices = @transform_4, window_bounds = array<i64: 5, 120, 80>}, {pipeline_mode = #tpu.pipeline_mode<synchronous>, transform_indices = @transform_5, window_bounds = array<i64: 5, 120, 80>}, {pipeline_mode = #tpu.pipeline_mode<synchronous>, transform_indices = @transform_6, window_bounds = array<i64: 1, 80>}, {pipeline_mode = #tpu.pipeline_mode<synchronous>, transform_indices = @transform_7, window_bounds = array<i64: 4, 80, 10>}, {pipeline_mode = #tpu.pipeline_mode<synchronous>, transform_indices = @transform_8, window_bounds = array<i64: 1, 10>}, {transform_indices = @transform_9, window_bounds = array<i64: 8, 10>}]} {
    %c0 = arith.constant 0 : index
    %c0_0 = arith.constant 0 : index
    %c0_1 = arith.constant 0 : index
    %0 = vector.load %arg1[%c0, %c0_0, %c0_1] : memref<28x8x28xf32, #tpu.memory_space<vmem>>, vector<28x8x28xf32>
    %cst = arith.constant 0.000000e+00 : f32
    %1 = vector.broadcast %cst : f32 to vector<192x120xf32>
    %cst_2 = arith.constant 0.000000e+00 : f32
    %2 = vector.broadcast %cst_2 : f32 to vector<192x120xf32>
    %3 = vector.extract_strided_slice %0 {offsets = [0, 0, 0], sizes = [24, 8, 28], strides = [1, 1, 1]} : vector<28x8x28xf32> to vector<24x8x28xf32>
    %4 = vector.shape_cast %3 : vector<24x8x28xf32> to vector<192x28xf32>
    %c0_3 = arith.constant 0 : index
    %c0_4 = arith.constant 0 : index
    %c0_5 = arith.constant 0 : index
    %5 = vector.load %arg2[%c0_3, %c0_4, %c0_5] : memref<5x28x120xf32, #tpu.memory_space<vmem>>, vector<1x28x120xf32>
    %6 = vector.shape_cast %5 : vector<1x28x120xf32> to vector<28x120xf32>
    %cst_6 = arith.constant dense<0.000000e+00> : vector<192x120xf32>
    %7 = tpu.matmul %4, %6, %cst_6 {dimension_numbers = #tpu.dot_dimension_numbers<[1], [0], [0], [1], [0, 0, 1, 1], [], []>} : vector<192x28xf32>, vector<28x120xf32>, vector<192x120xf32> -> vector<192x120xf32>
    %8 = arith.addf %1, %7 : vector<192x120xf32>
    %c0_7 = arith.constant 0 : index
    %c0_8 = arith.constant 0 : index
    %c0_9 = arith.constant 0 : index
    %9 = vector.load %arg3[%c0_7, %c0_8, %c0_9] : memref<5x28x120xf32, #tpu.memory_space<vmem>>, vector<1x28x120xf32>
    %10 = vector.shape_cast %9 : vector<1x28x120xf32> to vector<28x120xf32>
    %cst_10 = arith.constant dense<0.000000e+00> : vector<192x120xf32>
    %11 = tpu.matmul %4, %10, %cst_10 {dimension_numbers = #tpu.dot_dimension_numbers<[1], [0], [0], [1], [0, 0, 1, 1], [], []>} : vector<192x28xf32>, vector<28x120xf32>, vector<192x120xf32> -> vector<192x120xf32>
    %12 = arith.addf %2, %11 : vector<192x120xf32>
    %13 = vector.extract_strided_slice %0 {offsets = [1, 0, 0], sizes = [24, 8, 28], strides = [1, 1, 1]} : vector<28x8x28xf32> to vector<24x8x28xf32>
    %14 = vector.shape_cast %13 : vector<24x8x28xf32> to vector<192x28xf32>
    %c1 = arith.constant 1 : index
    %c0_11 = arith.constant 0 : index
    %c0_12 = arith.constant 0 : index
    %15 = vector.load %arg2[%c1, %c0_11, %c0_12] : memref<5x28x120xf32, #tpu.memory_space<vmem>>, vector<1x28x120xf32>
    %16 = vector.shape_cast %15 : vector<1x28x120xf32> to vector<28x120xf32>
    %cst_13 = arith.constant dense<0.000000e+00> : vector<192x120xf32>
    %17 = tpu.matmul %14, %16, %cst_13 {dimension_numbers = #tpu.dot_dimension_numbers<[1], [0], [0], [1], [0, 0, 1, 1], [], []>} : vector<192x28xf32>, vector<28x120xf32>, vector<192x120xf32> -> vector<192x120xf32>
    %18 = arith.addf %8, %17 : vector<192x120xf32>
    %c1_14 = arith.constant 1 : index
    %c0_15 = arith.constant 0 : index
    %c0_16 = arith.constant 0 : index
    %19 = vector.load %arg3[%c1_14, %c0_15, %c0_16] : memref<5x28x120xf32, #tpu.memory_space<vmem>>, vector<1x28x120xf32>
    %20 = vector.shape_cast %19 : vector<1x28x120xf32> to vector<28x120xf32>
    %cst_17 = arith.constant dense<0.000000e+00> : vector<192x120xf32>
    %21 = tpu.matmul %14, %20, %cst_17 {dimension_numbers = #tpu.dot_dimension_numbers<[1], [0], [0], [1], [0, 0, 1, 1], [], []>} : vector<192x28xf32>, vector<28x120xf32>, vector<192x120xf32> -> vector<192x120xf32>
    %22 = arith.addf %12, %21 : vector<192x120xf32>
    %23 = vector.extract_strided_slice %0 {offsets = [2, 0, 0], sizes = [24, 8, 28], strides = [1, 1, 1]} : vector<28x8x28xf32> to vector<24x8x28xf32>
    %24 = vector.shape_cast %23 : vector<24x8x28xf32> to vector<192x28xf32>
    %c2 = arith.constant 2 : index
    %c0_18 = arith.constant 0 : index
    %c0_19 = arith.constant 0 : index
    %25 = vector.load %arg2[%c2, %c0_18, %c0_19] : memref<5x28x120xf32, #tpu.memory_space<vmem>>, vector<1x28x120xf32>
    %26 = vector.shape_cast %25 : vector<1x28x120xf32> to vector<28x120xf32>
    %cst_20 = arith.constant dense<0.000000e+00> : vector<192x120xf32>
    %27 = tpu.matmul %24, %26, %cst_20 {dimension_numbers = #tpu.dot_dimension_numbers<[1], [0], [0], [1], [0, 0, 1, 1], [], []>} : vector<192x28xf32>, vector<28x120xf32>, vector<192x120xf32> -> vector<192x120xf32>
    %28 = arith.addf %18, %27 : vector<192x120xf32>
    %c2_21 = arith.constant 2 : index
    %c0_22 = arith.constant 0 : index
    %c0_23 = arith.constant 0 : index
    %29 = vector.load %arg3[%c2_21, %c0_22, %c0_23] : memref<5x28x120xf32, #tpu.memory_space<vmem>>, vector<1x28x120xf32>
    %30 = vector.shape_cast %29 : vector<1x28x120xf32> to vector<28x120xf32>
    %cst_24 = arith.constant dense<0.000000e+00> : vector<192x120xf32>
    %31 = tpu.matmul %24, %30, %cst_24 {dimension_numbers = #tpu.dot_dimension_numbers<[1], [0], [0], [1], [0, 0, 1, 1], [], []>} : vector<192x28xf32>, vector<28x120xf32>, vector<192x120xf32> -> vector<192x120xf32>
    %32 = arith.addf %22, %31 : vector<192x120xf32>
    %33 = vector.extract_strided_slice %0 {offsets = [3, 0, 0], sizes = [24, 8, 28], strides = [1, 1, 1]} : vector<28x8x28xf32> to vector<24x8x28xf32>
    %34 = vector.shape_cast %33 : vector<24x8x28xf32> to vector<192x28xf32>
    %c3 = arith.constant 3 : index
    %c0_25 = arith.constant 0 : index
    %c0_26 = arith.constant 0 : index
    %35 = vector.load %arg2[%c3, %c0_25, %c0_26] : memref<5x28x120xf32, #tpu.memory_space<vmem>>, vector<1x28x120xf32>
    %36 = vector.shape_cast %35 : vector<1x28x120xf32> to vector<28x120xf32>
    %cst_27 = arith.constant dense<0.000000e+00> : vector<192x120xf32>
    %37 = tpu.matmul %34, %36, %cst_27 {dimension_numbers = #tpu.dot_dimension_numbers<[1], [0], [0], [1], [0, 0, 1, 1], [], []>} : vector<192x28xf32>, vector<28x120xf32>, vector<192x120xf32> -> vector<192x120xf32>
    %38 = arith.addf %28, %37 : vector<192x120xf32>
    %c3_28 = arith.constant 3 : index
    %c0_29 = arith.constant 0 : index
    %c0_30 = arith.constant 0 : index
    %39 = vector.load %arg3[%c3_28, %c0_29, %c0_30] : memref<5x28x120xf32, #tpu.memory_space<vmem>>, vector<1x28x120xf32>
    %40 = vector.shape_cast %39 : vector<1x28x120xf32> to vector<28x120xf32>
    %cst_31 = arith.constant dense<0.000000e+00> : vector<192x120xf32>
    %41 = tpu.matmul %34, %40, %cst_31 {dimension_numbers = #tpu.dot_dimension_numbers<[1], [0], [0], [1], [0, 0, 1, 1], [], []>} : vector<192x28xf32>, vector<28x120xf32>, vector<192x120xf32> -> vector<192x120xf32>
    %42 = arith.addf %32, %41 : vector<192x120xf32>
    %43 = vector.extract_strided_slice %0 {offsets = [4, 0, 0], sizes = [24, 8, 28], strides = [1, 1, 1]} : vector<28x8x28xf32> to vector<24x8x28xf32>
    %44 = vector.shape_cast %43 : vector<24x8x28xf32> to vector<192x28xf32>
    %c4 = arith.constant 4 : index
    %c0_32 = arith.constant 0 : index
    %c0_33 = arith.constant 0 : index
    %45 = vector.load %arg2[%c4, %c0_32, %c0_33] : memref<5x28x120xf32, #tpu.memory_space<vmem>>, vector<1x28x120xf32>
    %46 = vector.shape_cast %45 : vector<1x28x120xf32> to vector<28x120xf32>
    %cst_34 = arith.constant dense<0.000000e+00> : vector<192x120xf32>
    %47 = tpu.matmul %44, %46, %cst_34 {dimension_numbers = #tpu.dot_dimension_numbers<[1], [0], [0], [1], [0, 0, 1, 1], [], []>} : vector<192x28xf32>, vector<28x120xf32>, vector<192x120xf32> -> vector<192x120xf32>
    %48 = arith.addf %38, %47 : vector<192x120xf32>
    %c4_35 = arith.constant 4 : index
    %c0_36 = arith.constant 0 : index
    %c0_37 = arith.constant 0 : index
    %49 = vector.load %arg3[%c4_35, %c0_36, %c0_37] : memref<5x28x120xf32, #tpu.memory_space<vmem>>, vector<1x28x120xf32>
    %50 = vector.shape_cast %49 : vector<1x28x120xf32> to vector<28x120xf32>
    %cst_38 = arith.constant dense<0.000000e+00> : vector<192x120xf32>
    %51 = tpu.matmul %44, %50, %cst_38 {dimension_numbers = #tpu.dot_dimension_numbers<[1], [0], [0], [1], [0, 0, 1, 1], [], []>} : vector<192x28xf32>, vector<28x120xf32>, vector<192x120xf32> -> vector<192x120xf32>
    %52 = arith.addf %42, %51 : vector<192x120xf32>
    %53 = arith.maximumf %48, %52 : vector<192x120xf32>
    %54 = vector.shape_cast %53 : vector<192x120xf32> to vector<12x2x8x120xf32>
    %55 = vector.extract_strided_slice %54 {offsets = [0, 0, 0, 0], sizes = [12, 1, 8, 120], strides = [1, 1, 1, 1]} : vector<12x2x8x120xf32> to vector<12x1x8x120xf32>
    %56 = vector.shape_cast %55 : vector<12x1x8x120xf32> to vector<12x8x120xf32>
    %57 = vector.extract_strided_slice %54 {offsets = [0, 1, 0, 0], sizes = [12, 1, 8, 120], strides = [1, 1, 1, 1]} : vector<12x2x8x120xf32> to vector<12x1x8x120xf32>
    %58 = vector.shape_cast %57 : vector<12x1x8x120xf32> to vector<12x8x120xf32>
    %59 = arith.maximumf %56, %58 : vector<12x8x120xf32>
    %c0_39 = arith.constant 0 : index
    %c0_40 = arith.constant 0 : index
    %60 = vector.load %arg4[%c0_39, %c0_40] : memref<1x120xf32, #tpu.memory_space<vmem>>, vector<1x120xf32>
    %61 = vector.shape_cast %60 : vector<1x120xf32> to vector<1x1x120xf32>
    %62 = vector.broadcast %61 : vector<1x1x120xf32> to vector<12x8x120xf32>
    %63 = arith.addf %59, %62 : vector<12x8x120xf32>
    %cst_41 = arith.constant 0.000000e+00 : f32
    %64 = vector.broadcast %cst_41 : f32 to vector<12x8x120xf32>
    %65 = arith.maximumf %63, %64 : vector<12x8x120xf32>
    %cst_42 = arith.constant 0.000000e+00 : f32
    %66 = vector.broadcast %cst_42 : f32 to vector<64x80xf32>
    %cst_43 = arith.constant 0.000000e+00 : f32
    %67 = vector.broadcast %cst_43 : f32 to vector<64x80xf32>
    %68 = vector.extract_strided_slice %65 {offsets = [0, 0, 0], sizes = [8, 8, 120], strides = [1, 1, 1]} : vector<12x8x120xf32> to vector<8x8x120xf32>
    %69 = vector.shape_cast %68 : vector<8x8x120xf32> to vector<64x120xf32>
    %c0_44 = arith.constant 0 : index
    %c0_45 = arith.constant 0 : index
    %c0_46 = arith.constant 0 : index
    %70 = vector.load %arg5[%c0_44, %c0_45, %c0_46] : memref<5x120x80xf32, #tpu.memory_space<vmem>>, vector<1x120x80xf32>
    %71 = vector.shape_cast %70 : vector<1x120x80xf32> to vector<120x80xf32>
    %cst_47 = arith.constant dense<0.000000e+00> : vector<64x80xf32>
    %72 = tpu.matmul %69, %71, %cst_47 {dimension_numbers = #tpu.dot_dimension_numbers<[1], [0], [0], [1], [0, 0, 1, 1], [], []>} : vector<64x120xf32>, vector<120x80xf32>, vector<64x80xf32> -> vector<64x80xf32>
    %73 = arith.addf %66, %72 : vector<64x80xf32>
    %c0_48 = arith.constant 0 : index
    %c0_49 = arith.constant 0 : index
    %c0_50 = arith.constant 0 : index
    %74 = vector.load %arg6[%c0_48, %c0_49, %c0_50] : memref<5x120x80xf32, #tpu.memory_space<vmem>>, vector<1x120x80xf32>
    %75 = vector.shape_cast %74 : vector<1x120x80xf32> to vector<120x80xf32>
    %cst_51 = arith.constant dense<0.000000e+00> : vector<64x80xf32>
    %76 = tpu.matmul %69, %75, %cst_51 {dimension_numbers = #tpu.dot_dimension_numbers<[1], [0], [0], [1], [0, 0, 1, 1], [], []>} : vector<64x120xf32>, vector<120x80xf32>, vector<64x80xf32> -> vector<64x80xf32>
    %77 = arith.addf %67, %76 : vector<64x80xf32>
    %78 = vector.extract_strided_slice %65 {offsets = [1, 0, 0], sizes = [8, 8, 120], strides = [1, 1, 1]} : vector<12x8x120xf32> to vector<8x8x120xf32>
    %79 = vector.shape_cast %78 : vector<8x8x120xf32> to vector<64x120xf32>
    %c1_52 = arith.constant 1 : index
    %c0_53 = arith.constant 0 : index
    %c0_54 = arith.constant 0 : index
    %80 = vector.load %arg5[%c1_52, %c0_53, %c0_54] : memref<5x120x80xf32, #tpu.memory_space<vmem>>, vector<1x120x80xf32>
    %81 = vector.shape_cast %80 : vector<1x120x80xf32> to vector<120x80xf32>
    %cst_55 = arith.constant dense<0.000000e+00> : vector<64x80xf32>
    %82 = tpu.matmul %79, %81, %cst_55 {dimension_numbers = #tpu.dot_dimension_numbers<[1], [0], [0], [1], [0, 0, 1, 1], [], []>} : vector<64x120xf32>, vector<120x80xf32>, vector<64x80xf32> -> vector<64x80xf32>
    %83 = arith.addf %73, %82 : vector<64x80xf32>
    %c1_56 = arith.constant 1 : index
    %c0_57 = arith.constant 0 : index
    %c0_58 = arith.constant 0 : index
    %84 = vector.load %arg6[%c1_56, %c0_57, %c0_58] : memref<5x120x80xf32, #tpu.memory_space<vmem>>, vector<1x120x80xf32>
    %85 = vector.shape_cast %84 : vector<1x120x80xf32> to vector<120x80xf32>
    %cst_59 = arith.constant dense<0.000000e+00> : vector<64x80xf32>
    %86 = tpu.matmul %79, %85, %cst_59 {dimension_numbers = #tpu.dot_dimension_numbers<[1], [0], [0], [1], [0, 0, 1, 1], [], []>} : vector<64x120xf32>, vector<120x80xf32>, vector<64x80xf32> -> vector<64x80xf32>
    %87 = arith.addf %77, %86 : vector<64x80xf32>
    %88 = vector.extract_strided_slice %65 {offsets = [2, 0, 0], sizes = [8, 8, 120], strides = [1, 1, 1]} : vector<12x8x120xf32> to vector<8x8x120xf32>
    %89 = vector.shape_cast %88 : vector<8x8x120xf32> to vector<64x120xf32>
    %c2_60 = arith.constant 2 : index
    %c0_61 = arith.constant 0 : index
    %c0_62 = arith.constant 0 : index
    %90 = vector.load %arg5[%c2_60, %c0_61, %c0_62] : memref<5x120x80xf32, #tpu.memory_space<vmem>>, vector<1x120x80xf32>
    %91 = vector.shape_cast %90 : vector<1x120x80xf32> to vector<120x80xf32>
    %cst_63 = arith.constant dense<0.000000e+00> : vector<64x80xf32>
    %92 = tpu.matmul %89, %91, %cst_63 {dimension_numbers = #tpu.dot_dimension_numbers<[1], [0], [0], [1], [0, 0, 1, 1], [], []>} : vector<64x120xf32>, vector<120x80xf32>, vector<64x80xf32> -> vector<64x80xf32>
    %93 = arith.addf %83, %92 : vector<64x80xf32>
    %c2_64 = arith.constant 2 : index
    %c0_65 = arith.constant 0 : index
    %c0_66 = arith.constant 0 : index
    %94 = vector.load %arg6[%c2_64, %c0_65, %c0_66] : memref<5x120x80xf32, #tpu.memory_space<vmem>>, vector<1x120x80xf32>
    %95 = vector.shape_cast %94 : vector<1x120x80xf32> to vector<120x80xf32>
    %cst_67 = arith.constant dense<0.000000e+00> : vector<64x80xf32>
    %96 = tpu.matmul %89, %95, %cst_67 {dimension_numbers = #tpu.dot_dimension_numbers<[1], [0], [0], [1], [0, 0, 1, 1], [], []>} : vector<64x120xf32>, vector<120x80xf32>, vector<64x80xf32> -> vector<64x80xf32>
    %97 = arith.addf %87, %96 : vector<64x80xf32>
    %98 = vector.extract_strided_slice %65 {offsets = [3, 0, 0], sizes = [8, 8, 120], strides = [1, 1, 1]} : vector<12x8x120xf32> to vector<8x8x120xf32>
    %99 = vector.shape_cast %98 : vector<8x8x120xf32> to vector<64x120xf32>
    %c3_68 = arith.constant 3 : index
    %c0_69 = arith.constant 0 : index
    %c0_70 = arith.constant 0 : index
    %100 = vector.load %arg5[%c3_68, %c0_69, %c0_70] : memref<5x120x80xf32, #tpu.memory_space<vmem>>, vector<1x120x80xf32>
    %101 = vector.shape_cast %100 : vector<1x120x80xf32> to vector<120x80xf32>
    %cst_71 = arith.constant dense<0.000000e+00> : vector<64x80xf32>
    %102 = tpu.matmul %99, %101, %cst_71 {dimension_numbers = #tpu.dot_dimension_numbers<[1], [0], [0], [1], [0, 0, 1, 1], [], []>} : vector<64x120xf32>, vector<120x80xf32>, vector<64x80xf32> -> vector<64x80xf32>
    %103 = arith.addf %93, %102 : vector<64x80xf32>
    %c3_72 = arith.constant 3 : index
    %c0_73 = arith.constant 0 : index
    %c0_74 = arith.constant 0 : index
    %104 = vector.load %arg6[%c3_72, %c0_73, %c0_74] : memref<5x120x80xf32, #tpu.memory_space<vmem>>, vector<1x120x80xf32>
    %105 = vector.shape_cast %104 : vector<1x120x80xf32> to vector<120x80xf32>
    %cst_75 = arith.constant dense<0.000000e+00> : vector<64x80xf32>
    %106 = tpu.matmul %99, %105, %cst_75 {dimension_numbers = #tpu.dot_dimension_numbers<[1], [0], [0], [1], [0, 0, 1, 1], [], []>} : vector<64x120xf32>, vector<120x80xf32>, vector<64x80xf32> -> vector<64x80xf32>
    %107 = arith.addf %97, %106 : vector<64x80xf32>
    %108 = vector.extract_strided_slice %65 {offsets = [4, 0, 0], sizes = [8, 8, 120], strides = [1, 1, 1]} : vector<12x8x120xf32> to vector<8x8x120xf32>
    %109 = vector.shape_cast %108 : vector<8x8x120xf32> to vector<64x120xf32>
    %c4_76 = arith.constant 4 : index
    %c0_77 = arith.constant 0 : index
    %c0_78 = arith.constant 0 : index
    %110 = vector.load %arg5[%c4_76, %c0_77, %c0_78] : memref<5x120x80xf32, #tpu.memory_space<vmem>>, vector<1x120x80xf32>
    %111 = vector.shape_cast %110 : vector<1x120x80xf32> to vector<120x80xf32>
    %cst_79 = arith.constant dense<0.000000e+00> : vector<64x80xf32>
    %112 = tpu.matmul %109, %111, %cst_79 {dimension_numbers = #tpu.dot_dimension_numbers<[1], [0], [0], [1], [0, 0, 1, 1], [], []>} : vector<64x120xf32>, vector<120x80xf32>, vector<64x80xf32> -> vector<64x80xf32>
    %113 = arith.addf %103, %112 : vector<64x80xf32>
    %c4_80 = arith.constant 4 : index
    %c0_81 = arith.constant 0 : index
    %c0_82 = arith.constant 0 : index
    %114 = vector.load %arg6[%c4_80, %c0_81, %c0_82] : memref<5x120x80xf32, #tpu.memory_space<vmem>>, vector<1x120x80xf32>
    %115 = vector.shape_cast %114 : vector<1x120x80xf32> to vector<120x80xf32>
    %cst_83 = arith.constant dense<0.000000e+00> : vector<64x80xf32>
    %116 = tpu.matmul %109, %115, %cst_83 {dimension_numbers = #tpu.dot_dimension_numbers<[1], [0], [0], [1], [0, 0, 1, 1], [], []>} : vector<64x120xf32>, vector<120x80xf32>, vector<64x80xf32> -> vector<64x80xf32>
    %117 = arith.addf %107, %116 : vector<64x80xf32>
    %118 = arith.maximumf %113, %117 : vector<64x80xf32>
    %119 = vector.shape_cast %118 : vector<64x80xf32> to vector<4x2x8x80xf32>
    %120 = vector.extract_strided_slice %119 {offsets = [0, 0, 0, 0], sizes = [4, 1, 8, 80], strides = [1, 1, 1, 1]} : vector<4x2x8x80xf32> to vector<4x1x8x80xf32>
    %121 = vector.shape_cast %120 : vector<4x1x8x80xf32> to vector<4x8x80xf32>
    %122 = vector.extract_strided_slice %119 {offsets = [0, 1, 0, 0], sizes = [4, 1, 8, 80], strides = [1, 1, 1, 1]} : vector<4x2x8x80xf32> to vector<4x1x8x80xf32>
    %123 = vector.shape_cast %122 : vector<4x1x8x80xf32> to vector<4x8x80xf32>
    %124 = arith.maximumf %121, %123 : vector<4x8x80xf32>
    %c0_84 = arith.constant 0 : index
    %c0_85 = arith.constant 0 : index
    %125 = vector.load %arg7[%c0_84, %c0_85] : memref<1x80xf32, #tpu.memory_space<vmem>>, vector<1x80xf32>
    %126 = vector.shape_cast %125 : vector<1x80xf32> to vector<1x1x80xf32>
    %127 = vector.broadcast %126 : vector<1x1x80xf32> to vector<4x8x80xf32>
    %128 = arith.addf %124, %127 : vector<4x8x80xf32>
    %cst_86 = arith.constant 0.000000e+00 : f32
    %129 = vector.broadcast %cst_86 : f32 to vector<4x8x80xf32>
    %130 = arith.maximumf %128, %129 : vector<4x8x80xf32>
    %cst_87 = arith.constant 0.000000e+00 : f32
    %131 = vector.broadcast %cst_87 : f32 to vector<8x10xf32>
    %132 = vector.extract_strided_slice %130 {offsets = [0, 0, 0], sizes = [1, 8, 80], strides = [1, 1, 1]} : vector<4x8x80xf32> to vector<1x8x80xf32>
    %133 = vector.shape_cast %132 : vector<1x8x80xf32> to vector<8x80xf32>
    %c0_88 = arith.constant 0 : index
    %c0_89 = arith.constant 0 : index
    %c0_90 = arith.constant 0 : index
    %134 = vector.load %arg8[%c0_88, %c0_89, %c0_90] : memref<4x80x10xf32, #tpu.memory_space<vmem>>, vector<1x80x10xf32>
    %135 = vector.shape_cast %134 : vector<1x80x10xf32> to vector<80x10xf32>
    %cst_91 = arith.constant dense<0.000000e+00> : vector<8x10xf32>
    %136 = tpu.matmul %133, %135, %cst_91 {dimension_numbers = #tpu.dot_dimension_numbers<[1], [0], [0], [1], [0, 0, 1, 1], [], []>} : vector<8x80xf32>, vector<80x10xf32>, vector<8x10xf32> -> vector<8x10xf32>
    %137 = arith.addf %131, %136 : vector<8x10xf32>
    %138 = vector.extract_strided_slice %130 {offsets = [1, 0, 0], sizes = [1, 8, 80], strides = [1, 1, 1]} : vector<4x8x80xf32> to vector<1x8x80xf32>
    %139 = vector.shape_cast %138 : vector<1x8x80xf32> to vector<8x80xf32>
    %c1_92 = arith.constant 1 : index
    %c0_93 = arith.constant 0 : index
    %c0_94 = arith.constant 0 : index
    %140 = vector.load %arg8[%c1_92, %c0_93, %c0_94] : memref<4x80x10xf32, #tpu.memory_space<vmem>>, vector<1x80x10xf32>
    %141 = vector.shape_cast %140 : vector<1x80x10xf32> to vector<80x10xf32>
    %cst_95 = arith.constant dense<0.000000e+00> : vector<8x10xf32>
    %142 = tpu.matmul %139, %141, %cst_95 {dimension_numbers = #tpu.dot_dimension_numbers<[1], [0], [0], [1], [0, 0, 1, 1], [], []>} : vector<8x80xf32>, vector<80x10xf32>, vector<8x10xf32> -> vector<8x10xf32>
    %143 = arith.addf %137, %142 : vector<8x10xf32>
    %144 = vector.extract_strided_slice %130 {offsets = [2, 0, 0], sizes = [1, 8, 80], strides = [1, 1, 1]} : vector<4x8x80xf32> to vector<1x8x80xf32>
    %145 = vector.shape_cast %144 : vector<1x8x80xf32> to vector<8x80xf32>
    %c2_96 = arith.constant 2 : index
    %c0_97 = arith.constant 0 : index
    %c0_98 = arith.constant 0 : index
    %146 = vector.load %arg8[%c2_96, %c0_97, %c0_98] : memref<4x80x10xf32, #tpu.memory_space<vmem>>, vector<1x80x10xf32>
    %147 = vector.shape_cast %146 : vector<1x80x10xf32> to vector<80x10xf32>
    %cst_99 = arith.constant dense<0.000000e+00> : vector<8x10xf32>
    %148 = tpu.matmul %145, %147, %cst_99 {dimension_numbers = #tpu.dot_dimension_numbers<[1], [0], [0], [1], [0, 0, 1, 1], [], []>} : vector<8x80xf32>, vector<80x10xf32>, vector<8x10xf32> -> vector<8x10xf32>
    %149 = arith.addf %143, %148 : vector<8x10xf32>
    %150 = vector.extract_strided_slice %130 {offsets = [3, 0, 0], sizes = [1, 8, 80], strides = [1, 1, 1]} : vector<4x8x80xf32> to vector<1x8x80xf32>
    %151 = vector.shape_cast %150 : vector<1x8x80xf32> to vector<8x80xf32>
    %c3_100 = arith.constant 3 : index
    %c0_101 = arith.constant 0 : index
    %c0_102 = arith.constant 0 : index
    %152 = vector.load %arg8[%c3_100, %c0_101, %c0_102] : memref<4x80x10xf32, #tpu.memory_space<vmem>>, vector<1x80x10xf32>
    %153 = vector.shape_cast %152 : vector<1x80x10xf32> to vector<80x10xf32>
    %cst_103 = arith.constant dense<0.000000e+00> : vector<8x10xf32>
    %154 = tpu.matmul %151, %153, %cst_103 {dimension_numbers = #tpu.dot_dimension_numbers<[1], [0], [0], [1], [0, 0, 1, 1], [], []>} : vector<8x80xf32>, vector<80x10xf32>, vector<8x10xf32> -> vector<8x10xf32>
    %155 = arith.addf %149, %154 : vector<8x10xf32>
    %c0_104 = arith.constant 0 : index
    %c0_105 = arith.constant 0 : index
    %156 = vector.load %arg9[%c0_104, %c0_105] : memref<1x10xf32, #tpu.memory_space<vmem>>, vector<1x10xf32>
    %157 = vector.broadcast %156 : vector<1x10xf32> to vector<8x10xf32>
    %158 = arith.addf %155, %157 : vector<8x10xf32>
    %c0_106 = arith.constant 0 : index
    %c0_107 = arith.constant 0 : index
    %159 = vector.load %arg10[%c0_106, %c0_107] : memref<8x10xf32, #tpu.memory_space<vmem>>, vector<8x10xf32>
    tpu.vector_store %arg10[%c0_106, %c0_107], %158 {strides = array<i32>} : memref<8x10xf32, #tpu.memory_space<vmem>>, vector<8x10xf32>,
    return
  }
  func.func @transform_0(%arg0: i32) -> (i32, i32, i32) {
    %c0_i32 = arith.constant 0 : i32
    %c0_i32_0 = arith.constant 0 : i32
    %c0_i32_1 = arith.constant 0 : i32
    return %c0_i32, %arg0, %c0_i32_0 : i32, i32, i32
  }
  func.func @transform_1(%arg0: i32) -> (i32, i32, i32) {
    %c0_i32 = arith.constant 0 : i32
    %c0_i32_0 = arith.constant 0 : i32
    %c0_i32_1 = arith.constant 0 : i32
    %c0_i32_2 = arith.constant 0 : i32
    return %c0_i32, %c0_i32_0, %c0_i32_1 : i32, i32, i32
  }
  func.func @transform_2(%arg0: i32) -> (i32, i32, i32) {
    %c0_i32 = arith.constant 0 : i32
    %c0_i32_0 = arith.constant 0 : i32
    %c0_i32_1 = arith.constant 0 : i32
    %c0_i32_2 = arith.constant 0 : i32
    return %c0_i32, %c0_i32_0, %c0_i32_1 : i32, i32, i32
  }
  func.func @transform_3(%arg0: i32) -> (i32, i32) {
    %c0_i32 = arith.constant 0 : i32
    %c0_i32_0 = arith.constant 0 : i32
    %c0_i32_1 = arith.constant 0 : i32
    return %c0_i32, %c0_i32_0 : i32, i32
  }
  func.func @transform_4(%arg0: i32) -> (i32, i32, i32) {
    %c0_i32 = arith.constant 0 : i32
    %c0_i32_0 = arith.constant 0 : i32
    %c0_i32_1 = arith.constant 0 : i32
    %c0_i32_2 = arith.constant 0 : i32
    return %c0_i32, %c0_i32_0, %c0_i32_1 : i32, i32, i32
  }
  func.func @transform_5(%arg0: i32) -> (i32, i32, i32) {
    %c0_i32 = arith.constant 0 : i32
    %c0_i32_0 = arith.constant 0 : i32
    %c0_i32_1 = arith.constant 0 : i32
    %c0_i32_2 = arith.constant 0 : i32
    return %c0_i32, %c0_i32_0, %c0_i32_1 : i32, i32, i32
  }
  func.func @transform_6(%arg0: i32) -> (i32, i32) {
    %c0_i32 = arith.constant 0 : i32
    %c0_i32_0 = arith.constant 0 : i32
    %c0_i32_1 = arith.constant 0 : i32
    return %c0_i32, %c0_i32_0 : i32, i32
  }
  func.func @transform_7(%arg0: i32) -> (i32, i32, i32) {
    %c0_i32 = arith.constant 0 : i32
    %c0_i32_0 = arith.constant 0 : i32
    %c0_i32_1 = arith.constant 0 : i32
    %c0_i32_2 = arith.constant 0 : i32
    return %c0_i32, %c0_i32_0, %c0_i32_1 : i32, i32, i32
  }
  func.func @transform_8(%arg0: i32) -> (i32, i32) {
    %c0_i32 = arith.constant 0 : i32
    %c0_i32_0 = arith.constant 0 : i32
    %c0_i32_1 = arith.constant 0 : i32
    return %c0_i32, %c0_i32_0 : i32, i32
  }
  func.func @transform_9(%arg0: i32) -> (i32, i32) {
    %c0_i32 = arith.constant 0 : i32
    %c0_i32_0 = arith.constant 0 : i32
    return %arg0, %c0_i32 : i32, i32
  }
}

</mosaic_0001>

<llo_original>
// kernel: tpu_custom_call.1
$region0: #{tpu_custom_call.1}
  #allocation0 [shape = 'u32[]', space=smem, size = 0x4, offset = 0x4, fixed_abs, tag = 'smem constant byte address 0x4 - core index']
  #allocation1 [shape = 'u32[144,128]{1,0:T(1,128)}', space=vmem, size = 0x12000, scoped, tag = 'internal scratch']
  %s0 = inlined_call_operand.vmem [shape: f32[28,64,28], index: 0, kind: input, shape index: {}]
  %s1 = inlined_call_operand.vmem [shape: f32[5,28,120], index: 1, kind: input, shape index: {}]
  %s2 = inlined_call_operand.vmem [shape: f32[5,28,120], index: 2, kind: input, shape index: {}]
  %s3 = inlined_call_operand.vmem [shape: f32[1,120], index: 3, kind: input, shape index: {}]
  %s4 = inlined_call_operand.vmem [shape: f32[5,120,80], index: 4, kind: input, shape index: {}]
  %s5 = inlined_call_operand.vmem [shape: f32[5,120,80], index: 5, kind: input, shape index: {}]
  %s6 = inlined_call_operand.vmem [shape: f32[1,80], index: 6, kind: input, shape index: {}]
  %s7 = inlined_call_operand.vmem [shape: f32[4,80,10], index: 7, kind: input, shape index: {}]
  %s8 = inlined_call_operand.vmem [shape: f32[1,10], index: 8, kind: input, shape index: {}]
  %s9 = inlined_call_operand.vmem [shape: f32[64,10], index: 9, kind: output, shape index: {}]
  %s10 = sld [smem:[#allocation0]]
  $region107: #{tpu_custom_call.1} parent=0
    _
  %s12 = ssub.s32 1, %s10
  %s13 = scalar_select 0, %s12, %s10
  $region1: #{tpu_custom_call.1} parent=0
    #allocation2 [shape = 'u8[229376]{0}', space=vmem, size = 0x38000, scoped, tag = 'input window, operand 0']
    loop: start=0, step=1, limit=10
    $region2: #{tpu_custom_call.1} parent=1 // loop_pre_header
      _
    $region3: #{tpu_custom_call.1} parent=1 // loop_header
      %s15 = sphi 0, %s19
      %p16 = scmp.ge.s32.totalorder %s15, 10
      %s25 = sphi 0, %s27
      %s28 = sphi 0, %s25
      %s29 = sphi 0, %s28
      %s45 = sphi 0, %s29
      %s49 = sphi 0, %s49
      %s51 = sphi 0, %s49
      %s52 = sphi 0, %s51
      %s66 = sphi 0, %s52
      %s70 = sphi 0, %s70
      %s72 = sphi 0, %s70
      %s73 = sphi 0, %s72
      %s87 = sphi 0, %s73
      %s91 = sphi 0, %s91
      %s93 = sphi 0, %s91
      %s94 = sphi 0, %s93
      %s108 = sphi 0, %s94
      %s112 = sphi 0, %s112
      %s114 = sphi 0, %s112
      %s115 = sphi 0, %s114
      %s129 = sphi 0, %s115
      %s133 = sphi 0, %s133
      %s135 = sphi 0, %s133
      %s136 = sphi 0, %s135
      %s150 = sphi 0, %s136
      %s154 = sphi 0, %s154
      %s156 = sphi 0, %s154
      %s157 = sphi 0, %s156
      %s171 = sphi 0, %s157
      %s175 = sphi 0, %s175
      %s177 = sphi 0, %s175
      %s178 = sphi 0, %s177
      %s192 = sphi 0, %s178
      %s196 = sphi 0, %s196
      %s198 = sphi 0, %s196
      %s199 = sphi 0, %s198
      %s213 = sphi 0, %s199
      %s219 = sphi 0, %s221
      %s222 = sphi 0, %s219
      %s223 = sphi 0, %s222
      %s239 = sphi 0, %s223
    $region4: #{tpu_custom_call.1} parent=1 // loop_header_branch
      %18 = sbr.rel (%p16) target = $region8
    $region5: #{tpu_custom_call.1} parent=1 // loop_body
      %s20 = ssub.s32 %s15, 1
      %s21 = ssub.s32 %s15, 2
      %s22 = sadd.s32 %s15, 1
      %s23 = ssub.s32 %s15, %s22
      %p24 = scmp.eq.s32.totalorder %s23, 0
      %s26 = sadd.s32 %s25, 1
      %s27 = scalar_select %p24, %s25, %s26
      %p30 = pneg %p24
      %p31 = scmp.eq.s32.totalorder %s15, 7
      %p32 = por %p30, %p31
      %p33 = scmp.ne.s32.totalorder %s25, %s28
      %p34 = scmp.eq.s32.totalorder %s15, 0
      %p35 = por %p33, %p34
      %p36 = scmp.ne.s32.totalorder %s25, %s28
      %p37 = scmp.eq.s32.totalorder %s20, 7
      %p38 = por %p36, %p37
      %p39 = scmp.ne.s32.totalorder %s28, %s29
      %p40 = scmp.eq.s32.totalorder %s20, 0
      %p41 = por %p39, %p40
      %p42 = scmp.ne.s32.totalorder %s28, %s29
      %p43 = scmp.eq.s32.totalorder %s21, 7
      %p44 = por %p42, %p43
      %p46 = scmp.ne.s32.totalorder %s29, %s45
      %p47 = scmp.eq.s32.totalorder %s21, 0
      %p48 = por %p46, %p47
      %s50 = sadd.s32 %s49, 1
      %p53 = scmp.eq.s32.totalorder %s15, 7
      %p54 = scmp.ne.s32.totalorder %s49, %s51
      %p55 = scmp.eq.s32.totalorder %s15, 0
      %p56 = por %p54, %p55
      %p57 = scmp.ne.s32.totalorder %s49, %s51
      %p58 = scmp.eq.s32.totalorder %s20, 7
      %p59 = por %p57, %p58
      %p60 = scmp.ne.s32.totalorder %s51, %s52
      %p61 = scmp.eq.s32.totalorder %s20, 0
      %p62 = por %p60, %p61
      %p63 = scmp.ne.s32.totalorder %s51, %s52
      %p64 = scmp.eq.s32.totalorder %s21, 7
      %p65 = por %p63, %p64
      %p67 = scmp.ne.s32.totalorder %s52, %s66
      %p68 = scmp.eq.s32.totalorder %s21, 0
      %p69 = por %p67, %p68
      %s71 = sadd.s32 %s70, 1
      %p74 = scmp.eq.s32.totalorder %s15, 7
      %p75 = scmp.ne.s32.totalorder %s70, %s72
      %p76 = scmp.eq.s32.totalorder %s15, 0
      %p77 = por %p75, %p76
      %p78 = scmp.ne.s32.totalorder %s70, %s72
      %p79 = scmp.eq.s32.totalorder %s20, 7
      %p80 = por %p78, %p79
      %p81 = scmp.ne.s32.totalorder %s72, %s73
      %p82 = scmp.eq.s32.totalorder %s20, 0
      %p83 = por %p81, %p82
      %p84 = scmp.ne.s32.totalorder %s72, %s73
      %p85 = scmp.eq.s32.totalorder %s21, 7
      %p86 = por %p84, %p85
      %p88 = scmp.ne.s32.totalorder %s73, %s87
      %p89 = scmp.eq.s32.totalorder %s21, 0
      %p90 = por %p88, %p89
      %s92 = sadd.s32 %s91, 1
      %p95 = scmp.eq.s32.totalorder %s15, 7
      %p96 = scmp.ne.s32.totalorder %s91, %s93
      %p97 = scmp.eq.s32.totalorder %s15, 0
      %p98 = por %p96, %p97
      %p99 = scmp.ne.s32.totalorder %s91, %s93
      %p100 = scmp.eq.s32.totalorder %s20, 7
      %p101 = por %p99, %p100
      %p102 = scmp.ne.s32.totalorder %s93, %s94
      %p103 = scmp.eq.s32.totalorder %s20, 0
      %p104 = por %p102, %p103
      %p105 = scmp.ne.s32.totalorder %s93, %s94
      %p106 = scmp.eq.s32.totalorder %s21, 7
      %p107 = por %p105, %p106
      %p109 = scmp.ne.s32.totalorder %s94, %s108
      %p110 = scmp.eq.s32.totalorder %s21, 0
      %p111 = por %p109, %p110
      %s113 = sadd.s32 %s112, 1
      %p116 = scmp.eq.s32.totalorder %s15, 7
      %p117 = scmp.ne.s32.totalorder %s112, %s114
      %p118 = scmp.eq.s32.totalorder %s15, 0
      %p119 = por %p117, %p118
      %p120 = scmp.ne.s32.totalorder %s112, %s114
      %p121 = scmp.eq.s32.totalorder %s20, 7
      %p122 = por %p120, %p121
      %p123 = scmp.ne.s32.totalorder %s114, %s115
      %p124 = scmp.eq.s32.totalorder %s20, 0
      %p125 = por %p123, %p124
      %p126 = scmp.ne.s32.totalorder %s114, %s115
      %p127 = scmp.eq.s32.totalorder %s21, 7
      %p128 = por %p126, %p127
      %p130 = scmp.ne.s32.totalorder %s115, %s129
      %p131 = scmp.eq.s32.totalorder %s21, 0
      %p132 = por %p130, %p131
      %s134 = sadd.s32 %s133, 1
      %p137 = scmp.eq.s32.totalorder %s15, 7
      %p138 = scmp.ne.s32.totalorder %s133, %s135
      %p139 = scmp.eq.s32.totalorder %s15, 0
      %p140 = por %p138, %p139
      %p141 = scmp.ne.s32.totalorder %s133, %s135
      %p142 = scmp.eq.s32.totalorder %s20, 7
      %p143 = por %p141, %p142
      %p144 = scmp.ne.s32.totalorder %s135, %s136
      %p145 = scmp.eq.s32.totalorder %s20, 0
      %p146 = por %p144, %p145
      %p147 = scmp.ne.s32.totalorder %s135, %s136
      %p148 = scmp.eq.s32.totalorder %s21, 7
      %p149 = por %p147, %p148
      %p151 = scmp.ne.s32.totalorder %s136, %s150
      %p152 = scmp.eq.s32.totalorder %s21, 0
      %p153 = por %p151, %p152
      %s155 = sadd.s32 %s154, 1
      %p158 = scmp.eq.s32.totalorder %s15, 7
      %p159 = scmp.ne.s32.totalorder %s154, %s156
      %p160 = scmp.eq.s32.totalorder %s15, 0
      %p161 = por %p159, %p160
      %p162 = scmp.ne.s32.totalorder %s154, %s156
      %p163 = scmp.eq.s32.totalorder %s20, 7
      %p164 = por %p162, %p163
      %p165 = scmp.ne.s32.totalorder %s156, %s157
      %p166 = scmp.eq.s32.totalorder %s20, 0
      %p167 = por %p165, %p166
      %p168 = scmp.ne.s32.totalorder %s156, %s157
      %p169 = scmp.eq.s32.totalorder %s21, 7
      %p170 = por %p168, %p169
      %p172 = scmp.ne.s32.totalorder %s157, %s171
      %p173 = scmp.eq.s32.totalorder %s21, 0
      %p174 = por %p172, %p173
      %s176 = sadd.s32 %s175, 1
      %p179 = scmp.eq.s32.totalorder %s15, 7
      %p180 = scmp.ne.s32.totalorder %s175, %s177
      %p181 = scmp.eq.s32.totalorder %s15, 0
      %p182 = por %p180, %p181
      %p183 = scmp.ne.s32.totalorder %s175, %s177
      %p184 = scmp.eq.s32.totalorder %s20, 7
      %p185 = por %p183, %p184
      %p186 = scmp.ne.s32.totalorder %s177, %s178
      %p187 = scmp.eq.s32.totalorder %s20, 0
      %p188 = por %p186, %p187
      %p189 = scmp.ne.s32.totalorder %s177, %s178
      %p190 = scmp.eq.s32.totalorder %s21, 7
      %p191 = por %p189, %p190
      %p193 = scmp.ne.s32.totalorder %s178, %s192
      %p194 = scmp.eq.s32.totalorder %s21, 0
      %p195 = por %p193, %p194
      %s197 = sadd.s32 %s196, 1
      %p200 = scmp.eq.s32.totalorder %s15, 7
      %p201 = scmp.ne.s32.totalorder %s196, %s198
      %p202 = scmp.eq.s32.totalorder %s15, 0
      %p203 = por %p201, %p202
      %p204 = scmp.ne.s32.totalorder %s196, %s198
      %p205 = scmp.eq.s32.totalorder %s20, 7
      %p206 = por %p204, %p205
      %p207 = scmp.ne.s32.totalorder %s198, %s199
      %p208 = scmp.eq.s32.totalorder %s20, 0
      %p209 = por %p207, %p208
      %p210 = scmp.ne.s32.totalorder %s198, %s199
      %p211 = scmp.eq.s32.totalorder %s21, 7
      %p212 = por %p210, %p211
      %p214 = scmp.ne.s32.totalorder %s199, %s213
      %p215 = scmp.eq.s32.totalorder %s21, 0
      %p216 = por %p214, %p215
      %s217 = ssub.s32 %s15, %s22
      %p218 = scmp.eq.s32.totalorder %s217, 0
      %s220 = sadd.s32 %s219, 1
      %s221 = scalar_select %p218, %s219, %s220
      %p224 = pneg %p218
      %p225 = scmp.eq.s32.totalorder %s15, 7
      %p226 = por %p224, %p225
      %p227 = scmp.ne.s32.totalorder %s219, %s222
      %p228 = scmp.eq.s32.totalorder %s15, 0
      %p229 = por %p227, %p228
      %p230 = scmp.ne.s32.totalorder %s219, %s222
      %p231 = scmp.eq.s32.totalorder %s20, 7
      %p232 = por %p230, %p231
      %p233 = scmp.ne.s32.totalorder %s222, %s223
      %p234 = scmp.eq.s32.totalorder %s20, 0
      %p235 = por %p233, %p234
      %p236 = scmp.ne.s32.totalorder %s222, %s223
      %p237 = scmp.eq.s32.totalorder %s21, 7
      %p238 = por %p236, %p237
      %p240 = scmp.ne.s32.totalorder %s223, %s239
      %p241 = scmp.eq.s32.totalorder %s21, 0
      %p242 = por %p240, %p241
      %p243 = scmp.le.s32.totalorder 1, %s15
      %p244 = scmp.lt.s32.totalorder %s15, 9
      %p245 = pnand %p243, %p244
      %p246 = pneg %p245
      // Predicated region
      $region9: #{tpu_custom_call.1} parent=5 // pred_check
        _
      $region10: #{tpu_custom_call.1} parent=5 // pred_check_branch
        %248 = sbr.rel (%p245) target = $region12
      $region11: #{tpu_custom_call.1} parent=5 // pred_region
        %s249 = ssub.s32 %s15, 1
        // Predicated region
        $region13: #{tpu_custom_call.1} parent=11 // pred_check
          %p250 = pneg %p62
        $region14: #{tpu_custom_call.1} parent=11 // pred_check_branch
          %252 = sbr.rel (%p250) target = $region16
        $region15: #{tpu_custom_call.1} parent=11 // pred_region
          _
        $region16: #{tpu_custom_call.1} parent=11 // pred_fallthru
          _
        // Predicated region
        $region17: #{tpu_custom_call.1} parent=11 // pred_check
          %p253 = pneg %p83
        $region18: #{tpu_custom_call.1} parent=11 // pred_check_branch
          %255 = sbr.rel (%p253) target = $region20
        $region19: #{tpu_custom_call.1} parent=11 // pred_region
          _
        $region20: #{tpu_custom_call.1} parent=11 // pred_fallthru
          _
        // Predicated region
        $region21: #{tpu_custom_call.1} parent=11 // pred_check
          %p256 = pneg %p104
        $region22: #{tpu_custom_call.1} parent=11 // pred_check_branch
          %258 = sbr.rel (%p256) target = $region24
        $region23: #{tpu_custom_call.1} parent=11 // pred_region
          _
        $region24: #{tpu_custom_call.1} parent=11 // pred_fallthru
          _
        // Predicated region
        $region25: #{tpu_custom_call.1} parent=11 // pred_check
          %p259 = pneg %p125
        $region26: #{tpu_custom_call.1} parent=11 // pred_check_branch
          %261 = sbr.rel (%p259) target = $region28
        $region27: #{tpu_custom_call.1} parent=11 // pred_region
          _
        $region28: #{tpu_custom_call.1} parent=11 // pred_fallthru
          _
        // Predicated region
        $region29: #{tpu_custom_call.1} parent=11 // pred_check
          %p262 = pneg %p146
        $region30: #{tpu_custom_call.1} parent=11 // pred_check_branch
          %264 = sbr.rel (%p262) target = $region32
        $region31: #{tpu_custom_call.1} parent=11 // pred_region
          _
        $region32: #{tpu_custom_call.1} parent=11 // pred_fallthru
          _
        // Predicated region
        $region33: #{tpu_custom_call.1} parent=11 // pred_check
          %p265 = pneg %p167
        $region34: #{tpu_custom_call.1} parent=11 // pred_check_branch
          %267 = sbr.rel (%p265) target = $region36
        $region35: #{tpu_custom_call.1} parent=11 // pred_region
          _
        $region36: #{tpu_custom_call.1} parent=11 // pred_fallthru
          _
        // Predicated region
        $region37: #{tpu_custom_call.1} parent=11 // pred_check
          %p268 = pneg %p188
        $region38: #{tpu_custom_call.1} parent=11 // pred_check_branch
          %270 = sbr.rel (%p268) target = $region40
        $region39: #{tpu_custom_call.1} parent=11 // pred_region
          _
        $region40: #{tpu_custom_call.1} parent=11 // pred_fallthru
          _
        // Predicated region
        $region41: #{tpu_custom_call.1} parent=11 // pred_check
          %p271 = pneg %p209
        $region42: #{tpu_custom_call.1} parent=11 // pred_check_branch
          %273 = sbr.rel (%p271) target = $region44
        $region43: #{tpu_custom_call.1} parent=11 // pred_region
          _
        $region44: #{tpu_custom_call.1} parent=11 // pred_fallthru
          _
      $region12: #{tpu_custom_call.1} parent=5 // pred_fallthru
        _
      %p274 = scmp.lt.s32.totalorder %s15, 8
      // Predicated region
      $region45: #{tpu_custom_call.1} parent=5 // pred_check
        %p275 = pneg %p274
      $region46: #{tpu_custom_call.1} parent=5 // pred_check_branch
        %277 = sbr.rel (%p275) target = $region48
      $region47: #{tpu_custom_call.1} parent=5 // pred_region
        // Predicated region
        $region49: #{tpu_custom_call.1} parent=47 // pred_check
          %p278 = pneg %p35
        $region50: #{tpu_custom_call.1} parent=47 // pred_check_branch
          %280 = sbr.rel (%p278) target = $region52
        $region51: #{tpu_custom_call.1} parent=47 // pred_region
          %s281 = sand.u32 %s25, 1
          %s282 = sand.u32 %s25, 1
          %s283 = smul.addr %s282, 224
          %s284 = scalar_lea.vmem [#allocation2], %s283
          %s285 = smul.addr %s15, 8
          %s286 = scalar_lea.vmem %s0, %s285
          // Predicated region
          $region53: #{tpu_custom_call.1} parent=51 // pred_check
            _
          $region54: #{tpu_custom_call.1} parent=51 // pred_check_branch
            %288 = sbr.rel (0) target = $region56
          $region55: #{tpu_custom_call.1} parent=51 // pred_region
            // Predicated region
            $region57: #{tpu_custom_call.1} parent=55 // pred_check
              _
            $region58: #{tpu_custom_call.1} parent=55 // pred_check_branch
              %290 = sbr.rel (0) target = $region60
            $region59: #{tpu_custom_call.1} parent=55 // pred_region
              // Predicated region
              $region72: #{tpu_custom_call.1} parent=59 // pred_check
                _
              $region73: #{tpu_custom_call.1} parent=59 // pred_check_branch
                %360 = sbr.rel (0) target = $region75
              $region74: #{tpu_custom_call.1} parent=59 // pred_region
                loop: start=0, step=1, limit=1
                $region76: #{tpu_custom_call.1} parent=74 // loop_pre_header
                  _
                $region77: #{tpu_custom_call.1} parent=74 // loop_header
                  %s362 = sphi 0, %s366
                  %p363 = scmp.ge.s32.totalorder %s362, 1
                  %s367 = sphi %s286, %s286
                  %s368 = sphi %s284, %s284
                $region78: #{tpu_custom_call.1} parent=74 // loop_header_branch
                  %365 = sbr.rel (%p363) target = $region82
                $region79: #{tpu_custom_call.1} parent=74 // loop_body
                  %v369 = vld [vmem:[%s367] sm:$0xff]
                  %370 = vst [vmem:[%s368] sm:$0xff] %v369
                  %v371 = vld [vmem:[%s367 + $0x40] sm:$0xff]
                  %372 = vst [vmem:[%s368 + $0x8] sm:$0xff] %v371
                  %v373 = vld [vmem:[%s367 + $0x80] sm:$0xff]
                  %374 = vst [vmem:[%s368 + $0x10] sm:$0xff] %v373
                  %v375 = vld [vmem:[%s367 + $0xc0] sm:$0xff]
                  %376 = vst [vmem:[%s368 + $0x18] sm:$0xff] %v375
                  %v377 = vld [vmem:[%s367 + $0x100] sm:$0xff]
                  %378 = vst [vmem:[%s368 + $0x20] sm:$0xff] %v377
                  %v379 = vld [vmem:[%s367 + $0x140] sm:$0xff]
                  %380 = vst [vmem:[%s368 + $0x28] sm:$0xff] %v379
                  %v381 = vld [vmem:[%s367 + $0x180] sm:$0xff]
                  %382 = vst [vmem:[%s368 + $0x30] sm:$0xff] %v381
                  %v383 = vld [vmem:[%s367 + $0x1c0] sm:$0xff]
                  %384 = vst [vmem:[%s368 + $0x38] sm:$0xff] %v383
                  %v385 = vld [vmem:[%s367 + $0x200] sm:$0xff]
                  %386 = vst [vmem:[%s368 + $0x40] sm:$0xff] %v385
                  %v387 = vld [vmem:[%s367 + $0x240] sm:$0xff]
                  %388 = vst [vmem:[%s368 + $0x48] sm:$0xff] %v387
                  %v389 = vld [vmem:[%s367 + $0x280] sm:$0xff]
                  %390 = vst [vmem:[%s368 + $0x50] sm:$0xff] %v389
                  %v391 = vld [vmem:[%s367 + $0x2c0] sm:$0xff]
                  %392 = vst [vmem:[%s368 + $0x58] sm:$0xff] %v391
                  %v393 = vld [vmem:[%s367 + $0x300] sm:$0xff]
                  %394 = vst [vmem:[%s368 + $0x60] sm:$0xff] %v393
                  %v395 = vld [vmem:[%s367 + $0x340] sm:$0xff]
                  %396 = vst [vmem:[%s368 + $0x68] sm:$0xff] %v395
                  %v397 = vld [vmem:[%s367 + $0x380] sm:$0xff]
                  %398 = vst [vmem:[%s368 + $0x70] sm:$0xff] %v397
                  %v399 = vld [vmem:[%s367 + $0x3c0] sm:$0xff]
                  %400 = vst [vmem:[%s368 + $0x78] sm:$0xff] %v399
                  %v401 = vld [vmem:[%s367 + $0x400] sm:$0xff]
                  %402 = vst [vmem:[%s368 + $0x80] sm:$0xff] %v401
                  %v403 = vld [vmem:[%s367 + $0x440] sm:$0xff]
                  %404 = vst [vmem:[%s368 + $0x88] sm:$0xff] %v403
                  %v405 = vld [vmem:[%s367 + $0x480] sm:$0xff]
                  %406 = vst [vmem:[%s368 + $0x90] sm:$0xff] %v405
                  %v407 = vld [vmem:[%s367 + $0x4c0] sm:$0xff]
                  %408 = vst [vmem:[%s368 + $0x98] sm:$0xff] %v407
                  %v409 = vld [vmem:[%s367 + $0x500] sm:$0xff]
                  %410 = vst [vmem:[%s368 + $0xa0] sm:$0xff] %v409
                  %v411 = vld [vmem:[%s367 + $0x540] sm:$0xff]
                  %412 = vst [vmem:[%s368 + $0xa8] sm:$0xff] %v411
                  %v413 = vld [vmem:[%s367 + $0x580] sm:$0xff]
                  %414 = vst [vmem:[%s368 + $0xb0] sm:$0xff] %v413
                  %v415 = vld [vmem:[%s367 + $0x5c0] sm:$0xff]
                  %416 = vst [vmem:[%s368 + $0xb8] sm:$0xff] %v415
                  %v417 = vld [vmem:[%s367 + $0x600] sm:$0xff]
                  %418 = vst [vmem:[%s368 + $0xc0] sm:$0xff] %v417
                  %v419 = vld [vmem:[%s367 + $0x640] sm:$0xff]
                  %420 = vst [vmem:[%s368 + $0xc8] sm:$0xff] %v419
                  %v421 = vld [vmem:[%s367 + $0x680] sm:$0xff]
                  %422 = vst [vmem:[%s368 + $0xd0] sm:$0xff] %v421
                  %v423 = vld [vmem:[%s367 + $0x6c0] sm:$0xff]
                  %424 = vst [vmem:[%s368 + $0xd8] sm:$0xff] %v423
                $region80: #{tpu_custom_call.1} parent=74 // loop_footer
                  %s366 = sadd.s32 1, %s362
                $region81: #{tpu_custom_call.1} parent=74 // loop_footer_branch
                  %361 = sbr.rel target = $region77
                $region82: #{tpu_custom_call.1} parent=74 // loop_exit
                  _
              $region75: #{tpu_custom_call.1} parent=59 // pred_fallthru
                _
              // Predicated region
              $region83: #{tpu_custom_call.1} parent=59 // pred_check
                _
              $region84: #{tpu_custom_call.1} parent=59 // pred_check_branch
                %426 = sbr.rel target = $region86
              $region85: #{tpu_custom_call.1} parent=59 // pred_region
                _
              $region86: #{tpu_custom_call.1} parent=59 // pred_fallthru
                _
            $region60: #{tpu_custom_call.1} parent=55 // pred_fallthru
              _
            // Predicated region
            $region61: #{tpu_custom_call.1} parent=55 // pred_check
              _
            $region62: #{tpu_custom_call.1} parent=55 // pred_check_branch
              %292 = sbr.rel target = $region64
            $region63: #{tpu_custom_call.1} parent=55 // pred_region
              %s294 = ssub.s32 256, 1
              loop: start=0, step=1, limit=1
              $region65: #{tpu_custom_call.1} parent=63 // loop_pre_header
                _
              $region66: #{tpu_custom_call.1} parent=63 // loop_header
                %s296 = sphi 0, %s300
                %p297 = scmp.ge.s32.totalorder %s296, 1
                %s301 = sphi %s286, %s286
                %s302 = sphi %s284, %s284
              $region67: #{tpu_custom_call.1} parent=63 // loop_header_branch
                %299 = sbr.rel (%p297) target = $region71
              $region68: #{tpu_custom_call.1} parent=63 // loop_body
                %v303 = vld [vmem:[%s301] sm:%s294]
                %304 = vst [vmem:[%s302] sm:%s294] %v303
                %v305 = vld [vmem:[%s301 + $0x40] sm:%s294]
                %306 = vst [vmem:[%s302 + $0x8] sm:%s294] %v305
                %v307 = vld [vmem:[%s301 + $0x80] sm:%s294]
                %308 = vst [vmem:[%s302 + $0x10] sm:%s294] %v307
                %v309 = vld [vmem:[%s301 + $0xc0] sm:%s294]
                %310 = vst [vmem:[%s302 + $0x18] sm:%s294] %v309
                %v311 = vld [vmem:[%s301 + $0x100] sm:%s294]
                %312 = vst [vmem:[%s302 + $0x20] sm:%s294] %v311
                %v313 = vld [vmem:[%s301 + $0x140] sm:%s294]
                %314 = vst [vmem:[%s302 + $0x28] sm:%s294] %v313
                %v315 = vld [vmem:[%s301 + $0x180] sm:%s294]
                %316 = vst [vmem:[%s302 + $0x30] sm:%s294] %v315
                %v317 = vld [vmem:[%s301 + $0x1c0] sm:%s294]
                %318 = vst [vmem:[%s302 + $0x38] sm:%s294] %v317
                %v319 = vld [vmem:[%s301 + $0x200] sm:%s294]
                %320 = vst [vmem:[%s302 + $0x40] sm:%s294] %v319
                %v321 = vld [vmem:[%s301 + $0x240] sm:%s294]
                %322 = vst [vmem:[%s302 + $0x48] sm:%s294] %v321
                %v323 = vld [vmem:[%s301 + $0x280] sm:%s294]
                %324 = vst [vmem:[%s302 + $0x50] sm:%s294] %v323
                %v325 = vld [vmem:[%s301 + $0x2c0] sm:%s294]
                %326 = vst [vmem:[%s302 + $0x58] sm:%s294] %v325
                %v327 = vld [vmem:[%s301 + $0x300] sm:%s294]
                %328 = vst [vmem:[%s302 + $0x60] sm:%s294] %v327
                %v329 = vld [vmem:[%s301 + $0x340] sm:%s294]
                %330 = vst [vmem:[%s302 + $0x68] sm:%s294] %v329
                %v331 = vld [vmem:[%s301 + $0x380] sm:%s294]
                %332 = vst [vmem:[%s302 + $0x70] sm:%s294] %v331
                %v333 = vld [vmem:[%s301 + $0x3c0] sm:%s294]
                %334 = vst [vmem:[%s302 + $0x78] sm:%s294] %v333
                %v335 = vld [vmem:[%s301 + $0x400] sm:%s294]
                %336 = vst [vmem:[%s302 + $0x80] sm:%s294] %v335
                %v337 = vld [vmem:[%s301 + $0x440] sm:%s294]
                %338 = vst [vmem:[%s302 + $0x88] sm:%s294] %v337
                %v339 = vld [vmem:[%s301 + $0x480] sm:%s294]
                %340 = vst [vmem:[%s302 + $0x90] sm:%s294] %v339
                %v341 = vld [vmem:[%s301 + $0x4c0] sm:%s294]
                %342 = vst [vmem:[%s302 + $0x98] sm:%s294] %v341
                %v343 = vld [vmem:[%s301 + $0x500] sm:%s294]
                %344 = vst [vmem:[%s302 + $0xa0] sm:%s294] %v343
                %v345 = vld [vmem:[%s301 + $0x540] sm:%s294]
                %346 = vst [vmem:[%s302 + $0xa8] sm:%s294] %v345
                %v347 = vld [vmem:[%s301 + $0x580] sm:%s294]
                %348 = vst [vmem:[%s302 + $0xb0] sm:%s294] %v347
                %v349 = vld [vmem:[%s301 + $0x5c0] sm:%s294]
                %350 = vst [vmem:[%s302 + $0xb8] sm:%s294] %v349
                %v351 = vld [vmem:[%s301 + $0x600] sm:%s294]
                %352 = vst [vmem:[%s302 + $0xc0] sm:%s294] %v351
                %v353 = vld [vmem:[%s301 + $0x640] sm:%s294]
                %354 = vst [vmem:[%s302 + $0xc8] sm:%s294] %v353
                %v355 = vld [vmem:[%s301 + $0x680] sm:%s294]
                %356 = vst [vmem:[%s302 + $0xd0] sm:%s294] %v355
                %v357 = vld [vmem:[%s301 + $0x6c0] sm:%s294]
                %358 = vst [vmem:[%s302 + $0xd8] sm:%s294] %v357
              $region69: #{tpu_custom_call.1} parent=63 // loop_footer
                %s300 = sadd.s32 1, %s296
              $region70: #{tpu_custom_call.1} parent=63 // loop_footer_branch
                %295 = sbr.rel target = $region66
              $region71: #{tpu_custom_call.1} parent=63 // loop_exit
                _
            $region64: #{tpu_custom_call.1} parent=55 // pred_fallthru
              _
          $region56: #{tpu_custom_call.1} parent=51 // pred_fallthru
            _
          %427 = vnop
        $region52: #{tpu_custom_call.1} parent=47 // pred_fallthru
          _
      $region48: #{tpu_custom_call.1} parent=5 // pred_fallthru
        _
      %p428 = scmp.le.s32.totalorder 1, %s15
      %p429 = scmp.lt.s32.totalorder %s15, 9
      %p430 = pnand %p428, %p429
      %p431 = pneg %p430
      // Predicated region
      $region87: #{tpu_custom_call.1} parent=5 // pred_check
        _
      $region88: #{tpu_custom_call.1} parent=5 // pred_check_branch
        %433 = sbr.rel (%p430) target = $region90
      $region89: #{tpu_custom_call.1} parent=5 // pred_region
        %s434 = ssub.s32 %s15, 1
        %s435 = sand.u32 %s28, 1
        %s436 = sand.u32 %s28, 1
        %s437 = smul.addr %s436, 224
        %s438 = scalar_lea.vmem [#allocation2], %s437
        // Predicated region
        $region91: #{tpu_custom_call.1} parent=89 // pred_check
          %p439 = pneg %p41
        $region92: #{tpu_custom_call.1} parent=89 // pred_check_branch
          %441 = sbr.rel (%p439) target = $region94
        $region93: #{tpu_custom_call.1} parent=89 // pred_region
          _
        $region94: #{tpu_custom_call.1} parent=89 // pred_fallthru
          _
        %s442 = sand.u32 %s28, 1
        %s443 = sand.u32 %s28, 1
        %s444 = smul.addr %s443, 224
        %s445 = scalar_lea.vmem [#allocation2], %s444
        %p446 = pneg %p41
        %p447 = pneg %p38
        %p448 = pneg %p62
        %p449 = pneg %p59
        %p450 = pneg %p83
        %p451 = pneg %p80
        %p452 = pneg %p104
        %p453 = pneg %p101
        %p454 = pneg %p125
        %p455 = pneg %p122
        %p456 = pneg %p146
        %p457 = pneg %p143
        %p458 = pneg %p167
        %p459 = pneg %p164
        %p460 = pneg %p188
        %p461 = pneg %p185
        %p462 = pneg %p209
        %p463 = pneg %p206
        %p464 = pneg %p235
        %p465 = pneg %p232
        %p466 = scmp.lt.s32.totalorder %s20, 7
        %s467 = scalar_select %p466, %s20, 7
        %s468 = smul.addr %s467, 8
        %s469 = scalar_lea.vmem %s9, %s468
        %p470 = scmp.lt.s32.totalorder %s20, 7
        %s471 = scalar_select %p470, %s20, 7
        %s472 = smul.addr %s471, 8
        %s473 = scalar_lea.vmem %s9, %s472
        %v474 = vld [vmem:[%s438] sm:$0xff]
        %v475 = vld [vmem:[%s438 + $0x8] sm:$0xff]
        %v476 = vld [vmem:[%s438 + $0x10] sm:$0xff]
        %v477 = vld [vmem:[%s438 + $0x18] sm:$0xff]
        %v478 = vld [vmem:[%s438 + $0x20] sm:$0xff]
        %v479 = vld [vmem:[%s438 + $0x28] sm:$0xff]
        %v480 = vld [vmem:[%s438 + $0x30] sm:$0xff]
        %v481 = vld [vmem:[%s438 + $0x38] sm:$0xff]
        %v482 = vld [vmem:[%s438 + $0x40] sm:$0xff]
        %v483 = vld [vmem:[%s438 + $0x48] sm:$0xff]
        %v484 = vld [vmem:[%s438 + $0x50] sm:$0xff]
        %v485 = vld [vmem:[%s438 + $0x58] sm:$0xff]
        %v486 = vld [vmem:[%s438 + $0x60] sm:$0xff]
        %v487 = vld [vmem:[%s438 + $0x68] sm:$0xff]
        %v488 = vld [vmem:[%s438 + $0x70] sm:$0xff]
        %v489 = vld [vmem:[%s438 + $0x78] sm:$0xff]
        %v490 = vld [vmem:[%s438 + $0x80] sm:$0xff]
        %v491 = vld [vmem:[%s438 + $0x88] sm:$0xff]
        %v492 = vld [vmem:[%s438 + $0x90] sm:$0xff]
        %v493 = vld [vmem:[%s438 + $0x98] sm:$0xff]
        %v494 = vld [vmem:[%s438 + $0xa0] sm:$0xff]
        %v495 = vld [vmem:[%s438 + $0xa8] sm:$0xff]
        %v496 = vld [vmem:[%s438 + $0xb0] sm:$0xff]
        %v497 = vld [vmem:[%s438 + $0xb8] sm:$0xff]
        %v498 = vld [vmem:[%s438 + $0xc0] sm:$0xff]
        %v499 = vld [vmem:[%s438 + $0xc8] sm:$0xff]
        %v500 = vld [vmem:[%s438 + $0xd0] sm:$0xff]
        %v501 = vld [vmem:[%s438 + $0xd8] sm:$0xff]
        %v502 = vld [vmem:[%s1] sm:$0xff]
        %v503 = vld [vmem:[%s1 + $0x8] sm:$0xff]
        %v504 = vld [vmem:[%s1 + $0x10] sm:$0xff]
        %v505 = vld [vmem:[%s1 + $0x18] sm:$0xf]
        %v506 = vld [vmem:[%s2] sm:$0xff]
        %v507 = vld [vmem:[%s2 + $0x8] sm:$0xff]
        %v508 = vld [vmem:[%s2 + $0x10] sm:$0xff]
        %v509 = vld [vmem:[%s2 + $0x18] sm:$0xf]
        %s510 = scalar_lea.vmem %s1, 32
        %v511 = vld [vmem:[%s510] sm:$0xff]
        %v512 = vld [vmem:[%s510 + $0x8] sm:$0xff]
        %v513 = vld [vmem:[%s510 + $0x10] sm:$0xff]
        %v514 = vld [vmem:[%s510 + $0x18] sm:$0xf]
        %vm515 = vcmask 228352
        %v517 = vsel %vm515, %v475, 0
        %v520 = vsel %vm515, %v476, 0
        %v523 = vsel %vm515, %v477, 0
        %v526 = vsel %vm515, %v478, 0
        %v529 = vsel %vm515, %v479, 0
        %v532 = vsel %vm515, %v480, 0
        %v535 = vsel %vm515, %v481, 0
        %v538 = vsel %vm515, %v482, 0
        %v541 = vsel %vm515, %v483, 0
        %v544 = vsel %vm515, %v484, 0
        %v547 = vsel %vm515, %v485, 0
        %v550 = vsel %vm515, %v486, 0
        %v553 = vsel %vm515, %v487, 0
        %v556 = vsel %vm515, %v488, 0
        %v559 = vsel %vm515, %v489, 0
        %v562 = vsel %vm515, %v490, 0
        %v565 = vsel %vm515, %v491, 0
        %v568 = vsel %vm515, %v492, 0
        %v571 = vsel %vm515, %v493, 0
        %v574 = vsel %vm515, %v494, 0
        %v577 = vsel %vm515, %v495, 0
        %v580 = vsel %vm515, %v496, 0
        %v583 = vsel %vm515, %v497, 0
        %v586 = vsel %vm515, %v498, 0
        %vm588 = vcmask 1043456
        %v590 = vsel %vm588, %v514, 0
        %592 = vmatprep.subr.mxu0 0.0
        %593 = vmatpush1.msra.mxu0 0.0
        %594 = vmatprep.subr.mxu0 0.0
        %595 = vmatpush1.msra.mxu0 0.0
        %596 = vmatprep.subr.mxu0 0.0
        %597 = vmatpush1.msra.mxu0 0.0
        %598 = vmatprep.subr.mxu0 0.0
        %599 = vmatpush1.msra.mxu0 0.0
        %600 = vmatprep.subr.mxu0 0.0
        %601 = vmatpush1.msra.mxu0 0.0
        %602 = vmatprep.subr.mxu0 0.0
        %603 = vmatpush1.msra.mxu0 0.0
        %604 = vmatprep.subr.mxu0 0.0
        %605 = vmatpush1.msra.mxu0 0.0
        %606 = vmatprep.subr.mxu0 0.0
        %607 = vmatpush1.msra.mxu0 0.0
        %608 = vmatprep.subr.mxu0 0.0
        %609 = vmatpush1.msra.mxu0 0.0
        %610 = vmatprep.subr.mxu0 0.0
        %611 = vmatpush1.msra.mxu0 0.0
        %612 = vmatprep.subr.mxu0 0.0
        %613 = vmatpush1.msra.mxu0 0.0
        %614 = vmatprep.subr.mxu0 0.0
        %615 = vmatpush1.msra.mxu0 0.0
        %616 = vmatprep.subr.mxu0 0.0
        %617 = vmatpush1.msra.mxu0 %v590
        %618 = vmatprep.subr.mxu0 0.0
        %619 = vmatpush1.msra.mxu0 %v513
        %620 = vmatprep.subr.mxu0 0.0
        %621 = vmatpush1.msra.mxu0 %v512
        %622 = vmatprep.subr.mxu0 0.0
        %623 = vmatpush1.msra.mxu0 %v511
        %624 = vmatprep.subr.mxu0 0.0
        %625 = vmatpush2.msra.mxu0 0.0
        %626 = vmatprep.subr.mxu0 0.0
        %627 = vmatpush2.msra.mxu0 0.0
        %628 = vmatprep.subr.mxu0 0.0
        %629 = vmatpush2.msra.mxu0 0.0
        %630 = vmatprep.subr.mxu0 0.0
        %631 = vmatpush2.msra.mxu0 0.0
        %632 = vmatprep.subr.mxu0 0.0
        %633 = vmatpush2.msra.mxu0 0.0
        %634 = vmatprep.subr.mxu0 0.0
        %635 = vmatpush2.msra.mxu0 0.0
        %636 = vmatprep.subr.mxu0 0.0
        %637 = vmatpush2.msra.mxu0 0.0
        %638 = vmatprep.subr.mxu0 0.0
        %639 = vmatpush2.msra.mxu0 0.0
        %640 = vmatprep.subr.mxu0 0.0
        %641 = vmatpush2.msra.mxu0 0.0
        %642 = vmatprep.subr.mxu0 0.0
        %643 = vmatpush2.msra.mxu0 0.0
        %644 = vmatprep.subr.mxu0 0.0
        %645 = vmatpush2.msra.mxu0 0.0
        %646 = vmatprep.subr.mxu0 0.0
        %647 = vmatpush2.msra.mxu0 0.0
        %648 = vmatprep.subr.mxu0 0.0
        %649 = vmatpush2.msra.mxu0 0.0
        %650 = vmatprep.subr.mxu0 0.0
        %651 = vmatpush2.msra.mxu0 0.0
        %652 = vmatprep.subr.mxu0 0.0
        %653 = vmatpush2.msra.mxu0 0.0
        %654 = vmatprep.subr.mxu0 0.0
        %655 = vmatpush2.msra.mxu0 0.0
        %656 = vmatprep.mubr.f32.mxu0 0.0
        %657 = vmatmul.mubr.f32.gmra.mxu0 %v517
        %v658 = vpop.f32.mrf.mxu0
        %v659 = vadd.f32 0.0, %v658
        %v660 = vpop.f32.mrf.mxu0
        %661 = vmatprep.mubr.f32.mxu0 0.0
        %662 = vmatmul.mubr.f32.gmra.mxu0 %v520
        %v663 = vpop.f32.mrf.mxu0
        %v664 = vadd.f32 0.0, %v663
        %v665 = vpop.f32.mrf.mxu0
        %666 = vmatprep.mubr.f32.mxu0 0.0
        %667 = vmatmul.mubr.f32.gmra.mxu0 %v523
        %v668 = vpop.f32.mrf.mxu0
        %v669 = vadd.f32 0.0, %v668
        %v670 = vpop.f32.mrf.mxu0
        %671 = vmatprep.mubr.f32.mxu0 0.0
        %672 = vmatmul.mubr.f32.gmra.mxu0 %v526
        %v673 = vpop.f32.mrf.mxu0
        %v674 = vadd.f32 0.0, %v673
        %v675 = vpop.f32.mrf.mxu0
        %676 = vmatprep.mubr.f32.mxu0 0.0
        %677 = vmatmul.mubr.f32.gmra.mxu0 %v529
        %v678 = vpop.f32.mrf.mxu0
        %v679 = vadd.f32 0.0, %v678
        %v680 = vpop.f32.mrf.mxu0
        %681 = vmatprep.mubr.f32.mxu0 0.0
        %682 = vmatmul.mubr.f32.gmra.mxu0 %v532
        %v683 = vpop.f32.mrf.mxu0
        %v684 = vadd.f32 0.0, %v683
        %v685 = vpop.f32.mrf.mxu0
        %686 = vmatprep.mubr.f32.mxu0 0.0
        %687 = vmatmul.mubr.f32.gmra.mxu0 %v535
        %v688 = vpop.f32.mrf.mxu0
        %v689 = vadd.f32 0.0, %v688
        %v690 = vpop.f32.mrf.mxu0
        %691 = vmatprep.mubr.f32.mxu0 0.0
        %692 = vmatmul.mubr.f32.gmra.mxu0 %v538
        %v693 = vpop.f32.mrf.mxu0
        %v694 = vadd.f32 0.0, %v693
        %v695 = vpop.f32.mrf.mxu0
        %696 = vmatprep.mubr.f32.mxu0 0.0
        %697 = vmatmul.mubr.f32.gmra.mxu0 %v541
        %v698 = vpop.f32.mrf.mxu0
        %v699 = vadd.f32 0.0, %v698
        %v700 = vpop.f32.mrf.mxu0
        %701 = vmatprep.mubr.f32.mxu0 0.0
        %702 = vmatmul.mubr.f32.gmra.mxu0 %v544
        %v703 = vpop.f32.mrf.mxu0
        %v704 = vadd.f32 0.0, %v703
        %v705 = vpop.f32.mrf.mxu0
        %706 = vmatprep.mubr.f32.mxu0 0.0
        %707 = vmatmul.mubr.f32.gmra.mxu0 %v547
        %v708 = vpop.f32.mrf.mxu0
        %v709 = vadd.f32 0.0, %v708
        %v710 = vpop.f32.mrf.mxu0
        %711 = vmatprep.mubr.f32.mxu0 0.0
        %712 = vmatmul.mubr.f32.gmra.mxu0 %v550
        %v713 = vpop.f32.mrf.mxu0
        %v714 = vadd.f32 0.0, %v713
        %v715 = vpop.f32.mrf.mxu0
        %716 = vmatprep.mubr.f32.mxu0 0.0
        %717 = vmatmul.mubr.f32.gmra.mxu0 %v553
        %v718 = vpop.f32.mrf.mxu0
        %v719 = vadd.f32 0.0, %v718
        %v720 = vpop.f32.mrf.mxu0
        %721 = vmatprep.mubr.f32.mxu0 0.0
        %722 = vmatmul.mubr.f32.gmra.mxu0 %v556
        %v723 = vpop.f32.mrf.mxu0
        %v724 = vadd.f32 0.0, %v723
        %v725 = vpop.f32.mrf.mxu0
        %726 = vmatprep.mubr.f32.mxu0 0.0
        %727 = vmatmul.mubr.f32.gmra.mxu0 %v559
        %v728 = vpop.f32.mrf.mxu0
        %v729 = vadd.f32 0.0, %v728
        %v730 = vpop.f32.mrf.mxu0
        %731 = vmatprep.mubr.f32.mxu0 0.0
        %732 = vmatmul.mubr.f32.gmra.mxu0 %v562
        %v733 = vpop.f32.mrf.mxu0
        %v734 = vadd.f32 0.0, %v733
        %v735 = vpop.f32.mrf.mxu0
        %736 = vmatprep.mubr.f32.mxu0 0.0
        %737 = vmatmul.mubr.f32.gmra.mxu0 %v565
        %v738 = vpop.f32.mrf.mxu0
        %v739 = vadd.f32 0.0, %v738
        %v740 = vpop.f32.mrf.mxu0
        %741 = vmatprep.mubr.f32.mxu0 0.0
        %742 = vmatmul.mubr.f32.gmra.mxu0 %v568
        %v743 = vpop.f32.mrf.mxu0
        %v744 = vadd.f32 0.0, %v743
        %v745 = vpop.f32.mrf.mxu0
        %746 = vmatprep.mubr.f32.mxu0 0.0
        %747 = vmatmul.mubr.f32.gmra.mxu0 %v571
        %v748 = vpop.f32.mrf.mxu0
        %v749 = vadd.f32 0.0, %v748
        %v750 = vpop.f32.mrf.mxu0
        %751 = vmatprep.mubr.f32.mxu0 0.0
        %752 = vmatmul.mubr.f32.gmra.mxu0 %v574
        %v753 = vpop.f32.mrf.mxu0
        %v754 = vadd.f32 0.0, %v753
        %v755 = vpop.f32.mrf.mxu0
        %756 = vmatprep.mubr.f32.mxu0 0.0
        %757 = vmatmul.mubr.f32.gmra.mxu0 %v577
        %v758 = vpop.f32.mrf.mxu0
        %v759 = vadd.f32 0.0, %v758
        %v760 = vpop.f32.mrf.mxu0
        %761 = vmatprep.mubr.f32.mxu0 0.0
        %762 = vmatmul.mubr.f32.gmra.mxu0 %v580
        %v763 = vpop.f32.mrf.mxu0
        %v764 = vadd.f32 0.0, %v763
        %v765 = vpop.f32.mrf.mxu0
        %766 = vmatprep.mubr.f32.mxu0 0.0
        %767 = vmatmul.mubr.f32.gmra.mxu0 %v583
        %v768 = vpop.f32.mrf.mxu0
        %v769 = vadd.f32 0.0, %v768
        %v770 = vpop.f32.mrf.mxu0
        %771 = vmatprep.mubr.f32.mxu0 0.0
        %772 = vmatmul.mubr.f32.gmra.mxu0 %v586
        %v773 = vpop.f32.mrf.mxu0
        %v774 = vadd.f32 0.0, %v773
        %v775 = vpop.f32.mrf.mxu0
        %776 = vdwg.mxu0
        %v778 = vsel %vm515, %v474, 0
        %v781 = vsel %vm588, %v505, 0
        %783 = vmatprep.subr.mxu0 0.0
        %784 = vmatpush1.msra.mxu0 0.0
        %785 = vmatprep.subr.mxu0 0.0
        %786 = vmatpush1.msra.mxu0 0.0
        %787 = vmatprep.subr.mxu0 0.0
        %788 = vmatpush1.msra.mxu0 0.0
        %789 = vmatprep.subr.mxu0 0.0
        %790 = vmatpush1.msra.mxu0 0.0
        %791 = vmatprep.subr.mxu0 0.0
        %792 = vmatpush1.msra.mxu0 0.0
        %793 = vmatprep.subr.mxu0 0.0
        %794 = vmatpush1.msra.mxu0 0.0
        %795 = vmatprep.subr.mxu0 0.0
        %796 = vmatpush1.msra.mxu0 0.0
        %797 = vmatprep.subr.mxu0 0.0
        %798 = vmatpush1.msra.mxu0 0.0
        %799 = vmatprep.subr.mxu0 0.0
        %800 = vmatpush1.msra.mxu0 0.0
        %801 = vmatprep.subr.mxu0 0.0
        %802 = vmatpush1.msra.mxu0 0.0
        %803 = vmatprep.subr.mxu0 0.0
        %804 = vmatpush1.msra.mxu0 0.0
        %805 = vmatprep.subr.mxu0 0.0
        %806 = vmatpush1.msra.mxu0 0.0
        %807 = vmatprep.subr.mxu0 0.0
        %808 = vmatpush1.msra.mxu0 %v781
        %809 = vmatprep.subr.mxu0 0.0
        %810 = vmatpush1.msra.mxu0 %v504
        %811 = vmatprep.subr.mxu0 0.0
        %812 = vmatpush1.msra.mxu0 %v503
        %813 = vmatprep.subr.mxu0 0.0
        %814 = vmatpush1.msra.mxu0 %v502
        %815 = vmatprep.subr.mxu0 0.0
        %816 = vmatpush2.msra.mxu0 0.0
        %817 = vmatprep.subr.mxu0 0.0
        %818 = vmatpush2.msra.mxu0 0.0
        %819 = vmatprep.subr.mxu0 0.0
        %820 = vmatpush2.msra.mxu0 0.0
        %821 = vmatprep.subr.mxu0 0.0
        %822 = vmatpush2.msra.mxu0 0.0
        %823 = vmatprep.subr.mxu0 0.0
        %824 = vmatpush2.msra.mxu0 0.0
        %825 = vmatprep.subr.mxu0 0.0
        %826 = vmatpush2.msra.mxu0 0.0
        %827 = vmatprep.subr.mxu0 0.0
        %828 = vmatpush2.msra.mxu0 0.0
        %829 = vmatprep.subr.mxu0 0.0
        %830 = vmatpush2.msra.mxu0 0.0
        %831 = vmatprep.subr.mxu0 0.0
        %832 = vmatpush2.msra.mxu0 0.0
        %833 = vmatprep.subr.mxu0 0.0
        %834 = vmatpush2.msra.mxu0 0.0
        %835 = vmatprep.subr.mxu0 0.0
        %836 = vmatpush2.msra.mxu0 0.0
        %837 = vmatprep.subr.mxu0 0.0
        %838 = vmatpush2.msra.mxu0 0.0
        %839 = vmatprep.subr.mxu0 0.0
        %840 = vmatpush2.msra.mxu0 0.0
        %841 = vmatprep.subr.mxu0 0.0
        %842 = vmatpush2.msra.mxu0 0.0
        %843 = vmatprep.subr.mxu0 0.0
        %844 = vmatpush2.msra.mxu0 0.0
        %845 = vmatprep.subr.mxu0 0.0
        %846 = vmatpush2.msra.mxu0 0.0
        %847 = vmatprep.mubr.f32.mxu0 0.0
        %848 = vmatmul.mubr.f32.gmra.mxu0 %v778
        %v849 = vpop.f32.mrf.mxu0
        %v850 = vadd.f32 %v659, %v849
        %v851 = vpop.f32.mrf.mxu0
        %852 = vmatprep.mubr.f32.mxu0 0.0
        %853 = vmatmul.mubr.f32.gmra.mxu0 %v517
        %v854 = vpop.f32.mrf.mxu0
        %v855 = vadd.f32 %v664, %v854
        %v856 = vpop.f32.mrf.mxu0
        %857 = vmatprep.mubr.f32.mxu0 0.0
        %858 = vmatmul.mubr.f32.gmra.mxu0 %v520
        %v859 = vpop.f32.mrf.mxu0
        %v860 = vadd.f32 %v669, %v859
        %v861 = vpop.f32.mrf.mxu0
        %862 = vmatprep.mubr.f32.mxu0 0.0
        %863 = vmatmul.mubr.f32.gmra.mxu0 %v523
        %v864 = vpop.f32.mrf.mxu0
        %v865 = vadd.f32 %v674, %v864
        %v866 = vpop.f32.mrf.mxu0
        %867 = vmatprep.mubr.f32.mxu0 0.0
        %868 = vmatmul.mubr.f32.gmra.mxu0 %v526
        %v869 = vpop.f32.mrf.mxu0
        %v870 = vadd.f32 %v679, %v869
        %v871 = vpop.f32.mrf.mxu0
        %872 = vmatprep.mubr.f32.mxu0 0.0
        %873 = vmatmul.mubr.f32.gmra.mxu0 %v529
        %v874 = vpop.f32.mrf.mxu0
        %v875 = vadd.f32 %v684, %v874
        %v876 = vpop.f32.mrf.mxu0
        %877 = vmatprep.mubr.f32.mxu0 0.0
        %878 = vmatmul.mubr.f32.gmra.mxu0 %v532
        %v879 = vpop.f32.mrf.mxu0
        %v880 = vadd.f32 %v689, %v879
        %v881 = vpop.f32.mrf.mxu0
        %882 = vmatprep.mubr.f32.mxu0 0.0
        %883 = vmatmul.mubr.f32.gmra.mxu0 %v535
        %v884 = vpop.f32.mrf.mxu0
        %v885 = vadd.f32 %v694, %v884
        %v886 = vpop.f32.mrf.mxu0
        %887 = vmatprep.mubr.f32.mxu0 0.0
        %888 = vmatmul.mubr.f32.gmra.mxu0 %v538
        %v889 = vpop.f32.mrf.mxu0
        %v890 = vadd.f32 %v699, %v889
        %v891 = vpop.f32.mrf.mxu0
        %892 = vmatprep.mubr.f32.mxu0 0.0
        %893 = vmatmul.mubr.f32.gmra.mxu0 %v541
        %v894 = vpop.f32.mrf.mxu0
        %v895 = vadd.f32 %v704, %v894
        %v896 = vpop.f32.mrf.mxu0
        %897 = vmatprep.mubr.f32.mxu0 0.0
        %898 = vmatmul.mubr.f32.gmra.mxu0 %v544
        %v899 = vpop.f32.mrf.mxu0
        %v900 = vadd.f32 %v709, %v899
        %v901 = vpop.f32.mrf.mxu0
        %902 = vmatprep.mubr.f32.mxu0 0.0
        %903 = vmatmul.mubr.f32.gmra.mxu0 %v547
        %v904 = vpop.f32.mrf.mxu0
        %v905 = vadd.f32 %v714, %v904
        %v906 = vpop.f32.mrf.mxu0
        %907 = vmatprep.mubr.f32.mxu0 0.0
        %908 = vmatmul.mubr.f32.gmra.mxu0 %v550
        %v909 = vpop.f32.mrf.mxu0
        %v910 = vadd.f32 %v719, %v909
        %v911 = vpop.f32.mrf.mxu0
        %912 = vmatprep.mubr.f32.mxu0 0.0
        %913 = vmatmul.mubr.f32.gmra.mxu0 %v553
        %v914 = vpop.f32.mrf.mxu0
        %v915 = vadd.f32 %v724, %v914
        %v916 = vpop.f32.mrf.mxu0
        %917 = vmatprep.mubr.f32.mxu0 0.0
        %918 = vmatmul.mubr.f32.gmra.mxu0 %v556
        %v919 = vpop.f32.mrf.mxu0
        %v920 = vadd.f32 %v729, %v919
        %v921 = vpop.f32.mrf.mxu0
        %922 = vmatprep.mubr.f32.mxu0 0.0
        %923 = vmatmul.mubr.f32.gmra.mxu0 %v559
        %v924 = vpop.f32.mrf.mxu0
        %v925 = vadd.f32 %v734, %v924
        %v926 = vpop.f32.mrf.mxu0
        %927 = vmatprep.mubr.f32.mxu0 0.0
        %928 = vmatmul.mubr.f32.gmra.mxu0 %v562
        %v929 = vpop.f32.mrf.mxu0
        %v930 = vadd.f32 %v739, %v929
        %v931 = vpop.f32.mrf.mxu0
        %932 = vmatprep.mubr.f32.mxu0 0.0
        %933 = vmatmul.mubr.f32.gmra.mxu0 %v565
        %v934 = vpop.f32.mrf.mxu0
        %v935 = vadd.f32 %v744, %v934
        %v936 = vpop.f32.mrf.mxu0
        %937 = vmatprep.mubr.f32.mxu0 0.0
        %938 = vmatmul.mubr.f32.gmra.mxu0 %v568
        %v939 = vpop.f32.mrf.mxu0
        %v940 = vadd.f32 %v749, %v939
        %v941 = vpop.f32.mrf.mxu0
        %942 = vmatprep.mubr.f32.mxu0 0.0
        %943 = vmatmul.mubr.f32.gmra.mxu0 %v571
        %v944 = vpop.f32.mrf.mxu0
        %v945 = vadd.f32 %v754, %v944
        %v946 = vpop.f32.mrf.mxu0
        %947 = vmatprep.mubr.f32.mxu0 0.0
        %948 = vmatmul.mubr.f32.gmra.mxu0 %v574
        %v949 = vpop.f32.mrf.mxu0
        %v950 = vadd.f32 %v759, %v949
        %v951 = vpop.f32.mrf.mxu0
        %952 = vmatprep.mubr.f32.mxu0 0.0
        %953 = vmatmul.mubr.f32.gmra.mxu0 %v577
        %v954 = vpop.f32.mrf.mxu0
        %v955 = vadd.f32 %v764, %v954
        %v956 = vpop.f32.mrf.mxu0
        %957 = vmatprep.mubr.f32.mxu0 0.0
        %958 = vmatmul.mubr.f32.gmra.mxu0 %v580
        %v959 = vpop.f32.mrf.mxu0
        %v960 = vadd.f32 %v769, %v959
        %v961 = vpop.f32.mrf.mxu0
        %962 = vmatprep.mubr.f32.mxu0 0.0
        %963 = vmatmul.mubr.f32.gmra.mxu0 %v583
        %v964 = vpop.f32.mrf.mxu0
        %v965 = vadd.f32 %v774, %v964
        %v966 = vpop.f32.mrf.mxu0
        %967 = vdwg.mxu0
        %s968 = scalar_lea.vmem %s2, 32
        %v969 = vld [vmem:[%s968] sm:$0xff]
        %v970 = vld [vmem:[%s968 + $0x8] sm:$0xff]
        %v971 = vld [vmem:[%s968 + $0x10] sm:$0xff]
        %v972 = vld [vmem:[%s968 + $0x18] sm:$0xf]
        %v974 = vsel %vm588, %v972, 0
        %976 = vmatprep.subr.mxu0 0.0
        %977 = vmatpush1.msra.mxu0 0.0
        %978 = vmatprep.subr.mxu0 0.0
        %979 = vmatpush1.msra.mxu0 0.0
        %980 = vmatprep.subr.mxu0 0.0
        %981 = vmatpush1.msra.mxu0 0.0
        %982 = vmatprep.subr.mxu0 0.0
        %983 = vmatpush1.msra.mxu0 0.0
        %984 = vmatprep.subr.mxu0 0.0
        %985 = vmatpush1.msra.mxu0 0.0
        %986 = vmatprep.subr.mxu0 0.0
        %987 = vmatpush1.msra.mxu0 0.0
        %988 = vmatprep.subr.mxu0 0.0
        %989 = vmatpush1.msra.mxu0 0.0
        %990 = vmatprep.subr.mxu0 0.0
        %991 = vmatpush1.msra.mxu0 0.0
        %992 = vmatprep.subr.mxu0 0.0
        %993 = vmatpush1.msra.mxu0 0.0
        %994 = vmatprep.subr.mxu0 0.0
        %995 = vmatpush1.msra.mxu0 0.0
        %996 = vmatprep.subr.mxu0 0.0
        %997 = vmatpush1.msra.mxu0 0.0
        %998 = vmatprep.subr.mxu0 0.0
        %999 = vmatpush1.msra.mxu0 0.0
        %1000 = vmatprep.subr.mxu0 0.0
        %1001 = vmatpush1.msra.mxu0 %v974
        %1002 = vmatprep.subr.mxu0 0.0
        %1003 = vmatpush1.msra.mxu0 %v971
        %1004 = vmatprep.subr.mxu0 0.0
        %1005 = vmatpush1.msra.mxu0 %v970
        %1006 = vmatprep.subr.mxu0 0.0
        %1007 = vmatpush1.msra.mxu0 %v969
        %1008 = vmatprep.subr.mxu0 0.0
        %1009 = vmatpush2.msra.mxu0 0.0
        %1010 = vmatprep.subr.mxu0 0.0
        %1011 = vmatpush2.msra.mxu0 0.0
        %1012 = vmatprep.subr.mxu0 0.0
        %1013 = vmatpush2.msra.mxu0 0.0
        %1014 = vmatprep.subr.mxu0 0.0
        %1015 = vmatpush2.msra.mxu0 0.0
        %1016 = vmatprep.subr.mxu0 0.0
        %1017 = vmatpush2.msra.mxu0 0.0
        %1018 = vmatprep.subr.mxu0 0.0
        %1019 = vmatpush2.msra.mxu0 0.0
        %1020 = vmatprep.subr.mxu0 0.0
        %1021 = vmatpush2.msra.mxu0 0.0
        %1022 = vmatprep.subr.mxu0 0.0
        %1023 = vmatpush2.msra.mxu0 0.0
        %1024 = vmatprep.subr.mxu0 0.0
        %1025 = vmatpush2.msra.mxu0 0.0
        %1026 = vmatprep.subr.mxu0 0.0
        %1027 = vmatpush2.msra.mxu0 0.0
        %1028 = vmatprep.subr.mxu0 0.0
        %1029 = vmatpush2.msra.mxu0 0.0
        %1030 = vmatprep.subr.mxu0 0.0
        %1031 = vmatpush2.msra.mxu0 0.0
        %1032 = vmatprep.subr.mxu0 0.0
        %1033 = vmatpush2.msra.mxu0 0.0
        %1034 = vmatprep.subr.mxu0 0.0
        %1035 = vmatpush2.msra.mxu0 0.0
        %1036 = vmatprep.subr.mxu0 0.0
        %1037 = vmatpush2.msra.mxu0 0.0
        %1038 = vmatprep.subr.mxu0 0.0
        %1039 = vmatpush2.msra.mxu0 0.0
        %1040 = vmatprep.mubr.f32.mxu0 0.0
        %1041 = vmatmul.mubr.f32.gmra.mxu0 %v517
        %v1042 = vpop.f32.mrf.mxu0
        %v1043 = vadd.f32 0.0, %v1042
        %v1044 = vpop.f32.mrf.mxu0
        %1045 = vmatprep.mubr.f32.mxu0 0.0
        %1046 = vmatmul.mubr.f32.gmra.mxu0 %v520
        %v1047 = vpop.f32.mrf.mxu0
        %v1048 = vadd.f32 0.0, %v1047
        %v1049 = vpop.f32.mrf.mxu0
        %1050 = vmatprep.mubr.f32.mxu0 0.0
        %1051 = vmatmul.mubr.f32.gmra.mxu0 %v523
        %v1052 = vpop.f32.mrf.mxu0
        %v1053 = vadd.f32 0.0, %v1052
        %v1054 = vpop.f32.mrf.mxu0
        %1055 = vmatprep.mubr.f32.mxu0 0.0
        %1056 = vmatmul.mubr.f32.gmra.mxu0 %v526
        %v1057 = vpop.f32.mrf.mxu0
        %v1058 = vadd.f32 0.0, %v1057
        %v1059 = vpop.f32.mrf.mxu0
        %1060 = vmatprep.mubr.f32.mxu0 0.0
        %1061 = vmatmul.mubr.f32.gmra.mxu0 %v529
        %v1062 = vpop.f32.mrf.mxu0
        %v1063 = vadd.f32 0.0, %v1062
        %v1064 = vpop.f32.mrf.mxu0
        %1065 = vmatprep.mubr.f32.mxu0 0.0
        %1066 = vmatmul.mubr.f32.gmra.mxu0 %v532
        %v1067 = vpop.f32.mrf.mxu0
        %v1068 = vadd.f32 0.0, %v1067
        %v1069 = vpop.f32.mrf.mxu0
        %1070 = vmatprep.mubr.f32.mxu0 0.0
        %1071 = vmatmul.mubr.f32.gmra.mxu0 %v535
        %v1072 = vpop.f32.mrf.mxu0
        %v1073 = vadd.f32 0.0, %v1072
        %v1074 = vpop.f32.mrf.mxu0
        %1075 = vmatprep.mubr.f32.mxu0 0.0
        %1076 = vmatmul.mubr.f32.gmra.mxu0 %v538
        %v1077 = vpop.f32.mrf.mxu0
        %v1078 = vadd.f32 0.0, %v1077
        %v1079 = vpop.f32.mrf.mxu0
        %1080 = vmatprep.mubr.f32.mxu0 0.0
        %1081 = vmatmul.mubr.f32.gmra.mxu0 %v541
        %v1082 = vpop.f32.mrf.mxu0
        %v1083 = vadd.f32 0.0, %v1082
        %v1084 = vpop.f32.mrf.mxu0
        %1085 = vmatprep.mubr.f32.mxu0 0.0
        %1086 = vmatmul.mubr.f32.gmra.mxu0 %v544
        %v1087 = vpop.f32.mrf.mxu0
        %v1088 = vadd.f32 0.0, %v1087
        %v1089 = vpop.f32.mrf.mxu0
        %1090 = vmatprep.mubr.f32.mxu0 0.0
        %1091 = vmatmul.mubr.f32.gmra.mxu0 %v547
        %v1092 = vpop.f32.mrf.mxu0
        %v1093 = vadd.f32 0.0, %v1092
        %v1094 = vpop.f32.mrf.mxu0
        %1095 = vmatprep.mubr.f32.mxu0 0.0
        %1096 = vmatmul.mubr.f32.gmra.mxu0 %v550
        %v1097 = vpop.f32.mrf.mxu0
        %v1098 = vadd.f32 0.0, %v1097
        %v1099 = vpop.f32.mrf.mxu0
        %1100 = vmatprep.mubr.f32.mxu0 0.0
        %1101 = vmatmul.mubr.f32.gmra.mxu0 %v553
        %v1102 = vpop.f32.mrf.mxu0
        %v1103 = vadd.f32 0.0, %v1102
        %v1104 = vpop.f32.mrf.mxu0
        %1105 = vmatprep.mubr.f32.mxu0 0.0
        %1106 = vmatmul.mubr.f32.gmra.mxu0 %v556
        %v1107 = vpop.f32.mrf.mxu0
        %v1108 = vadd.f32 0.0, %v1107
        %v1109 = vpop.f32.mrf.mxu0
        %1110 = vmatprep.mubr.f32.mxu0 0.0
        %1111 = vmatmul.mubr.f32.gmra.mxu0 %v559
        %v1112 = vpop.f32.mrf.mxu0
        %v1113 = vadd.f32 0.0, %v1112
        %v1114 = vpop.f32.mrf.mxu0
        %1115 = vmatprep.mubr.f32.mxu0 0.0
        %1116 = vmatmul.mubr.f32.gmra.mxu0 %v562
        %v1117 = vpop.f32.mrf.mxu0
        %v1118 = vadd.f32 0.0, %v1117
        %v1119 = vpop.f32.mrf.mxu0
        %1120 = vmatprep.mubr.f32.mxu0 0.0
        %1121 = vmatmul.mubr.f32.gmra.mxu0 %v565
        %v1122 = vpop.f32.mrf.mxu0
        %v1123 = vadd.f32 0.0, %v1122
        %v1124 = vpop.f32.mrf.mxu0
        %1125 = vmatprep.mubr.f32.mxu0 0.0
        %1126 = vmatmul.mubr.f32.gmra.mxu0 %v568
        %v1127 = vpop.f32.mrf.mxu0
        %v1128 = vadd.f32 0.0, %v1127
        %v1129 = vpop.f32.mrf.mxu0
        %1130 = vmatprep.mubr.f32.mxu0 0.0
        %1131 = vmatmul.mubr.f32.gmra.mxu0 %v571
        %v1132 = vpop.f32.mrf.mxu0
        %v1133 = vadd.f32 0.0, %v1132
        %v1134 = vpop.f32.mrf.mxu0
        %1135 = vmatprep.mubr.f32.mxu0 0.0
        %1136 = vmatmul.mubr.f32.gmra.mxu0 %v574
        %v1137 = vpop.f32.mrf.mxu0
        %v1138 = vadd.f32 0.0, %v1137
        %v1139 = vpop.f32.mrf.mxu0
        %1140 = vmatprep.mubr.f32.mxu0 0.0
        %1141 = vmatmul.mubr.f32.gmra.mxu0 %v577
        %v1142 = vpop.f32.mrf.mxu0
        %v1143 = vadd.f32 0.0, %v1142
        %v1144 = vpop.f32.mrf.mxu0
        %1145 = vmatprep.mubr.f32.mxu0 0.0
        %1146 = vmatmul.mubr.f32.gmra.mxu0 %v580
        %v1147 = vpop.f32.mrf.mxu0
        %v1148 = vadd.f32 0.0, %v1147
        %v1149 = vpop.f32.mrf.mxu0
        %1150 = vmatprep.mubr.f32.mxu0 0.0
        %1151 = vmatmul.mubr.f32.gmra.mxu0 %v583
        %v1152 = vpop.f32.mrf.mxu0
        %v1153 = vadd.f32 0.0, %v1152
        %v1154 = vpop.f32.mrf.mxu0
        %1155 = vmatprep.mubr.f32.mxu0 0.0
        %1156 = vmatmul.mubr.f32.gmra.mxu0 %v586
        %v1157 = vpop.f32.mrf.mxu0
        %v1158 = vadd.f32 0.0, %v1157
        %v1159 = vpop.f32.mrf.mxu0
        %1160 = vdwg.mxu0
        %v1162 = vsel %vm588, %v509, 0
        %1164 = vmatprep.subr.mxu0 0.0
        %1165 = vmatpush1.msra.mxu0 0.0
        %1166 = vmatprep.subr.mxu0 0.0
        %1167 = vmatpush1.msra.mxu0 0.0
        %1168 = vmatprep.subr.mxu0 0.0
        %1169 = vmatpush1.msra.mxu0 0.0
        %1170 = vmatprep.subr.mxu0 0.0
        %1171 = vmatpush1.msra.mxu0 0.0
        %1172 = vmatprep.subr.mxu0 0.0
        %1173 = vmatpush1.msra.mxu0 0.0
        %1174 = vmatprep.subr.mxu0 0.0
        %1175 = vmatpush1.msra.mxu0 0.0
        %1176 = vmatprep.subr.mxu0 0.0
        %1177 = vmatpush1.msra.mxu0 0.0
        %1178 = vmatprep.subr.mxu0 0.0
        %1179 = vmatpush1.msra.mxu0 0.0
        %1180 = vmatprep.subr.mxu0 0.0
        %1181 = vmatpush1.msra.mxu0 0.0
        %1182 = vmatprep.subr.mxu0 0.0
        %1183 = vmatpush1.msra.mxu0 0.0
        %1184 = vmatprep.subr.mxu0 0.0
        %1185 = vmatpush1.msra.mxu0 0.0
        %1186 = vmatprep.subr.mxu0 0.0
        %1187 = vmatpush1.msra.mxu0 0.0
        %1188 = vmatprep.subr.mxu0 0.0
        %1189 = vmatpush1.msra.mxu0 %v1162
        %1190 = vmatprep.subr.mxu0 0.0
        %1191 = vmatpush1.msra.mxu0 %v508
        %1192 = vmatprep.subr.mxu0 0.0
        %1193 = vmatpush1.msra.mxu0 %v507
        %1194 = vmatprep.subr.mxu0 0.0
        %1195 = vmatpush1.msra.mxu0 %v506
        %1196 = vmatprep.subr.mxu0 0.0
        %1197 = vmatpush2.msra.mxu0 0.0
        %1198 = vmatprep.subr.mxu0 0.0
        %1199 = vmatpush2.msra.mxu0 0.0
        %1200 = vmatprep.subr.mxu0 0.0
        %1201 = vmatpush2.msra.mxu0 0.0
        %1202 = vmatprep.subr.mxu0 0.0
        %1203 = vmatpush2.msra.mxu0 0.0
        %1204 = vmatprep.subr.mxu0 0.0
        %1205 = vmatpush2.msra.mxu0 0.0
        %1206 = vmatprep.subr.mxu0 0.0
        %1207 = vmatpush2.msra.mxu0 0.0
        %1208 = vmatprep.subr.mxu0 0.0
        %1209 = vmatpush2.msra.mxu0 0.0
        %1210 = vmatprep.subr.mxu0 0.0
        %1211 = vmatpush2.msra.mxu0 0.0
        %1212 = vmatprep.subr.mxu0 0.0
        %1213 = vmatpush2.msra.mxu0 0.0
        %1214 = vmatprep.subr.mxu0 0.0
        %1215 = vmatpush2.msra.mxu0 0.0
        %1216 = vmatprep.subr.mxu0 0.0
        %1217 = vmatpush2.msra.mxu0 0.0
        %1218 = vmatprep.subr.mxu0 0.0
        %1219 = vmatpush2.msra.mxu0 0.0
        %1220 = vmatprep.subr.mxu0 0.0
        %1221 = vmatpush2.msra.mxu0 0.0
        %1222 = vmatprep.subr.mxu0 0.0
        %1223 = vmatpush2.msra.mxu0 0.0
        %1224 = vmatprep.subr.mxu0 0.0
        %1225 = vmatpush2.msra.mxu0 0.0
        %1226 = vmatprep.subr.mxu0 0.0
        %1227 = vmatpush2.msra.mxu0 0.0
        %1228 = vmatprep.mubr.f32.mxu0 0.0
        %1229 = vmatmul.mubr.f32.gmra.mxu0 %v778
        %v1230 = vpop.f32.mrf.mxu0
        %v1231 = vadd.f32 %v1043, %v1230
        %v1232 = vpop.f32.mrf.mxu0
        %1233 = vmatprep.mubr.f32.mxu0 0.0
        %1234 = vmatmul.mubr.f32.gmra.mxu0 %v517
        %v1235 = vpop.f32.mrf.mxu0
        %v1236 = vadd.f32 %v1048, %v1235
        %v1237 = vpop.f32.mrf.mxu0
        %1238 = vmatprep.mubr.f32.mxu0 0.0
        %1239 = vmatmul.mubr.f32.gmra.mxu0 %v520
        %v1240 = vpop.f32.mrf.mxu0
        %v1241 = vadd.f32 %v1053, %v1240
        %v1242 = vpop.f32.mrf.mxu0
        %1243 = vmatprep.mubr.f32.mxu0 0.0
        %1244 = vmatmul.mubr.f32.gmra.mxu0 %v523
        %v1245 = vpop.f32.mrf.mxu0
        %v1246 = vadd.f32 %v1058, %v1245
        %v1247 = vpop.f32.mrf.mxu0
        %1248 = vmatprep.mubr.f32.mxu0 0.0
        %1249 = vmatmul.mubr.f32.gmra.mxu0 %v526
        %v1250 = vpop.f32.mrf.mxu0
        %v1251 = vadd.f32 %v1063, %v1250
        %v1252 = vpop.f32.mrf.mxu0
        %1253 = vmatprep.mubr.f32.mxu0 0.0
        %1254 = vmatmul.mubr.f32.gmra.mxu0 %v529
        %v1255 = vpop.f32.mrf.mxu0
        %v1256 = vadd.f32 %v1068, %v1255
        %v1257 = vpop.f32.mrf.mxu0
        %1258 = vmatprep.mubr.f32.mxu0 0.0
        %1259 = vmatmul.mubr.f32.gmra.mxu0 %v532
        %v1260 = vpop.f32.mrf.mxu0
        %v1261 = vadd.f32 %v1073, %v1260
        %v1262 = vpop.f32.mrf.mxu0
        %1263 = vmatprep.mubr.f32.mxu0 0.0
        %1264 = vmatmul.mubr.f32.gmra.mxu0 %v535
        %v1265 = vpop.f32.mrf.mxu0
        %v1266 = vadd.f32 %v1078, %v1265
        %v1267 = vpop.f32.mrf.mxu0
        %1268 = vmatprep.mubr.f32.mxu0 0.0
        %1269 = vmatmul.mubr.f32.gmra.mxu0 %v538
        %v1270 = vpop.f32.mrf.mxu0
        %v1271 = vadd.f32 %v1083, %v1270
        %v1272 = vpop.f32.mrf.mxu0
        %1273 = vmatprep.mubr.f32.mxu0 0.0
        %1274 = vmatmul.mubr.f32.gmra.mxu0 %v541
        %v1275 = vpop.f32.mrf.mxu0
        %v1276 = vadd.f32 %v1088, %v1275
        %v1277 = vpop.f32.mrf.mxu0
        %1278 = vmatprep.mubr.f32.mxu0 0.0
        %1279 = vmatmul.mubr.f32.gmra.mxu0 %v544
        %v1280 = vpop.f32.mrf.mxu0
        %v1281 = vadd.f32 %v1093, %v1280
        %v1282 = vpop.f32.mrf.mxu0
        %1283 = vmatprep.mubr.f32.mxu0 0.0
        %1284 = vmatmul.mubr.f32.gmra.mxu0 %v547
        %v1285 = vpop.f32.mrf.mxu0
        %v1286 = vadd.f32 %v1098, %v1285
        %v1287 = vpop.f32.mrf.mxu0
        %1288 = vmatprep.mubr.f32.mxu0 0.0
        %1289 = vmatmul.mubr.f32.gmra.mxu0 %v550
        %v1290 = vpop.f32.mrf.mxu0
        %v1291 = vadd.f32 %v1103, %v1290
        %v1292 = vpop.f32.mrf.mxu0
        %1293 = vmatprep.mubr.f32.mxu0 0.0
        %1294 = vmatmul.mubr.f32.gmra.mxu0 %v553
        %v1295 = vpop.f32.mrf.mxu0
        %v1296 = vadd.f32 %v1108, %v1295
        %v1297 = vpop.f32.mrf.mxu0
        %1298 = vmatprep.mubr.f32.mxu0 0.0
        %1299 = vmatmul.mubr.f32.gmra.mxu0 %v556
        %v1300 = vpop.f32.mrf.mxu0
        %v1301 = vadd.f32 %v1113, %v1300
        %v1302 = vpop.f32.mrf.mxu0
        %1303 = vmatprep.mubr.f32.mxu0 0.0
        %1304 = vmatmul.mubr.f32.gmra.mxu0 %v559
        %v1305 = vpop.f32.mrf.mxu0
        %v1306 = vadd.f32 %v1118, %v1305
        %v1307 = vpop.f32.mrf.mxu0
        %1308 = vmatprep.mubr.f32.mxu0 0.0
        %1309 = vmatmul.mubr.f32.gmra.mxu0 %v562
        %v1310 = vpop.f32.mrf.mxu0
        %v1311 = vadd.f32 %v1123, %v1310
        %v1312 = vpop.f32.mrf.mxu0
        %1313 = vmatprep.mubr.f32.mxu0 0.0
        %1314 = vmatmul.mubr.f32.gmra.mxu0 %v565
        %v1315 = vpop.f32.mrf.mxu0
        %v1316 = vadd.f32 %v1128, %v1315
        %v1317 = vpop.f32.mrf.mxu0
        %1318 = vmatprep.mubr.f32.mxu0 0.0
        %1319 = vmatmul.mubr.f32.gmra.mxu0 %v568
        %v1320 = vpop.f32.mrf.mxu0
        %v1321 = vadd.f32 %v1133, %v1320
        %v1322 = vpop.f32.mrf.mxu0
        %1323 = vmatprep.mubr.f32.mxu0 0.0
        %1324 = vmatmul.mubr.f32.gmra.mxu0 %v571
        %v1325 = vpop.f32.mrf.mxu0
        %v1326 = vadd.f32 %v1138, %v1325
        %v1327 = vpop.f32.mrf.mxu0
        %1328 = vmatprep.mubr.f32.mxu0 0.0
        %1329 = vmatmul.mubr.f32.gmra.mxu0 %v574
        %v1330 = vpop.f32.mrf.mxu0
        %v1331 = vadd.f32 %v1143, %v1330
        %v1332 = vpop.f32.mrf.mxu0
        %1333 = vmatprep.mubr.f32.mxu0 0.0
        %1334 = vmatmul.mubr.f32.gmra.mxu0 %v577
        %v1335 = vpop.f32.mrf.mxu0
        %v1336 = vadd.f32 %v1148, %v1335
        %v1337 = vpop.f32.mrf.mxu0
        %1338 = vmatprep.mubr.f32.mxu0 0.0
        %1339 = vmatmul.mubr.f32.gmra.mxu0 %v580
        %v1340 = vpop.f32.mrf.mxu0
        %v1341 = vadd.f32 %v1153, %v1340
        %v1342 = vpop.f32.mrf.mxu0
        %1343 = vmatprep.mubr.f32.mxu0 0.0
        %1344 = vmatmul.mubr.f32.gmra.mxu0 %v583
        %v1345 = vpop.f32.mrf.mxu0
        %v1346 = vadd.f32 %v1158, %v1345
        %v1347 = vpop.f32.mrf.mxu0
        %1348 = vdwg.mxu0
        %s1349 = scalar_lea.vmem %s1, 64
        %v1350 = vld [vmem:[%s1349] sm:$0xff]
        %v1351 = vld [vmem:[%s1349 + $0x8] sm:$0xff]
        %v1352 = vld [vmem:[%s1349 + $0x10] sm:$0xff]
        %v1353 = vld [vmem:[%s1349 + $0x18] sm:$0xf]
        %v1355 = vsel %vm515, %v499, 0
        %v1358 = vsel %vm588, %v1353, 0
        %1360 = vmatprep.subr.mxu0 0.0
        %1361 = vmatpush1.msra.mxu0 0.0
        %1362 = vmatprep.subr.mxu0 0.0
        %1363 = vmatpush1.msra.mxu0 0.0
        %1364 = vmatprep.subr.mxu0 0.0
        %1365 = vmatpush1.msra.mxu0 0.0
        %1366 = vmatprep.subr.mxu0 0.0
        %1367 = vmatpush1.msra.mxu0 0.0
        %1368 = vmatprep.subr.mxu0 0.0
        %1369 = vmatpush1.msra.mxu0 0.0
        %1370 = vmatprep.subr.mxu0 0.0
        %1371 = vmatpush1.msra.mxu0 0.0
        %1372 = vmatprep.subr.mxu0 0.0
        %1373 = vmatpush1.msra.mxu0 0.0
        %1374 = vmatprep.subr.mxu0 0.0
        %1375 = vmatpush1.msra.mxu0 0.0
        %1376 = vmatprep.subr.mxu0 0.0
        %1377 = vmatpush1.msra.mxu0 0.0
        %1378 = vmatprep.subr.mxu0 0.0
        %1379 = vmatpush1.msra.mxu0 0.0
        %1380 = vmatprep.subr.mxu0 0.0
        %1381 = vmatpush1.msra.mxu0 0.0
        %1382 = vmatprep.subr.mxu0 0.0
        %1383 = vmatpush1.msra.mxu0 0.0
        %1384 = vmatprep.subr.mxu0 0.0
        %1385 = vmatpush1.msra.mxu0 %v1358
        %1386 = vmatprep.subr.mxu0 0.0
        %1387 = vmatpush1.msra.mxu0 %v1352
        %1388 = vmatprep.subr.mxu0 0.0
        %1389 = vmatpush1.msra.mxu0 %v1351
        %1390 = vmatprep.subr.mxu0 0.0
        %1391 = vmatpush1.msra.mxu0 %v1350
        %1392 = vmatprep.subr.mxu0 0.0
        %1393 = vmatpush2.msra.mxu0 0.0
        %1394 = vmatprep.subr.mxu0 0.0
        %1395 = vmatpush2.msra.mxu0 0.0
        %1396 = vmatprep.subr.mxu0 0.0
        %1397 = vmatpush2.msra.mxu0 0.0
        %1398 = vmatprep.subr.mxu0 0.0
        %1399 = vmatpush2.msra.mxu0 0.0
        %1400 = vmatprep.subr.mxu0 0.0
        %1401 = vmatpush2.msra.mxu0 0.0
        %1402 = vmatprep.subr.mxu0 0.0
        %1403 = vmatpush2.msra.mxu0 0.0
        %1404 = vmatprep.subr.mxu0 0.0
        %1405 = vmatpush2.msra.mxu0 0.0
        %1406 = vmatprep.subr.mxu0 0.0
        %1407 = vmatpush2.msra.mxu0 0.0
        %1408 = vmatprep.subr.mxu0 0.0
        %1409 = vmatpush2.msra.mxu0 0.0
        %1410 = vmatprep.subr.mxu0 0.0
        %1411 = vmatpush2.msra.mxu0 0.0
        %1412 = vmatprep.subr.mxu0 0.0
        %1413 = vmatpush2.msra.mxu0 0.0
        %1414 = vmatprep.subr.mxu0 0.0
        %1415 = vmatpush2.msra.mxu0 0.0
        %1416 = vmatprep.subr.mxu0 0.0
        %1417 = vmatpush2.msra.mxu0 0.0
        %1418 = vmatprep.subr.mxu0 0.0
        %1419 = vmatpush2.msra.mxu0 0.0
        %1420 = vmatprep.subr.mxu0 0.0
        %1421 = vmatpush2.msra.mxu0 0.0
        %1422 = vmatprep.subr.mxu0 0.0
        %1423 = vmatpush2.msra.mxu0 0.0
        %1424 = vmatprep.mubr.f32.mxu0 0.0
        %1425 = vmatmul.mubr.f32.gmra.mxu0 %v520
        %v1426 = vpop.f32.mrf.mxu0
        %v1427 = vadd.f32 0.0, %v1426
        %v1428 = vpop.f32.mrf.mxu0
        %1429 = vmatprep.mubr.f32.mxu0 0.0
        %1430 = vmatmul.mubr.f32.gmra.mxu0 %v523
        %v1431 = vpop.f32.mrf.mxu0
        %v1432 = vadd.f32 0.0, %v1431
        %v1433 = vpop.f32.mrf.mxu0
        %1434 = vmatprep.mubr.f32.mxu0 0.0
        %1435 = vmatmul.mubr.f32.gmra.mxu0 %v526
        %v1436 = vpop.f32.mrf.mxu0
        %v1437 = vadd.f32 0.0, %v1436
        %v1438 = vpop.f32.mrf.mxu0
        %1439 = vmatprep.mubr.f32.mxu0 0.0
        %1440 = vmatmul.mubr.f32.gmra.mxu0 %v529
        %v1441 = vpop.f32.mrf.mxu0
        %v1442 = vadd.f32 0.0, %v1441
        %v1443 = vpop.f32.mrf.mxu0
        %1444 = vmatprep.mubr.f32.mxu0 0.0
        %1445 = vmatmul.mubr.f32.gmra.mxu0 %v532
        %v1446 = vpop.f32.mrf.mxu0
        %v1447 = vadd.f32 0.0, %v1446
        %v1448 = vpop.f32.mrf.mxu0
        %1449 = vmatprep.mubr.f32.mxu0 0.0
        %1450 = vmatmul.mubr.f32.gmra.mxu0 %v535
        %v1451 = vpop.f32.mrf.mxu0
        %v1452 = vadd.f32 0.0, %v1451
        %v1453 = vpop.f32.mrf.mxu0
        %1454 = vmatprep.mubr.f32.mxu0 0.0
        %1455 = vmatmul.mubr.f32.gmra.mxu0 %v538
        %v1456 = vpop.f32.mrf.mxu0
        %v1457 = vadd.f32 0.0, %v1456
        %v1458 = vpop.f32.mrf.mxu0
        %1459 = vmatprep.mubr.f32.mxu0 0.0
        %1460 = vmatmul.mubr.f32.gmra.mxu0 %v541
        %v1461 = vpop.f32.mrf.mxu0
        %v1462 = vadd.f32 0.0, %v1461
        %v1463 = vpop.f32.mrf.mxu0
        %1464 = vmatprep.mubr.f32.mxu0 0.0
        %1465 = vmatmul.mubr.f32.gmra.mxu0 %v544
        %v1466 = vpop.f32.mrf.mxu0
        %v1467 = vadd.f32 0.0, %v1466
        %v1468 = vpop.f32.mrf.mxu0
        %1469 = vmatprep.mubr.f32.mxu0 0.0
        %1470 = vmatmul.mubr.f32.gmra.mxu0 %v547
        %v1471 = vpop.f32.mrf.mxu0
        %v1472 = vadd.f32 0.0, %v1471
        %v1473 = vpop.f32.mrf.mxu0
        %1474 = vmatprep.mubr.f32.mxu0 0.0
        %1475 = vmatmul.mubr.f32.gmra.mxu0 %v550
        %v1476 = vpop.f32.mrf.mxu0
        %v1477 = vadd.f32 0.0, %v1476
        %v1478 = vpop.f32.mrf.mxu0
        %1479 = vmatprep.mubr.f32.mxu0 0.0
        %1480 = vmatmul.mubr.f32.gmra.mxu0 %v553
        %v1481 = vpop.f32.mrf.mxu0
        %v1482 = vadd.f32 0.0, %v1481
        %v1483 = vpop.f32.mrf.mxu0
        %1484 = vmatprep.mubr.f32.mxu0 0.0
        %1485 = vmatmul.mubr.f32.gmra.mxu0 %v556
        %v1486 = vpop.f32.mrf.mxu0
        %v1487 = vadd.f32 0.0, %v1486
        %v1488 = vpop.f32.mrf.mxu0
        %1489 = vmatprep.mubr.f32.mxu0 0.0
        %1490 = vmatmul.mubr.f32.gmra.mxu0 %v559
        %v1491 = vpop.f32.mrf.mxu0
        %v1492 = vadd.f32 0.0, %v1491
        %v1493 = vpop.f32.mrf.mxu0
        %1494 = vmatprep.mubr.f32.mxu0 0.0
        %1495 = vmatmul.mubr.f32.gmra.mxu0 %v562
        %v1496 = vpop.f32.mrf.mxu0
        %v1497 = vadd.f32 0.0, %v1496
        %v1498 = vpop.f32.mrf.mxu0
        %1499 = vmatprep.mubr.f32.mxu0 0.0
        %1500 = vmatmul.mubr.f32.gmra.mxu0 %v565
        %v1501 = vpop.f32.mrf.mxu0
        %v1502 = vadd.f32 0.0, %v1501
        %v1503 = vpop.f32.mrf.mxu0
        %1504 = vmatprep.mubr.f32.mxu0 0.0
        %1505 = vmatmul.mubr.f32.gmra.mxu0 %v568
        %v1506 = vpop.f32.mrf.mxu0
        %v1507 = vadd.f32 0.0, %v1506
        %v1508 = vpop.f32.mrf.mxu0
        %1509 = vmatprep.mubr.f32.mxu0 0.0
        %1510 = vmatmul.mubr.f32.gmra.mxu0 %v571
        %v1511 = vpop.f32.mrf.mxu0
        %v1512 = vadd.f32 0.0, %v1511
        %v1513 = vpop.f32.mrf.mxu0
        %1514 = vmatprep.mubr.f32.mxu0 0.0
        %1515 = vmatmul.mubr.f32.gmra.mxu0 %v574
        %v1516 = vpop.f32.mrf.mxu0
        %v1517 = vadd.f32 0.0, %v1516
        %v1518 = vpop.f32.mrf.mxu0
        %1519 = vmatprep.mubr.f32.mxu0 0.0
        %1520 = vmatmul.mubr.f32.gmra.mxu0 %v577
        %v1521 = vpop.f32.mrf.mxu0
        %v1522 = vadd.f32 0.0, %v1521
        %v1523 = vpop.f32.mrf.mxu0
        %1524 = vmatprep.mubr.f32.mxu0 0.0
        %1525 = vmatmul.mubr.f32.gmra.mxu0 %v580
        %v1526 = vpop.f32.mrf.mxu0
        %v1527 = vadd.f32 0.0, %v1526
        %v1528 = vpop.f32.mrf.mxu0
        %1529 = vmatprep.mubr.f32.mxu0 0.0
        %1530 = vmatmul.mubr.f32.gmra.mxu0 %v583
        %v1531 = vpop.f32.mrf.mxu0
        %v1532 = vadd.f32 0.0, %v1531
        %v1533 = vpop.f32.mrf.mxu0
        %1534 = vmatprep.mubr.f32.mxu0 0.0
        %1535 = vmatmul.mubr.f32.gmra.mxu0 %v586
        %v1536 = vpop.f32.mrf.mxu0
        %v1537 = vadd.f32 0.0, %v1536
        %v1538 = vpop.f32.mrf.mxu0
        %1539 = vmatprep.mubr.f32.mxu0 0.0
        %1540 = vmatmul.mubr.f32.gmra.mxu0 %v1355
        %v1541 = vpop.f32.mrf.mxu0
        %v1542 = vadd.f32 0.0, %v1541
        %v1543 = vpop.f32.mrf.mxu0
        %1544 = vdwg.mxu0
        %v1545 = vadd.f32 %v850, %v1427
        %v1546 = vadd.f32 %v855, %v1432
        %v1547 = vadd.f32 %v860, %v1437
        %v1548 = vadd.f32 %v865, %v1442
        %v1549 = vadd.f32 %v870, %v1447
        %v1550 = vadd.f32 %v875, %v1452
        %v1551 = vadd.f32 %v880, %v1457
        %v1552 = vadd.f32 %v885, %v1462
        %v1553 = vadd.f32 %v890, %v1467
        %v1554 = vadd.f32 %v895, %v1472
        %v1555 = vadd.f32 %v900, %v1477
        %v1556 = vadd.f32 %v905, %v1482
        %v1557 = vadd.f32 %v910, %v1487
        %v1558 = vadd.f32 %v915, %v1492
        %v1559 = vadd.f32 %v920, %v1497
        %v1560 = vadd.f32 %v925, %v1502
        %v1561 = vadd.f32 %v930, %v1507
        %v1562 = vadd.f32 %v935, %v1512
        %v1563 = vadd.f32 %v940, %v1517
        %v1564 = vadd.f32 %v945, %v1522
        %v1565 = vadd.f32 %v950, %v1527
        %v1566 = vadd.f32 %v955, %v1532
        %v1567 = vadd.f32 %v960, %v1537
        %v1568 = vadd.f32 %v965, %v1542
        %s1569 = scalar_lea.vmem %s2, 64
        %v1570 = vld [vmem:[%s1569] sm:$0xff]
        %v1571 = vld [vmem:[%s1569 + $0x8] sm:$0xff]
        %v1572 = vld [vmem:[%s1569 + $0x10] sm:$0xff]
        %v1573 = vld [vmem:[%s1569 + $0x18] sm:$0xf]
        %v1575 = vsel %vm588, %v1573, 0
        %1577 = vmatprep.subr.mxu0 0.0
        %1578 = vmatpush1.msra.mxu0 0.0
        %1579 = vmatprep.subr.mxu0 0.0
        %1580 = vmatpush1.msra.mxu0 0.0
        %1581 = vmatprep.subr.mxu0 0.0
        %1582 = vmatpush1.msra.mxu0 0.0
        %1583 = vmatprep.subr.mxu0 0.0
        %1584 = vmatpush1.msra.mxu0 0.0
        %1585 = vmatprep.subr.mxu0 0.0
        %1586 = vmatpush1.msra.mxu0 0.0
        %1587 = vmatprep.subr.mxu0 0.0
        %1588 = vmatpush1.msra.mxu0 0.0
        %1589 = vmatprep.subr.mxu0 0.0
        %1590 = vmatpush1.msra.mxu0 0.0
        %1591 = vmatprep.subr.mxu0 0.0
        %1592 = vmatpush1.msra.mxu0 0.0
        %1593 = vmatprep.subr.mxu0 0.0
        %1594 = vmatpush1.msra.mxu0 0.0
        %1595 = vmatprep.subr.mxu0 0.0
        %1596 = vmatpush1.msra.mxu0 0.0
        %1597 = vmatprep.subr.mxu0 0.0
        %1598 = vmatpush1.msra.mxu0 0.0
        %1599 = vmatprep.subr.mxu0 0.0
        %1600 = vmatpush1.msra.mxu0 0.0
        %1601 = vmatprep.subr.mxu0 0.0
        %1602 = vmatpush1.msra.mxu0 %v1575
        %1603 = vmatprep.subr.mxu0 0.0
        %1604 = vmatpush1.msra.mxu0 %v1572
        %1605 = vmatprep.subr.mxu0 0.0
        %1606 = vmatpush1.msra.mxu0 %v1571
        %1607 = vmatprep.subr.mxu0 0.0
        %1608 = vmatpush1.msra.mxu0 %v1570
        %1609 = vmatprep.subr.mxu0 0.0
        %1610 = vmatpush2.msra.mxu0 0.0
        %1611 = vmatprep.subr.mxu0 0.0
        %1612 = vmatpush2.msra.mxu0 0.0
        %1613 = vmatprep.subr.mxu0 0.0
        %1614 = vmatpush2.msra.mxu0 0.0
        %1615 = vmatprep.subr.mxu0 0.0
        %1616 = vmatpush2.msra.mxu0 0.0
        %1617 = vmatprep.subr.mxu0 0.0
        %1618 = vmatpush2.msra.mxu0 0.0
        %1619 = vmatprep.subr.mxu0 0.0
        %1620 = vmatpush2.msra.mxu0 0.0
        %1621 = vmatprep.subr.mxu0 0.0
        %1622 = vmatpush2.msra.mxu0 0.0
        %1623 = vmatprep.subr.mxu0 0.0
        %1624 = vmatpush2.msra.mxu0 0.0
        %1625 = vmatprep.subr.mxu0 0.0
        %1626 = vmatpush2.msra.mxu0 0.0
        %1627 = vmatprep.subr.mxu0 0.0
        %1628 = vmatpush2.msra.mxu0 0.0
        %1629 = vmatprep.subr.mxu0 0.0
        %1630 = vmatpush2.msra.mxu0 0.0
        %1631 = vmatprep.subr.mxu0 0.0
        %1632 = vmatpush2.msra.mxu0 0.0
        %1633 = vmatprep.subr.mxu0 0.0
        %1634 = vmatpush2.msra.mxu0 0.0
        %1635 = vmatprep.subr.mxu0 0.0
        %1636 = vmatpush2.msra.mxu0 0.0
        %1637 = vmatprep.subr.mxu0 0.0
        %1638 = vmatpush2.msra.mxu0 0.0
        %1639 = vmatprep.subr.mxu0 0.0
        %1640 = vmatpush2.msra.mxu0 0.0
        %1641 = vmatprep.mubr.f32.mxu0 0.0
        %1642 = vmatmul.mubr.f32.gmra.mxu0 %v520
        %v1643 = vpop.f32.mrf.mxu0
        %v1644 = vadd.f32 0.0, %v1643
        %v1645 = vpop.f32.mrf.mxu0
        %1646 = vmatprep.mubr.f32.mxu0 0.0
        %1647 = vmatmul.mubr.f32.gmra.mxu0 %v523
        %v1648 = vpop.f32.mrf.mxu0
        %v1649 = vadd.f32 0.0, %v1648
        %v1650 = vpop.f32.mrf.mxu0
        %1651 = vmatprep.mubr.f32.mxu0 0.0
        %1652 = vmatmul.mubr.f32.gmra.mxu0 %v526
        %v1653 = vpop.f32.mrf.mxu0
        %v1654 = vadd.f32 0.0, %v1653
        %v1655 = vpop.f32.mrf.mxu0
        %1656 = vmatprep.mubr.f32.mxu0 0.0
        %1657 = vmatmul.mubr.f32.gmra.mxu0 %v529
        %v1658 = vpop.f32.mrf.mxu0
        %v1659 = vadd.f32 0.0, %v1658
        %v1660 = vpop.f32.mrf.mxu0
        %1661 = vmatprep.mubr.f32.mxu0 0.0
        %1662 = vmatmul.mubr.f32.gmra.mxu0 %v532
        %v1663 = vpop.f32.mrf.mxu0
        %v1664 = vadd.f32 0.0, %v1663
        %v1665 = vpop.f32.mrf.mxu0
        %1666 = vmatprep.mubr.f32.mxu0 0.0
        %1667 = vmatmul.mubr.f32.gmra.mxu0 %v535
        %v1668 = vpop.f32.mrf.mxu0
        %v1669 = vadd.f32 0.0, %v1668
        %v1670 = vpop.f32.mrf.mxu0
        %1671 = vmatprep.mubr.f32.mxu0 0.0
        %1672 = vmatmul.mubr.f32.gmra.mxu0 %v538
        %v1673 = vpop.f32.mrf.mxu0
        %v1674 = vadd.f32 0.0, %v1673
        %v1675 = vpop.f32.mrf.mxu0
        %1676 = vmatprep.mubr.f32.mxu0 0.0
        %1677 = vmatmul.mubr.f32.gmra.mxu0 %v541
        %v1678 = vpop.f32.mrf.mxu0
        %v1679 = vadd.f32 0.0, %v1678
        %v1680 = vpop.f32.mrf.mxu0
        %1681 = vmatprep.mubr.f32.mxu0 0.0
        %1682 = vmatmul.mubr.f32.gmra.mxu0 %v544
        %v1683 = vpop.f32.mrf.mxu0
        %v1684 = vadd.f32 0.0, %v1683
        %v1685 = vpop.f32.mrf.mxu0
        %1686 = vmatprep.mubr.f32.mxu0 0.0
        %1687 = vmatmul.mubr.f32.gmra.mxu0 %v547
        %v1688 = vpop.f32.mrf.mxu0
        %v1689 = vadd.f32 0.0, %v1688
        %v1690 = vpop.f32.mrf.mxu0
        %1691 = vmatprep.mubr.f32.mxu0 0.0
        %1692 = vmatmul.mubr.f32.gmra.mxu0 %v550
        %v1693 = vpop.f32.mrf.mxu0
        %v1694 = vadd.f32 0.0, %v1693
        %v1695 = vpop.f32.mrf.mxu0
        %1696 = vmatprep.mubr.f32.mxu0 0.0
        %1697 = vmatmul.mubr.f32.gmra.mxu0 %v553
        %v1698 = vpop.f32.mrf.mxu0
        %v1699 = vadd.f32 0.0, %v1698
        %v1700 = vpop.f32.mrf.mxu0
        %1701 = vmatprep.mubr.f32.mxu0 0.0
        %1702 = vmatmul.mubr.f32.gmra.mxu0 %v556
        %v1703 = vpop.f32.mrf.mxu0
        %v1704 = vadd.f32 0.0, %v1703
        %v1705 = vpop.f32.mrf.mxu0
        %1706 = vmatprep.mubr.f32.mxu0 0.0
        %1707 = vmatmul.mubr.f32.gmra.mxu0 %v559
        %v1708 = vpop.f32.mrf.mxu0
        %v1709 = vadd.f32 0.0, %v1708
        %v1710 = vpop.f32.mrf.mxu0
        %1711 = vmatprep.mubr.f32.mxu0 0.0
        %1712 = vmatmul.mubr.f32.gmra.mxu0 %v562
        %v1713 = vpop.f32.mrf.mxu0
        %v1714 = vadd.f32 0.0, %v1713
        %v1715 = vpop.f32.mrf.mxu0
        %1716 = vmatprep.mubr.f32.mxu0 0.0
        %1717 = vmatmul.mubr.f32.gmra.mxu0 %v565
        %v1718 = vpop.f32.mrf.mxu0
        %v1719 = vadd.f32 0.0, %v1718
        %v1720 = vpop.f32.mrf.mxu0
        %1721 = vmatprep.mubr.f32.mxu0 0.0
        %1722 = vmatmul.mubr.f32.gmra.mxu0 %v568
        %v1723 = vpop.f32.mrf.mxu0
        %v1724 = vadd.f32 0.0, %v1723
        %v1725 = vpop.f32.mrf.mxu0
        %1726 = vmatprep.mubr.f32.mxu0 0.0
        %1727 = vmatmul.mubr.f32.gmra.mxu0 %v571
        %v1728 = vpop.f32.mrf.mxu0
        %v1729 = vadd.f32 0.0, %v1728
        %v1730 = vpop.f32.mrf.mxu0
        %1731 = vmatprep.mubr.f32.mxu0 0.0
        %1732 = vmatmul.mubr.f32.gmra.mxu0 %v574
        %v1733 = vpop.f32.mrf.mxu0
        %v1734 = vadd.f32 0.0, %v1733
        %v1735 = vpop.f32.mrf.mxu0
        %1736 = vmatprep.mubr.f32.mxu0 0.0
        %1737 = vmatmul.mubr.f32.gmra.mxu0 %v577
        %v1738 = vpop.f32.mrf.mxu0
        %v1739 = vadd.f32 0.0, %v1738
        %v1740 = vpop.f32.mrf.mxu0
        %1741 = vmatprep.mubr.f32.mxu0 0.0
        %1742 = vmatmul.mubr.f32.gmra.mxu0 %v580
        %v1743 = vpop.f32.mrf.mxu0
        %v1744 = vadd.f32 0.0, %v1743
        %v1745 = vpop.f32.mrf.mxu0
        %1746 = vmatprep.mubr.f32.mxu0 0.0
        %1747 = vmatmul.mubr.f32.gmra.mxu0 %v583
        %v1748 = vpop.f32.mrf.mxu0
        %v1749 = vadd.f32 0.0, %v1748
        %v1750 = vpop.f32.mrf.mxu0
        %1751 = vmatprep.mubr.f32.mxu0 0.0
        %1752 = vmatmul.mubr.f32.gmra.mxu0 %v586
        %v1753 = vpop.f32.mrf.mxu0
        %v1754 = vadd.f32 0.0, %v1753
        %v1755 = vpop.f32.mrf.mxu0
        %1756 = vmatprep.mubr.f32.mxu0 0.0
        %1757 = vmatmul.mubr.f32.gmra.mxu0 %v1355
        %v1758 = vpop.f32.mrf.mxu0
        %v1759 = vadd.f32 0.0, %v1758
        %v1760 = vpop.f32.mrf.mxu0
        %1761 = vdwg.mxu0
        %v1762 = vadd.f32 %v1231, %v1644
        %v1763 = vadd.f32 %v1236, %v1649
        %v1764 = vadd.f32 %v1241, %v1654
        %v1765 = vadd.f32 %v1246, %v1659
        %v1766 = vadd.f32 %v1251, %v1664
        %v1767 = vadd.f32 %v1256, %v1669
        %v1768 = vadd.f32 %v1261, %v1674
        %v1769 = vadd.f32 %v1266, %v1679
        %v1770 = vadd.f32 %v1271, %v1684
        %v1771 = vadd.f32 %v1276, %v1689
        %v1772 = vadd.f32 %v1281, %v1694
        %v1773 = vadd.f32 %v1286, %v1699
        %v1774 = vadd.f32 %v1291, %v1704
        %v1775 = vadd.f32 %v1296, %v1709
        %v1776 = vadd.f32 %v1301, %v1714
        %v1777 = vadd.f32 %v1306, %v1719
        %v1778 = vadd.f32 %v1311, %v1724
        %v1779 = vadd.f32 %v1316, %v1729
        %v1780 = vadd.f32 %v1321, %v1734
        %v1781 = vadd.f32 %v1326, %v1739
        %v1782 = vadd.f32 %v1331, %v1744
        %v1783 = vadd.f32 %v1336, %v1749
        %v1784 = vadd.f32 %v1341, %v1754
        %v1785 = vadd.f32 %v1346, %v1759
        %s1786 = scalar_lea.vmem %s1, 96
        %v1787 = vld [vmem:[%s1786] sm:$0xff]
        %v1788 = vld [vmem:[%s1786 + $0x8] sm:$0xff]
        %v1789 = vld [vmem:[%s1786 + $0x10] sm:$0xff]
        %v1790 = vld [vmem:[%s1786 + $0x18] sm:$0xf]
        %v1792 = vsel %vm515, %v500, 0
        %v1795 = vsel %vm588, %v1790, 0
        %1797 = vmatprep.subr.mxu0 0.0
        %1798 = vmatpush1.msra.mxu0 0.0
        %1799 = vmatprep.subr.mxu0 0.0
        %1800 = vmatpush1.msra.mxu0 0.0
        %1801 = vmatprep.subr.mxu0 0.0
        %1802 = vmatpush1.msra.mxu0 0.0
        %1803 = vmatprep.subr.mxu0 0.0
        %1804 = vmatpush1.msra.mxu0 0.0
        %1805 = vmatprep.subr.mxu0 0.0
        %1806 = vmatpush1.msra.mxu0 0.0
        %1807 = vmatprep.subr.mxu0 0.0
        %1808 = vmatpush1.msra.mxu0 0.0
        %1809 = vmatprep.subr.mxu0 0.0
        %1810 = vmatpush1.msra.mxu0 0.0
        %1811 = vmatprep.subr.mxu0 0.0
        %1812 = vmatpush1.msra.mxu0 0.0
        %1813 = vmatprep.subr.mxu0 0.0
        %1814 = vmatpush1.msra.mxu0 0.0
        %1815 = vmatprep.subr.mxu0 0.0
        %1816 = vmatpush1.msra.mxu0 0.0
        %1817 = vmatprep.subr.mxu0 0.0
        %1818 = vmatpush1.msra.mxu0 0.0
        %1819 = vmatprep.subr.mxu0 0.0
        %1820 = vmatpush1.msra.mxu0 0.0
        %1821 = vmatprep.subr.mxu0 0.0
        %1822 = vmatpush1.msra.mxu0 %v1795
        %1823 = vmatprep.subr.mxu0 0.0
        %1824 = vmatpush1.msra.mxu0 %v1789
        %1825 = vmatprep.subr.mxu0 0.0
        %1826 = vmatpush1.msra.mxu0 %v1788
        %1827 = vmatprep.subr.mxu0 0.0
        %1828 = vmatpush1.msra.mxu0 %v1787
        %1829 = vmatprep.subr.mxu0 0.0
        %1830 = vmatpush2.msra.mxu0 0.0
        %1831 = vmatprep.subr.mxu0 0.0
        %1832 = vmatpush2.msra.mxu0 0.0
        %1833 = vmatprep.subr.mxu0 0.0
        %1834 = vmatpush2.msra.mxu0 0.0
        %1835 = vmatprep.subr.mxu0 0.0
        %1836 = vmatpush2.msra.mxu0 0.0
        %1837 = vmatprep.subr.mxu0 0.0
        %1838 = vmatpush2.msra.mxu0 0.0
        %1839 = vmatprep.subr.mxu0 0.0
        %1840 = vmatpush2.msra.mxu0 0.0
        %1841 = vmatprep.subr.mxu0 0.0
        %1842 = vmatpush2.msra.mxu0 0.0
        %1843 = vmatprep.subr.mxu0 0.0
        %1844 = vmatpush2.msra.mxu0 0.0
        %1845 = vmatprep.subr.mxu0 0.0
        %1846 = vmatpush2.msra.mxu0 0.0
        %1847 = vmatprep.subr.mxu0 0.0
        %1848 = vmatpush2.msra.mxu0 0.0
        %1849 = vmatprep.subr.mxu0 0.0
        %1850 = vmatpush2.msra.mxu0 0.0
        %1851 = vmatprep.subr.mxu0 0.0
        %1852 = vmatpush2.msra.mxu0 0.0
        %1853 = vmatprep.subr.mxu0 0.0
        %1854 = vmatpush2.msra.mxu0 0.0
        %1855 = vmatprep.subr.mxu0 0.0
        %1856 = vmatpush2.msra.mxu0 0.0
        %1857 = vmatprep.subr.mxu0 0.0
        %1858 = vmatpush2.msra.mxu0 0.0
        %1859 = vmatprep.subr.mxu0 0.0
        %1860 = vmatpush2.msra.mxu0 0.0
        %1861 = vmatprep.mubr.f32.mxu0 0.0
        %1862 = vmatmul.mubr.f32.gmra.mxu0 %v523
        %v1863 = vpop.f32.mrf.mxu0
        %v1864 = vadd.f32 0.0, %v1863
        %v1865 = vpop.f32.mrf.mxu0
        %1866 = vmatprep.mubr.f32.mxu0 0.0
        %1867 = vmatmul.mubr.f32.gmra.mxu0 %v526
        %v1868 = vpop.f32.mrf.mxu0
        %v1869 = vadd.f32 0.0, %v1868
        %v1870 = vpop.f32.mrf.mxu0
        %1871 = vmatprep.mubr.f32.mxu0 0.0
        %1872 = vmatmul.mubr.f32.gmra.mxu0 %v529
        %v1873 = vpop.f32.mrf.mxu0
        %v1874 = vadd.f32 0.0, %v1873
        %v1875 = vpop.f32.mrf.mxu0
        %1876 = vmatprep.mubr.f32.mxu0 0.0
        %1877 = vmatmul.mubr.f32.gmra.mxu0 %v532
        %v1878 = vpop.f32.mrf.mxu0
        %v1879 = vadd.f32 0.0, %v1878
        %v1880 = vpop.f32.mrf.mxu0
        %1881 = vmatprep.mubr.f32.mxu0 0.0
        %1882 = vmatmul.mubr.f32.gmra.mxu0 %v535
        %v1883 = vpop.f32.mrf.mxu0
        %v1884 = vadd.f32 0.0, %v1883
        %v1885 = vpop.f32.mrf.mxu0
        %1886 = vmatprep.mubr.f32.mxu0 0.0
        %1887 = vmatmul.mubr.f32.gmra.mxu0 %v538
        %v1888 = vpop.f32.mrf.mxu0
        %v1889 = vadd.f32 0.0, %v1888
        %v1890 = vpop.f32.mrf.mxu0
        %1891 = vmatprep.mubr.f32.mxu0 0.0
        %1892 = vmatmul.mubr.f32.gmra.mxu0 %v541
        %v1893 = vpop.f32.mrf.mxu0
        %v1894 = vadd.f32 0.0, %v1893
        %v1895 = vpop.f32.mrf.mxu0
        %1896 = vmatprep.mubr.f32.mxu0 0.0
        %1897 = vmatmul.mubr.f32.gmra.mxu0 %v544
        %v1898 = vpop.f32.mrf.mxu0
        %v1899 = vadd.f32 0.0, %v1898
        %v1900 = vpop.f32.mrf.mxu0
        %1901 = vmatprep.mubr.f32.mxu0 0.0
        %1902 = vmatmul.mubr.f32.gmra.mxu0 %v547
        %v1903 = vpop.f32.mrf.mxu0
        %v1904 = vadd.f32 0.0, %v1903
        %v1905 = vpop.f32.mrf.mxu0
        %1906 = vmatprep.mubr.f32.mxu0 0.0
        %1907 = vmatmul.mubr.f32.gmra.mxu0 %v550
        %v1908 = vpop.f32.mrf.mxu0
        %v1909 = vadd.f32 0.0, %v1908
        %v1910 = vpop.f32.mrf.mxu0
        %1911 = vmatprep.mubr.f32.mxu0 0.0
        %1912 = vmatmul.mubr.f32.gmra.mxu0 %v553
        %v1913 = vpop.f32.mrf.mxu0
        %v1914 = vadd.f32 0.0, %v1913
        %v1915 = vpop.f32.mrf.mxu0
        %1916 = vmatprep.mubr.f32.mxu0 0.0
        %1917 = vmatmul.mubr.f32.gmra.mxu0 %v556
        %v1918 = vpop.f32.mrf.mxu0
        %v1919 = vadd.f32 0.0, %v1918
        %v1920 = vpop.f32.mrf.mxu0
        %1921 = vmatprep.mubr.f32.mxu0 0.0
        %1922 = vmatmul.mubr.f32.gmra.mxu0 %v559
        %v1923 = vpop.f32.mrf.mxu0
        %v1924 = vadd.f32 0.0, %v1923
        %v1925 = vpop.f32.mrf.mxu0
        %1926 = vmatprep.mubr.f32.mxu0 0.0
        %1927 = vmatmul.mubr.f32.gmra.mxu0 %v562
        %v1928 = vpop.f32.mrf.mxu0
        %v1929 = vadd.f32 0.0, %v1928
        %v1930 = vpop.f32.mrf.mxu0
        %1931 = vmatprep.mubr.f32.mxu0 0.0
        %1932 = vmatmul.mubr.f32.gmra.mxu0 %v565
        %v1933 = vpop.f32.mrf.mxu0
        %v1934 = vadd.f32 0.0, %v1933
        %v1935 = vpop.f32.mrf.mxu0
        %1936 = vmatprep.mubr.f32.mxu0 0.0
        %1937 = vmatmul.mubr.f32.gmra.mxu0 %v568
        %v1938 = vpop.f32.mrf.mxu0
        %v1939 = vadd.f32 0.0, %v1938
        %v1940 = vpop.f32.mrf.mxu0
        %1941 = vmatprep.mubr.f32.mxu0 0.0
        %1942 = vmatmul.mubr.f32.gmra.mxu0 %v571
        %v1943 = vpop.f32.mrf.mxu0
        %v1944 = vadd.f32 0.0, %v1943
        %v1945 = vpop.f32.mrf.mxu0
        %1946 = vmatprep.mubr.f32.mxu0 0.0
        %1947 = vmatmul.mubr.f32.gmra.mxu0 %v574
        %v1948 = vpop.f32.mrf.mxu0
        %v1949 = vadd.f32 0.0, %v1948
        %v1950 = vpop.f32.mrf.mxu0
        %1951 = vmatprep.mubr.f32.mxu0 0.0
        %1952 = vmatmul.mubr.f32.gmra.mxu0 %v577
        %v1953 = vpop.f32.mrf.mxu0
        %v1954 = vadd.f32 0.0, %v1953
        %v1955 = vpop.f32.mrf.mxu0
        %1956 = vmatprep.mubr.f32.mxu0 0.0
        %1957 = vmatmul.mubr.f32.gmra.mxu0 %v580
        %v1958 = vpop.f32.mrf.mxu0
        %v1959 = vadd.f32 0.0, %v1958
        %v1960 = vpop.f32.mrf.mxu0
        %1961 = vmatprep.mubr.f32.mxu0 0.0
        %1962 = vmatmul.mubr.f32.gmra.mxu0 %v583
        %v1963 = vpop.f32.mrf.mxu0
        %v1964 = vadd.f32 0.0, %v1963
        %v1965 = vpop.f32.mrf.mxu0
        %1966 = vmatprep.mubr.f32.mxu0 0.0
        %1967 = vmatmul.mubr.f32.gmra.mxu0 %v586
        %v1968 = vpop.f32.mrf.mxu0
        %v1969 = vadd.f32 0.0, %v1968
        %v1970 = vpop.f32.mrf.mxu0
        %1971 = vmatprep.mubr.f32.mxu0 0.0
        %1972 = vmatmul.mubr.f32.gmra.mxu0 %v1355
        %v1973 = vpop.f32.mrf.mxu0
        %v1974 = vadd.f32 0.0, %v1973
        %v1975 = vpop.f32.mrf.mxu0
        %1976 = vmatprep.mubr.f32.mxu0 0.0
        %1977 = vmatmul.mubr.f32.gmra.mxu0 %v1792
        %v1978 = vpop.f32.mrf.mxu0
        %v1979 = vadd.f32 0.0, %v1978
        %v1980 = vpop.f32.mrf.mxu0
        %1981 = vdwg.mxu0
        %v1982 = vadd.f32 %v1545, %v1864
        %v1983 = vadd.f32 %v1546, %v1869
        %v1984 = vadd.f32 %v1547, %v1874
        %v1985 = vadd.f32 %v1548, %v1879
        %v1986 = vadd.f32 %v1549, %v1884
        %v1987 = vadd.f32 %v1550, %v1889
        %v1988 = vadd.f32 %v1551, %v1894
        %v1989 = vadd.f32 %v1552, %v1899
        %v1990 = vadd.f32 %v1553, %v1904
        %v1991 = vadd.f32 %v1554, %v1909
        %v1992 = vadd.f32 %v1555, %v1914
        %v1993 = vadd.f32 %v1556, %v1919
        %v1994 = vadd.f32 %v1557, %v1924
        %v1995 = vadd.f32 %v1558, %v1929
        %v1996 = vadd.f32 %v1559, %v1934
        %v1997 = vadd.f32 %v1560, %v1939
        %v1998 = vadd.f32 %v1561, %v1944
        %v1999 = vadd.f32 %v1562, %v1949
        %v2000 = vadd.f32 %v1563, %v1954
        %v2001 = vadd.f32 %v1564, %v1959
        %v2002 = vadd.f32 %v1565, %v1964
        %v2003 = vadd.f32 %v1566, %v1969
        %v2004 = vadd.f32 %v1567, %v1974
        %v2005 = vadd.f32 %v1568, %v1979
        %s2006 = scalar_lea.vmem %s2, 96
        %v2007 = vld [vmem:[%s2006] sm:$0xff]
        %v2008 = vld [vmem:[%s2006 + $0x8] sm:$0xff]
        %v2009 = vld [vmem:[%s2006 + $0x10] sm:$0xff]
        %v2010 = vld [vmem:[%s2006 + $0x18] sm:$0xf]
        %v2012 = vsel %vm588, %v2010, 0
        %2014 = vmatprep.subr.mxu0 0.0
        %2015 = vmatpush1.msra.mxu0 0.0
        %2016 = vmatprep.subr.mxu0 0.0
        %2017 = vmatpush1.msra.mxu0 0.0
        %2018 = vmatprep.subr.mxu0 0.0
        %2019 = vmatpush1.msra.mxu0 0.0
        %2020 = vmatprep.subr.mxu0 0.0
        %2021 = vmatpush1.msra.mxu0 0.0
        %2022 = vmatprep.subr.mxu0 0.0
        %2023 = vmatpush1.msra.mxu0 0.0
        %2024 = vmatprep.subr.mxu0 0.0
        %2025 = vmatpush1.msra.mxu0 0.0
        %2026 = vmatprep.subr.mxu0 0.0
        %2027 = vmatpush1.msra.mxu0 0.0
        %2028 = vmatprep.subr.mxu0 0.0
        %2029 = vmatpush1.msra.mxu0 0.0
        %2030 = vmatprep.subr.mxu0 0.0
        %2031 = vmatpush1.msra.mxu0 0.0
        %2032 = vmatprep.subr.mxu0 0.0
        %2033 = vmatpush1.msra.mxu0 0.0
        %2034 = vmatprep.subr.mxu0 0.0
        %2035 = vmatpush1.msra.mxu0 0.0
        %2036 = vmatprep.subr.mxu0 0.0
        %2037 = vmatpush1.msra.mxu0 0.0
        %2038 = vmatprep.subr.mxu0 0.0
        %2039 = vmatpush1.msra.mxu0 %v2012
        %2040 = vmatprep.subr.mxu0 0.0
        %2041 = vmatpush1.msra.mxu0 %v2009
        %2042 = vmatprep.subr.mxu0 0.0
        %2043 = vmatpush1.msra.mxu0 %v2008
        %2044 = vmatprep.subr.mxu0 0.0
        %2045 = vmatpush1.msra.mxu0 %v2007
        %2046 = vmatprep.subr.mxu0 0.0
        %2047 = vmatpush2.msra.mxu0 0.0
        %2048 = vmatprep.subr.mxu0 0.0
        %2049 = vmatpush2.msra.mxu0 0.0
        %2050 = vmatprep.subr.mxu0 0.0
        %2051 = vmatpush2.msra.mxu0 0.0
        %2052 = vmatprep.subr.mxu0 0.0
        %2053 = vmatpush2.msra.mxu0 0.0
        %2054 = vmatprep.subr.mxu0 0.0
        %2055 = vmatpush2.msra.mxu0 0.0
        %2056 = vmatprep.subr.mxu0 0.0
        %2057 = vmatpush2.msra.mxu0 0.0
        %2058 = vmatprep.subr.mxu0 0.0
        %2059 = vmatpush2.msra.mxu0 0.0
        %2060 = vmatprep.subr.mxu0 0.0
        %2061 = vmatpush2.msra.mxu0 0.0
        %2062 = vmatprep.subr.mxu0 0.0
        %2063 = vmatpush2.msra.mxu0 0.0
        %2064 = vmatprep.subr.mxu0 0.0
        %2065 = vmatpush2.msra.mxu0 0.0
        %2066 = vmatprep.subr.mxu0 0.0
        %2067 = vmatpush2.msra.mxu0 0.0
        %2068 = vmatprep.subr.mxu0 0.0
        %2069 = vmatpush2.msra.mxu0 0.0
        %2070 = vmatprep.subr.mxu0 0.0
        %2071 = vmatpush2.msra.mxu0 0.0
        %2072 = vmatprep.subr.mxu0 0.0
        %2073 = vmatpush2.msra.mxu0 0.0
        %2074 = vmatprep.subr.mxu0 0.0
        %2075 = vmatpush2.msra.mxu0 0.0
        %2076 = vmatprep.subr.mxu0 0.0
        %2077 = vmatpush2.msra.mxu0 0.0
        %2078 = vmatprep.mubr.f32.mxu0 0.0
        %2079 = vmatmul.mubr.f32.gmra.mxu0 %v523
        %v2080 = vpop.f32.mrf.mxu0
        %v2081 = vadd.f32 0.0, %v2080
        %v2082 = vpop.f32.mrf.mxu0
        %2083 = vmatprep.mubr.f32.mxu0 0.0
        %2084 = vmatmul.mubr.f32.gmra.mxu0 %v526
        %v2085 = vpop.f32.mrf.mxu0
        %v2086 = vadd.f32 0.0, %v2085
        %v2087 = vpop.f32.mrf.mxu0
        %2088 = vmatprep.mubr.f32.mxu0 0.0
        %2089 = vmatmul.mubr.f32.gmra.mxu0 %v529
        %v2090 = vpop.f32.mrf.mxu0
        %v2091 = vadd.f32 0.0, %v2090
        %v2092 = vpop.f32.mrf.mxu0
        %2093 = vmatprep.mubr.f32.mxu0 0.0
        %2094 = vmatmul.mubr.f32.gmra.mxu0 %v532
        %v2095 = vpop.f32.mrf.mxu0
        %v2096 = vadd.f32 0.0, %v2095
        %v2097 = vpop.f32.mrf.mxu0
        %2098 = vmatprep.mubr.f32.mxu0 0.0
        %2099 = vmatmul.mubr.f32.gmra.mxu0 %v535
        %v2100 = vpop.f32.mrf.mxu0
        %v2101 = vadd.f32 0.0, %v2100
        %v2102 = vpop.f32.mrf.mxu0
        %2103 = vmatprep.mubr.f32.mxu0 0.0
        %2104 = vmatmul.mubr.f32.gmra.mxu0 %v538
        %v2105 = vpop.f32.mrf.mxu0
        %v2106 = vadd.f32 0.0, %v2105
        %v2107 = vpop.f32.mrf.mxu0
        %2108 = vmatprep.mubr.f32.mxu0 0.0
        %2109 = vmatmul.mubr.f32.gmra.mxu0 %v541
        %v2110 = vpop.f32.mrf.mxu0
        %v2111 = vadd.f32 0.0, %v2110
        %v2112 = vpop.f32.mrf.mxu0
        %2113 = vmatprep.mubr.f32.mxu0 0.0
        %2114 = vmatmul.mubr.f32.gmra.mxu0 %v544
        %v2115 = vpop.f32.mrf.mxu0
        %v2116 = vadd.f32 0.0, %v2115
        %v2117 = vpop.f32.mrf.mxu0
        %2118 = vmatprep.mubr.f32.mxu0 0.0
        %2119 = vmatmul.mubr.f32.gmra.mxu0 %v547
        %v2120 = vpop.f32.mrf.mxu0
        %v2121 = vadd.f32 0.0, %v2120
        %v2122 = vpop.f32.mrf.mxu0
        %2123 = vmatprep.mubr.f32.mxu0 0.0
        %2124 = vmatmul.mubr.f32.gmra.mxu0 %v550
        %v2125 = vpop.f32.mrf.mxu0
        %v2126 = vadd.f32 0.0, %v2125
        %v2127 = vpop.f32.mrf.mxu0
        %2128 = vmatprep.mubr.f32.mxu0 0.0
        %2129 = vmatmul.mubr.f32.gmra.mxu0 %v553
        %v2130 = vpop.f32.mrf.mxu0
        %v2131 = vadd.f32 0.0, %v2130
        %v2132 = vpop.f32.mrf.mxu0
        %2133 = vmatprep.mubr.f32.mxu0 0.0
        %2134 = vmatmul.mubr.f32.gmra.mxu0 %v556
        %v2135 = vpop.f32.mrf.mxu0
        %v2136 = vadd.f32 0.0, %v2135
        %v2137 = vpop.f32.mrf.mxu0
        %2138 = vmatprep.mubr.f32.mxu0 0.0
        %2139 = vmatmul.mubr.f32.gmra.mxu0 %v559
        %v2140 = vpop.f32.mrf.mxu0
        %v2141 = vadd.f32 0.0, %v2140
        %v2142 = vpop.f32.mrf.mxu0
        %2143 = vmatprep.mubr.f32.mxu0 0.0
        %2144 = vmatmul.mubr.f32.gmra.mxu0 %v562
        %v2145 = vpop.f32.mrf.mxu0
        %v2146 = vadd.f32 0.0, %v2145
        %v2147 = vpop.f32.mrf.mxu0
        %2148 = vmatprep.mubr.f32.mxu0 0.0
        %2149 = vmatmul.mubr.f32.gmra.mxu0 %v565
        %v2150 = vpop.f32.mrf.mxu0
        %v2151 = vadd.f32 0.0, %v2150
        %v2152 = vpop.f32.mrf.mxu0
        %2153 = vmatprep.mubr.f32.mxu0 0.0
        %2154 = vmatmul.mubr.f32.gmra.mxu0 %v568
        %v2155 = vpop.f32.mrf.mxu0
        %v2156 = vadd.f32 0.0, %v2155
        %v2157 = vpop.f32.mrf.mxu0
        %2158 = vmatprep.mubr.f32.mxu0 0.0
        %2159 = vmatmul.mubr.f32.gmra.mxu0 %v571
        %v2160 = vpop.f32.mrf.mxu0
        %v2161 = vadd.f32 0.0, %v2160
        %v2162 = vpop.f32.mrf.mxu0
        %2163 = vmatprep.mubr.f32.mxu0 0.0
        %2164 = vmatmul.mubr.f32.gmra.mxu0 %v574
        %v2165 = vpop.f32.mrf.mxu0
        %v2166 = vadd.f32 0.0, %v2165
        %v2167 = vpop.f32.mrf.mxu0
        %2168 = vmatprep.mubr.f32.mxu0 0.0
        %2169 = vmatmul.mubr.f32.gmra.mxu0 %v577
        %v2170 = vpop.f32.mrf.mxu0
        %v2171 = vadd.f32 0.0, %v2170
        %v2172 = vpop.f32.mrf.mxu0
        %2173 = vmatprep.mubr.f32.mxu0 0.0
        %2174 = vmatmul.mubr.f32.gmra.mxu0 %v580
        %v2175 = vpop.f32.mrf.mxu0
        %v2176 = vadd.f32 0.0, %v2175
        %v2177 = vpop.f32.mrf.mxu0
        %2178 = vmatprep.mubr.f32.mxu0 0.0
        %2179 = vmatmul.mubr.f32.gmra.mxu0 %v583
        %v2180 = vpop.f32.mrf.mxu0
        %v2181 = vadd.f32 0.0, %v2180
        %v2182 = vpop.f32.mrf.mxu0
        %2183 = vmatprep.mubr.f32.mxu0 0.0
        %2184 = vmatmul.mubr.f32.gmra.mxu0 %v586
        %v2185 = vpop.f32.mrf.mxu0
        %v2186 = vadd.f32 0.0, %v2185
        %v2187 = vpop.f32.mrf.mxu0
        %2188 = vmatprep.mubr.f32.mxu0 0.0
        %2189 = vmatmul.mubr.f32.gmra.mxu0 %v1355
        %v2190 = vpop.f32.mrf.mxu0
        %v2191 = vadd.f32 0.0, %v2190
        %v2192 = vpop.f32.mrf.mxu0
        %2193 = vmatprep.mubr.f32.mxu0 0.0
        %2194 = vmatmul.mubr.f32.gmra.mxu0 %v1792
        %v2195 = vpop.f32.mrf.mxu0
        %v2196 = vadd.f32 0.0, %v2195
        %v2197 = vpop.f32.mrf.mxu0
        %2198 = vdwg.mxu0
        %v2199 = vadd.f32 %v1762, %v2081
        %v2200 = vadd.f32 %v1763, %v2086
        %v2201 = vadd.f32 %v1764, %v2091
        %v2202 = vadd.f32 %v1765, %v2096
        %v2203 = vadd.f32 %v1766, %v2101
        %v2204 = vadd.f32 %v1767, %v2106
        %v2205 = vadd.f32 %v1768, %v2111
        %v2206 = vadd.f32 %v1769, %v2116
        %v2207 = vadd.f32 %v1770, %v2121
        %v2208 = vadd.f32 %v1771, %v2126
        %v2209 = vadd.f32 %v1772, %v2131
        %v2210 = vadd.f32 %v1773, %v2136
        %v2211 = vadd.f32 %v1774, %v2141
        %v2212 = vadd.f32 %v1775, %v2146
        %v2213 = vadd.f32 %v1776, %v2151
        %v2214 = vadd.f32 %v1777, %v2156
        %v2215 = vadd.f32 %v1778, %v2161
        %v2216 = vadd.f32 %v1779, %v2166
        %v2217 = vadd.f32 %v1780, %v2171
        %v2218 = vadd.f32 %v1781, %v2176
        %v2219 = vadd.f32 %v1782, %v2181
        %v2220 = vadd.f32 %v1783, %v2186
        %v2221 = vadd.f32 %v1784, %v2191
        %v2222 = vadd.f32 %v1785, %v2196
        %s2223 = scalar_lea.vmem %s1, 128
        %v2224 = vld [vmem:[%s2223] sm:$0xff]
        %v2225 = vld [vmem:[%s2223 + $0x8] sm:$0xff]
        %v2226 = vld [vmem:[%s2223 + $0x10] sm:$0xff]
        %v2227 = vld [vmem:[%s2223 + $0x18] sm:$0xf]
        %v2229 = vsel %vm515, %v501, 0
        %v2232 = vsel %vm588, %v2227, 0
        %2234 = vmatprep.subr.mxu0 0.0
        %2235 = vmatpush1.msra.mxu0 0.0
        %2236 = vmatprep.subr.mxu0 0.0
        %2237 = vmatpush1.msra.mxu0 0.0
        %2238 = vmatprep.subr.mxu0 0.0
        %2239 = vmatpush1.msra.mxu0 0.0
        %2240 = vmatprep.subr.mxu0 0.0
        %2241 = vmatpush1.msra.mxu0 0.0
        %2242 = vmatprep.subr.mxu0 0.0
        %2243 = vmatpush1.msra.mxu0 0.0
        %2244 = vmatprep.subr.mxu0 0.0
        %2245 = vmatpush1.msra.mxu0 0.0
        %2246 = vmatprep.subr.mxu0 0.0
        %2247 = vmatpush1.msra.mxu0 0.0
        %2248 = vmatprep.subr.mxu0 0.0
        %2249 = vmatpush1.msra.mxu0 0.0
        %2250 = vmatprep.subr.mxu0 0.0
        %2251 = vmatpush1.msra.mxu0 0.0
        %2252 = vmatprep.subr.mxu0 0.0
        %2253 = vmatpush1.msra.mxu0 0.0
        %2254 = vmatprep.subr.mxu0 0.0
        %2255 = vmatpush1.msra.mxu0 0.0
        %2256 = vmatprep.subr.mxu0 0.0
        %2257 = vmatpush1.msra.mxu0 0.0
        %2258 = vmatprep.subr.mxu0 0.0
        %2259 = vmatpush1.msra.mxu0 %v2232
        %2260 = vmatprep.subr.mxu0 0.0
        %2261 = vmatpush1.msra.mxu0 %v2226
        %2262 = vmatprep.subr.mxu0 0.0
        %2263 = vmatpush1.msra.mxu0 %v2225
        %2264 = vmatprep.subr.mxu0 0.0
        %2265 = vmatpush1.msra.mxu0 %v2224
        %2266 = vmatprep.subr.mxu0 0.0
        %2267 = vmatpush2.msra.mxu0 0.0
        %2268 = vmatprep.subr.mxu0 0.0
        %2269 = vmatpush2.msra.mxu0 0.0
        %2270 = vmatprep.subr.mxu0 0.0
        %2271 = vmatpush2.msra.mxu0 0.0
        %2272 = vmatprep.subr.mxu0 0.0
        %2273 = vmatpush2.msra.mxu0 0.0
        %2274 = vmatprep.subr.mxu0 0.0
        %2275 = vmatpush2.msra.mxu0 0.0
        %2276 = vmatprep.subr.mxu0 0.0
        %2277 = vmatpush2.msra.mxu0 0.0
        %2278 = vmatprep.subr.mxu0 0.0
        %2279 = vmatpush2.msra.mxu0 0.0
        %2280 = vmatprep.subr.mxu0 0.0
        %2281 = vmatpush2.msra.mxu0 0.0
        %2282 = vmatprep.subr.mxu0 0.0
        %2283 = vmatpush2.msra.mxu0 0.0
        %2284 = vmatprep.subr.mxu0 0.0
        %2285 = vmatpush2.msra.mxu0 0.0
        %2286 = vmatprep.subr.mxu0 0.0
        %2287 = vmatpush2.msra.mxu0 0.0
        %2288 = vmatprep.subr.mxu0 0.0
        %2289 = vmatpush2.msra.mxu0 0.0
        %2290 = vmatprep.subr.mxu0 0.0
        %2291 = vmatpush2.msra.mxu0 0.0
        %2292 = vmatprep.subr.mxu0 0.0
        %2293 = vmatpush2.msra.mxu0 0.0
        %2294 = vmatprep.subr.mxu0 0.0
        %2295 = vmatpush2.msra.mxu0 0.0
        %2296 = vmatprep.subr.mxu0 0.0
        %2297 = vmatpush2.msra.mxu0 0.0
        %2298 = vmatprep.mubr.f32.mxu0 0.0
        %2299 = vmatmul.mubr.f32.gmra.mxu0 %v526
        %v2300 = vpop.f32.mrf.mxu0
        %v2301 = vadd.f32 0.0, %v2300
        %v2302 = vpop.f32.mrf.mxu0
        %2303 = vmatprep.mubr.f32.mxu0 0.0
        %2304 = vmatmul.mubr.f32.gmra.mxu0 %v529
        %v2305 = vpop.f32.mrf.mxu0
        %v2306 = vadd.f32 0.0, %v2305
        %v2307 = vpop.f32.mrf.mxu0
        %2308 = vmatprep.mubr.f32.mxu0 0.0
        %2309 = vmatmul.mubr.f32.gmra.mxu0 %v532
        %v2310 = vpop.f32.mrf.mxu0
        %v2311 = vadd.f32 0.0, %v2310
        %v2312 = vpop.f32.mrf.mxu0
        %2313 = vmatprep.mubr.f32.mxu0 0.0
        %2314 = vmatmul.mubr.f32.gmra.mxu0 %v535
        %v2315 = vpop.f32.mrf.mxu0
        %v2316 = vadd.f32 0.0, %v2315
        %v2317 = vpop.f32.mrf.mxu0
        %2318 = vmatprep.mubr.f32.mxu0 0.0
        %2319 = vmatmul.mubr.f32.gmra.mxu0 %v538
        %v2320 = vpop.f32.mrf.mxu0
        %v2321 = vadd.f32 0.0, %v2320
        %v2322 = vpop.f32.mrf.mxu0
        %2323 = vmatprep.mubr.f32.mxu0 0.0
        %2324 = vmatmul.mubr.f32.gmra.mxu0 %v541
        %v2325 = vpop.f32.mrf.mxu0
        %v2326 = vadd.f32 0.0, %v2325
        %v2327 = vpop.f32.mrf.mxu0
        %2328 = vmatprep.mubr.f32.mxu0 0.0
        %2329 = vmatmul.mubr.f32.gmra.mxu0 %v544
        %v2330 = vpop.f32.mrf.mxu0
        %v2331 = vadd.f32 0.0, %v2330
        %v2332 = vpop.f32.mrf.mxu0
        %2333 = vmatprep.mubr.f32.mxu0 0.0
        %2334 = vmatmul.mubr.f32.gmra.mxu0 %v547
        %v2335 = vpop.f32.mrf.mxu0
        %v2336 = vadd.f32 0.0, %v2335
        %v2337 = vpop.f32.mrf.mxu0
        %2338 = vmatprep.mubr.f32.mxu0 0.0
        %2339 = vmatmul.mubr.f32.gmra.mxu0 %v550
        %v2340 = vpop.f32.mrf.mxu0
        %v2341 = vadd.f32 0.0, %v2340
        %v2342 = vpop.f32.mrf.mxu0
        %2343 = vmatprep.mubr.f32.mxu0 0.0
        %2344 = vmatmul.mubr.f32.gmra.mxu0 %v553
        %v2345 = vpop.f32.mrf.mxu0
        %v2346 = vadd.f32 0.0, %v2345
        %v2347 = vpop.f32.mrf.mxu0
        %2348 = vmatprep.mubr.f32.mxu0 0.0
        %2349 = vmatmul.mubr.f32.gmra.mxu0 %v556
        %v2350 = vpop.f32.mrf.mxu0
        %v2351 = vadd.f32 0.0, %v2350
        %v2352 = vpop.f32.mrf.mxu0
        %2353 = vmatprep.mubr.f32.mxu0 0.0
        %2354 = vmatmul.mubr.f32.gmra.mxu0 %v559
        %v2355 = vpop.f32.mrf.mxu0
        %v2356 = vadd.f32 0.0, %v2355
        %v2357 = vpop.f32.mrf.mxu0
        %2358 = vmatprep.mubr.f32.mxu0 0.0
        %2359 = vmatmul.mubr.f32.gmra.mxu0 %v562
        %v2360 = vpop.f32.mrf.mxu0
        %v2361 = vadd.f32 0.0, %v2360
        %v2362 = vpop.f32.mrf.mxu0
        %2363 = vmatprep.mubr.f32.mxu0 0.0
        %2364 = vmatmul.mubr.f32.gmra.mxu0 %v565
        %v2365 = vpop.f32.mrf.mxu0
        %v2366 = vadd.f32 0.0, %v2365
        %v2367 = vpop.f32.mrf.mxu0
        %2368 = vmatprep.mubr.f32.mxu0 0.0
        %2369 = vmatmul.mubr.f32.gmra.mxu0 %v568
        %v2370 = vpop.f32.mrf.mxu0
        %v2371 = vadd.f32 0.0, %v2370
        %v2372 = vpop.f32.mrf.mxu0
        %2373 = vmatprep.mubr.f32.mxu0 0.0
        %2374 = vmatmul.mubr.f32.gmra.mxu0 %v571
        %v2375 = vpop.f32.mrf.mxu0
        %v2376 = vadd.f32 0.0, %v2375
        %v2377 = vpop.f32.mrf.mxu0
        %2378 = vmatprep.mubr.f32.mxu0 0.0
        %2379 = vmatmul.mubr.f32.gmra.mxu0 %v574
        %v2380 = vpop.f32.mrf.mxu0
        %v2381 = vadd.f32 0.0, %v2380
        %v2382 = vpop.f32.mrf.mxu0
        %2383 = vmatprep.mubr.f32.mxu0 0.0
        %2384 = vmatmul.mubr.f32.gmra.mxu0 %v577
        %v2385 = vpop.f32.mrf.mxu0
        %v2386 = vadd.f32 0.0, %v2385
        %v2387 = vpop.f32.mrf.mxu0
        %2388 = vmatprep.mubr.f32.mxu0 0.0
        %2389 = vmatmul.mubr.f32.gmra.mxu0 %v580
        %v2390 = vpop.f32.mrf.mxu0
        %v2391 = vadd.f32 0.0, %v2390
        %v2392 = vpop.f32.mrf.mxu0
        %2393 = vmatprep.mubr.f32.mxu0 0.0
        %2394 = vmatmul.mubr.f32.gmra.mxu0 %v583
        %v2395 = vpop.f32.mrf.mxu0
        %v2396 = vadd.f32 0.0, %v2395
        %v2397 = vpop.f32.mrf.mxu0
        %2398 = vmatprep.mubr.f32.mxu0 0.0
        %2399 = vmatmul.mubr.f32.gmra.mxu0 %v586
        %v2400 = vpop.f32.mrf.mxu0
        %v2401 = vadd.f32 0.0, %v2400
        %v2402 = vpop.f32.mrf.mxu0
        %2403 = vmatprep.mubr.f32.mxu0 0.0
        %2404 = vmatmul.mubr.f32.gmra.mxu0 %v1355
        %v2405 = vpop.f32.mrf.mxu0
        %v2406 = vadd.f32 0.0, %v2405
        %v2407 = vpop.f32.mrf.mxu0
        %2408 = vmatprep.mubr.f32.mxu0 0.0
        %2409 = vmatmul.mubr.f32.gmra.mxu0 %v1792
        %v2410 = vpop.f32.mrf.mxu0
        %v2411 = vadd.f32 0.0, %v2410
        %v2412 = vpop.f32.mrf.mxu0
        %2413 = vmatprep.mubr.f32.mxu0 0.0
        %2414 = vmatmul.mubr.f32.gmra.mxu0 %v2229
        %v2415 = vpop.f32.mrf.mxu0
        %v2416 = vadd.f32 0.0, %v2415
        %v2417 = vpop.f32.mrf.mxu0
        %2418 = vdwg.mxu0
        %v2419 = vadd.f32 %v1982, %v2301
        %v2420 = vadd.f32 %v1983, %v2306
        %v2421 = vadd.f32 %v1984, %v2311
        %v2422 = vadd.f32 %v1985, %v2316
        %v2423 = vadd.f32 %v1986, %v2321
        %v2424 = vadd.f32 %v1987, %v2326
        %v2425 = vadd.f32 %v1988, %v2331
        %v2426 = vadd.f32 %v1989, %v2336
        %v2427 = vadd.f32 %v1990, %v2341
        %v2428 = vadd.f32 %v1991, %v2346
        %v2429 = vadd.f32 %v1992, %v2351
        %v2430 = vadd.f32 %v1993, %v2356
        %v2431 = vadd.f32 %v1994, %v2361
        %v2432 = vadd.f32 %v1995, %v2366
        %v2433 = vadd.f32 %v1996, %v2371
        %v2434 = vadd.f32 %v1997, %v2376
        %v2435 = vadd.f32 %v1998, %v2381
        %v2436 = vadd.f32 %v1999, %v2386
        %v2437 = vadd.f32 %v2000, %v2391
        %v2438 = vadd.f32 %v2001, %v2396
        %v2439 = vadd.f32 %v2002, %v2401
        %v2440 = vadd.f32 %v2003, %v2406
        %v2441 = vadd.f32 %v2004, %v2411
        %v2442 = vadd.f32 %v2005, %v2416
        %s2443 = scalar_lea.vmem %s2, 128
        %v2444 = vld [vmem:[%s2443] sm:$0xff]
        %v2445 = vld [vmem:[%s2443 + $0x8] sm:$0xff]
        %v2446 = vld [vmem:[%s2443 + $0x10] sm:$0xff]
        %v2447 = vld [vmem:[%s2443 + $0x18] sm:$0xf]
        %v2449 = vsel %vm588, %v2447, 0
        %2451 = vmatprep.subr.mxu0 0.0
        %2452 = vmatpush1.msra.mxu0 0.0
        %2453 = vmatprep.subr.mxu0 0.0
        %2454 = vmatpush1.msra.mxu0 0.0
        %2455 = vmatprep.subr.mxu0 0.0
        %2456 = vmatpush1.msra.mxu0 0.0
        %2457 = vmatprep.subr.mxu0 0.0
        %2458 = vmatpush1.msra.mxu0 0.0
        %2459 = vmatprep.subr.mxu0 0.0
        %2460 = vmatpush1.msra.mxu0 0.0
        %2461 = vmatprep.subr.mxu0 0.0
        %2462 = vmatpush1.msra.mxu0 0.0
        %2463 = vmatprep.subr.mxu0 0.0
        %2464 = vmatpush1.msra.mxu0 0.0
        %2465 = vmatprep.subr.mxu0 0.0
        %2466 = vmatpush1.msra.mxu0 0.0
        %2467 = vmatprep.subr.mxu0 0.0
        %2468 = vmatpush1.msra.mxu0 0.0
        %2469 = vmatprep.subr.mxu0 0.0
        %2470 = vmatpush1.msra.mxu0 0.0
        %2471 = vmatprep.subr.mxu0 0.0
        %2472 = vmatpush1.msra.mxu0 0.0
        %2473 = vmatprep.subr.mxu0 0.0
        %2474 = vmatpush1.msra.mxu0 0.0
        %2475 = vmatprep.subr.mxu0 0.0
        %2476 = vmatpush1.msra.mxu0 %v2449
        %2477 = vmatprep.subr.mxu0 0.0
        %2478 = vmatpush1.msra.mxu0 %v2446
        %2479 = vmatprep.subr.mxu0 0.0
        %2480 = vmatpush1.msra.mxu0 %v2445
        %2481 = vmatprep.subr.mxu0 0.0
        %2482 = vmatpush1.msra.mxu0 %v2444
        %2483 = vmatprep.subr.mxu0 0.0
        %2484 = vmatpush2.msra.mxu0 0.0
        %2485 = vmatprep.subr.mxu0 0.0
        %2486 = vmatpush2.msra.mxu0 0.0
        %2487 = vmatprep.subr.mxu0 0.0
        %2488 = vmatpush2.msra.mxu0 0.0
        %2489 = vmatprep.subr.mxu0 0.0
        %2490 = vmatpush2.msra.mxu0 0.0
        %2491 = vmatprep.subr.mxu0 0.0
        %2492 = vmatpush2.msra.mxu0 0.0
        %2493 = vmatprep.subr.mxu0 0.0
        %2494 = vmatpush2.msra.mxu0 0.0
        %2495 = vmatprep.subr.mxu0 0.0
        %2496 = vmatpush2.msra.mxu0 0.0
        %2497 = vmatprep.subr.mxu0 0.0
        %2498 = vmatpush2.msra.mxu0 0.0
        %2499 = vmatprep.subr.mxu0 0.0
        %2500 = vmatpush2.msra.mxu0 0.0
        %2501 = vmatprep.subr.mxu0 0.0
        %2502 = vmatpush2.msra.mxu0 0.0
        %2503 = vmatprep.subr.mxu0 0.0
        %2504 = vmatpush2.msra.mxu0 0.0
        %2505 = vmatprep.subr.mxu0 0.0
        %2506 = vmatpush2.msra.mxu0 0.0
        %2507 = vmatprep.subr.mxu0 0.0
        %2508 = vmatpush2.msra.mxu0 0.0
        %2509 = vmatprep.subr.mxu0 0.0
        %2510 = vmatpush2.msra.mxu0 0.0
        %2511 = vmatprep.subr.mxu0 0.0
        %2512 = vmatpush2.msra.mxu0 0.0
        %2513 = vmatprep.subr.mxu0 0.0
        %2514 = vmatpush2.msra.mxu0 0.0
        %2515 = vmatprep.mubr.f32.mxu0 0.0
        %2516 = vmatmul.mubr.f32.gmra.mxu0 %v526
        %v2517 = vpop.f32.mrf.mxu0
        %v2518 = vadd.f32 0.0, %v2517
        %v2519 = vpop.f32.mrf.mxu0
        %2520 = vmatprep.mubr.f32.mxu0 0.0
        %2521 = vmatmul.mubr.f32.gmra.mxu0 %v529
        %v2522 = vpop.f32.mrf.mxu0
        %v2523 = vadd.f32 0.0, %v2522
        %v2524 = vpop.f32.mrf.mxu0
        %2525 = vmatprep.mubr.f32.mxu0 0.0
        %2526 = vmatmul.mubr.f32.gmra.mxu0 %v532
        %v2527 = vpop.f32.mrf.mxu0
        %v2528 = vadd.f32 0.0, %v2527
        %v2529 = vpop.f32.mrf.mxu0
        %2530 = vmatprep.mubr.f32.mxu0 0.0
        %2531 = vmatmul.mubr.f32.gmra.mxu0 %v535
        %v2532 = vpop.f32.mrf.mxu0
        %v2533 = vadd.f32 0.0, %v2532
        %v2534 = vpop.f32.mrf.mxu0
        %2535 = vmatprep.mubr.f32.mxu0 0.0
        %2536 = vmatmul.mubr.f32.gmra.mxu0 %v538
        %v2537 = vpop.f32.mrf.mxu0
        %v2538 = vadd.f32 0.0, %v2537
        %v2539 = vpop.f32.mrf.mxu0
        %2540 = vmatprep.mubr.f32.mxu0 0.0
        %2541 = vmatmul.mubr.f32.gmra.mxu0 %v541
        %v2542 = vpop.f32.mrf.mxu0
        %v2543 = vadd.f32 0.0, %v2542
        %v2544 = vpop.f32.mrf.mxu0
        %2545 = vmatprep.mubr.f32.mxu0 0.0
        %2546 = vmatmul.mubr.f32.gmra.mxu0 %v544
        %v2547 = vpop.f32.mrf.mxu0
        %v2548 = vadd.f32 0.0, %v2547
        %v2549 = vpop.f32.mrf.mxu0
        %2550 = vmatprep.mubr.f32.mxu0 0.0
        %2551 = vmatmul.mubr.f32.gmra.mxu0 %v547
        %v2552 = vpop.f32.mrf.mxu0
        %v2553 = vadd.f32 0.0, %v2552
        %v2554 = vpop.f32.mrf.mxu0
        %2555 = vmatprep.mubr.f32.mxu0 0.0
        %2556 = vmatmul.mubr.f32.gmra.mxu0 %v550
        %v2557 = vpop.f32.mrf.mxu0
        %v2558 = vadd.f32 0.0, %v2557
        %v2559 = vpop.f32.mrf.mxu0
        %2560 = vmatprep.mubr.f32.mxu0 0.0
        %2561 = vmatmul.mubr.f32.gmra.mxu0 %v553
        %v2562 = vpop.f32.mrf.mxu0
        %v2563 = vadd.f32 0.0, %v2562
        %v2564 = vpop.f32.mrf.mxu0
        %2565 = vmatprep.mubr.f32.mxu0 0.0
        %2566 = vmatmul.mubr.f32.gmra.mxu0 %v556
        %v2567 = vpop.f32.mrf.mxu0
        %v2568 = vadd.f32 0.0, %v2567
        %v2569 = vpop.f32.mrf.mxu0
        %2570 = vmatprep.mubr.f32.mxu0 0.0
        %2571 = vmatmul.mubr.f32.gmra.mxu0 %v559
        %v2572 = vpop.f32.mrf.mxu0
        %v2573 = vadd.f32 0.0, %v2572
        %v2574 = vpop.f32.mrf.mxu0
        %2575 = vmatprep.mubr.f32.mxu0 0.0
        %2576 = vmatmul.mubr.f32.gmra.mxu0 %v562
        %v2577 = vpop.f32.mrf.mxu0
        %v2578 = vadd.f32 0.0, %v2577
        %v2579 = vpop.f32.mrf.mxu0
        %2580 = vmatprep.mubr.f32.mxu0 0.0
        %2581 = vmatmul.mubr.f32.gmra.mxu0 %v565
        %v2582 = vpop.f32.mrf.mxu0
        %v2583 = vadd.f32 0.0, %v2582
        %v2584 = vpop.f32.mrf.mxu0
        %2585 = vmatprep.mubr.f32.mxu0 0.0
        %2586 = vmatmul.mubr.f32.gmra.mxu0 %v568
        %v2587 = vpop.f32.mrf.mxu0
        %v2588 = vadd.f32 0.0, %v2587
        %v2589 = vpop.f32.mrf.mxu0
        %2590 = vmatprep.mubr.f32.mxu0 0.0
        %2591 = vmatmul.mubr.f32.gmra.mxu0 %v571
        %v2592 = vpop.f32.mrf.mxu0
        %v2593 = vadd.f32 0.0, %v2592
        %v2594 = vpop.f32.mrf.mxu0
        %2595 = vmatprep.mubr.f32.mxu0 0.0
        %2596 = vmatmul.mubr.f32.gmra.mxu0 %v574
        %v2597 = vpop.f32.mrf.mxu0
        %v2598 = vadd.f32 0.0, %v2597
        %v2599 = vpop.f32.mrf.mxu0
        %2600 = vmatprep.mubr.f32.mxu0 0.0
        %2601 = vmatmul.mubr.f32.gmra.mxu0 %v577
        %v2602 = vpop.f32.mrf.mxu0
        %v2603 = vadd.f32 0.0, %v2602
        %v2604 = vpop.f32.mrf.mxu0
        %2605 = vmatprep.mubr.f32.mxu0 0.0
        %2606 = vmatmul.mubr.f32.gmra.mxu0 %v580
        %v2607 = vpop.f32.mrf.mxu0
        %v2608 = vadd.f32 0.0, %v2607
        %v2609 = vpop.f32.mrf.mxu0
        %2610 = vmatprep.mubr.f32.mxu0 0.0
        %2611 = vmatmul.mubr.f32.gmra.mxu0 %v583
        %v2612 = vpop.f32.mrf.mxu0
        %v2613 = vadd.f32 0.0, %v2612
        %v2614 = vpop.f32.mrf.mxu0
        %2615 = vmatprep.mubr.f32.mxu0 0.0
        %2616 = vmatmul.mubr.f32.gmra.mxu0 %v586
        %v2617 = vpop.f32.mrf.mxu0
        %v2618 = vadd.f32 0.0, %v2617
        %v2619 = vpop.f32.mrf.mxu0
        %2620 = vmatprep.mubr.f32.mxu0 0.0
        %2621 = vmatmul.mubr.f32.gmra.mxu0 %v1355
        %v2622 = vpop.f32.mrf.mxu0
        %v2623 = vadd.f32 0.0, %v2622
        %v2624 = vpop.f32.mrf.mxu0
        %2625 = vmatprep.mubr.f32.mxu0 0.0
        %2626 = vmatmul.mubr.f32.gmra.mxu0 %v1792
        %v2627 = vpop.f32.mrf.mxu0
        %v2628 = vadd.f32 0.0, %v2627
        %v2629 = vpop.f32.mrf.mxu0
        %2630 = vmatprep.mubr.f32.mxu0 0.0
        %2631 = vmatmul.mubr.f32.gmra.mxu0 %v2229
        %v2632 = vpop.f32.mrf.mxu0
        %v2633 = vadd.f32 0.0, %v2632
        %v2634 = vpop.f32.mrf.mxu0
        %2635 = vdwg.mxu0
        %v2636 = vadd.f32 %v2199, %v2518
        %v2637 = vadd.f32 %v2200, %v2523
        %v2638 = vadd.f32 %v2201, %v2528
        %v2639 = vadd.f32 %v2202, %v2533
        %v2640 = vadd.f32 %v2203, %v2538
        %v2641 = vadd.f32 %v2204, %v2543
        %v2642 = vadd.f32 %v2205, %v2548
        %v2643 = vadd.f32 %v2206, %v2553
        %v2644 = vadd.f32 %v2207, %v2558
        %v2645 = vadd.f32 %v2208, %v2563
        %v2646 = vadd.f32 %v2209, %v2568
        %v2647 = vadd.f32 %v2210, %v2573
        %v2648 = vadd.f32 %v2211, %v2578
        %v2649 = vadd.f32 %v2212, %v2583
        %v2650 = vadd.f32 %v2213, %v2588
        %v2651 = vadd.f32 %v2214, %v2593
        %v2652 = vadd.f32 %v2215, %v2598
        %v2653 = vadd.f32 %v2216, %v2603
        %v2654 = vadd.f32 %v2217, %v2608
        %v2655 = vadd.f32 %v2218, %v2613
        %v2656 = vadd.f32 %v2219, %v2618
        %v2657 = vadd.f32 %v2220, %v2623
        %v2658 = vadd.f32 %v2221, %v2628
        %v2659 = vadd.f32 %v2222, %v2633
        %v2660 = vmax.f32 %v2419, %v2636
        %v2661 = vmax.f32 %v2420, %v2637
        %v2662 = vmax.f32 %v2421, %v2638
        %v2663 = vmax.f32 %v2422, %v2639
        %v2664 = vmax.f32 %v2423, %v2640
        %v2665 = vmax.f32 %v2424, %v2641
        %v2666 = vmax.f32 %v2425, %v2642
        %v2667 = vmax.f32 %v2426, %v2643
        %v2668 = vmax.f32 %v2427, %v2644
        %v2669 = vmax.f32 %v2428, %v2645
        %v2670 = vmax.f32 %v2429, %v2646
        %v2671 = vmax.f32 %v2430, %v2647
        %v2672 = vmax.f32 %v2431, %v2648
        %v2673 = vmax.f32 %v2432, %v2649
        %v2674 = vmax.f32 %v2433, %v2650
        %v2675 = vmax.f32 %v2434, %v2651
        %v2676 = vmax.f32 %v2435, %v2652
        %v2677 = vmax.f32 %v2436, %v2653
        %v2678 = vmax.f32 %v2437, %v2654
        %v2679 = vmax.f32 %v2438, %v2655
        %v2680 = vmax.f32 %v2439, %v2656
        %v2681 = vmax.f32 %v2440, %v2657
        %v2682 = vmax.f32 %v2441, %v2658
        %v2683 = vmax.f32 %v2442, %v2659
        %v2684 = vmax.f32 %v2660, %v2661
        %v2685 = vmax.f32 %v2662, %v2663
        %v2686 = vmax.f32 %v2664, %v2665
        %v2687 = vmax.f32 %v2666, %v2667
        %v2688 = vmax.f32 %v2668, %v2669
        %v2689 = vmax.f32 %v2670, %v2671
        %v2690 = vmax.f32 %v2672, %v2673
        %v2691 = vmax.f32 %v2674, %v2675
        %v2692 = vmax.f32 %v2676, %v2677
        %v2693 = vmax.f32 %v2678, %v2679
        %v2694 = vmax.f32 %v2680, %v2681
        %v2695 = vmax.f32 %v2682, %v2683
        %v2696 = vld [vmem:[%s3] sm:$0x1]
        %v2698 = vlaneseq
        %v2699 = vshrl.u32 %v2698, 7
        %v2700 = vsub.s32 0, %v2699
        %v2701 = vrot.slane %v2696, %v2700
        %v2703 = vadd.f32 %v2684, %v2701
        %v2704 = vadd.f32 %v2685, %v2701
        %v2705 = vadd.f32 %v2686, %v2701
        %v2706 = vadd.f32 %v2687, %v2701
        %v2707 = vadd.f32 %v2688, %v2701
        %v2708 = vadd.f32 %v2689, %v2701
        %v2709 = vadd.f32 %v2690, %v2701
        %v2710 = vadd.f32 %v2691, %v2701
        %v2711 = vadd.f32 %v2692, %v2701
        %v2712 = vadd.f32 %v2693, %v2701
        %v2713 = vadd.f32 %v2694, %v2701
        %v2714 = vadd.f32 %v2695, %v2701
        %v2715 = vmax.f32 %v2703, 0.0
        %v2716 = vmax.f32 %v2704, 0.0
        %v2717 = vmax.f32 %v2705, 0.0
        %v2718 = vmax.f32 %v2706, 0.0
        %v2719 = vmax.f32 %v2707, 0.0
        %v2720 = vmax.f32 %v2708, 0.0
        %v2721 = vmax.f32 %v2709, 0.0
        %v2722 = vmax.f32 %v2710, 0.0
        %v2723 = vmax.f32 %v2711, 0.0
        %v2724 = vmax.f32 %v2712, 0.0
        %v2725 = vmax.f32 %v2713, 0.0
        %v2726 = vmax.f32 %v2714, 0.0
        %v2727 = vld [vmem:[%s4] sm:$0xff]
        %v2728 = vld [vmem:[%s4 + $0x8] sm:$0xff]
        %v2729 = vld [vmem:[%s4 + $0x10] sm:$0xff]
        %v2730 = vld [vmem:[%s4 + $0x18] sm:$0xff]
        %v2731 = vld [vmem:[%s4 + $0x20] sm:$0xff]
        %v2732 = vld [vmem:[%s4 + $0x28] sm:$0xff]
        %v2733 = vld [vmem:[%s4 + $0x30] sm:$0xff]
        %v2734 = vld [vmem:[%s4 + $0x38] sm:$0xff]
        %v2735 = vld [vmem:[%s4 + $0x40] sm:$0xff]
        %v2736 = vld [vmem:[%s4 + $0x48] sm:$0xff]
        %v2737 = vld [vmem:[%s4 + $0x50] sm:$0xff]
        %v2738 = vld [vmem:[%s4 + $0x58] sm:$0xff]
        %v2739 = vld [vmem:[%s4 + $0x60] sm:$0xff]
        %v2740 = vld [vmem:[%s4 + $0x68] sm:$0xff]
        %v2741 = vld [vmem:[%s4 + $0x70] sm:$0xff]
        %v2742 = vld [vmem:[%s5] sm:$0xff]
        %v2743 = vld [vmem:[%s5 + $0x8] sm:$0xff]
        %v2744 = vld [vmem:[%s5 + $0x10] sm:$0xff]
        %v2745 = vld [vmem:[%s5 + $0x18] sm:$0xff]
        %v2746 = vld [vmem:[%s5 + $0x20] sm:$0xff]
        %v2747 = vld [vmem:[%s5 + $0x28] sm:$0xff]
        %v2748 = vld [vmem:[%s5 + $0x30] sm:$0xff]
        %v2749 = vld [vmem:[%s5 + $0x38] sm:$0xff]
        %v2750 = vld [vmem:[%s5 + $0x40] sm:$0xff]
        %v2751 = vld [vmem:[%s5 + $0x48] sm:$0xff]
        %v2752 = vld [vmem:[%s5 + $0x50] sm:$0xff]
        %v2753 = vld [vmem:[%s5 + $0x58] sm:$0xff]
        %v2754 = vld [vmem:[%s5 + $0x60] sm:$0xff]
        %v2755 = vld [vmem:[%s5 + $0x68] sm:$0xff]
        %v2756 = vld [vmem:[%s5 + $0x70] sm:$0xff]
        %s2757 = scalar_lea.vmem %s4, 120
        %v2758 = vld [vmem:[%s2757] sm:$0xff]
        %v2759 = vld [vmem:[%s2757 + $0x8] sm:$0xff]
        %v2760 = vld [vmem:[%s2757 + $0x10] sm:$0xff]
        %v2761 = vld [vmem:[%s2757 + $0x18] sm:$0xff]
        %v2762 = vld [vmem:[%s2757 + $0x20] sm:$0xff]
        %v2763 = vld [vmem:[%s2757 + $0x28] sm:$0xff]
        %v2764 = vld [vmem:[%s2757 + $0x30] sm:$0xff]
        %v2765 = vld [vmem:[%s2757 + $0x38] sm:$0xff]
        %v2766 = vld [vmem:[%s2757 + $0x40] sm:$0xff]
        %v2767 = vld [vmem:[%s2757 + $0x48] sm:$0xff]
        %v2768 = vld [vmem:[%s2757 + $0x50] sm:$0xff]
        %v2769 = vld [vmem:[%s2757 + $0x58] sm:$0xff]
        %v2770 = vld [vmem:[%s2757 + $0x60] sm:$0xff]
        %v2771 = vld [vmem:[%s2757 + $0x68] sm:$0xff]
        %v2772 = vld [vmem:[%s2757 + $0x70] sm:$0xff]
        %vm2773 = vcmask 982016
        %v2775 = vsel %vm2773, %v2716, 0
        %v2778 = vsel %vm2773, %v2717, 0
        %v2781 = vsel %vm2773, %v2718, 0
        %v2784 = vsel %vm2773, %v2719, 0
        %v2787 = vsel %vm2773, %v2720, 0
        %v2790 = vsel %vm2773, %v2721, 0
        %v2793 = vsel %vm2773, %v2722, 0
        %v2796 = vsel %vm2773, %v2723, 0
        %2798 = vmatprep.subr.mxu0 0.0
        %2799 = vmatpush1.msra.mxu0 0.0
        %2800 = vmatprep.subr.mxu0 0.0
        %2801 = vmatpush1.msra.mxu0 %v2772
        %2802 = vmatprep.subr.mxu0 0.0
        %2803 = vmatpush1.msra.mxu0 %v2771
        %2804 = vmatprep.subr.mxu0 0.0
        %2805 = vmatpush1.msra.mxu0 %v2770
        %2806 = vmatprep.subr.mxu0 0.0
        %2807 = vmatpush1.msra.mxu0 %v2769
        %2808 = vmatprep.subr.mxu0 0.0
        %2809 = vmatpush1.msra.mxu0 %v2768
        %2810 = vmatprep.subr.mxu0 0.0
        %2811 = vmatpush1.msra.mxu0 %v2767
        %2812 = vmatprep.subr.mxu0 0.0
        %2813 = vmatpush1.msra.mxu0 %v2766
        %2814 = vmatprep.subr.mxu0 0.0
        %2815 = vmatpush1.msra.mxu0 %v2765
        %2816 = vmatprep.subr.mxu0 0.0
        %2817 = vmatpush1.msra.mxu0 %v2764
        %2818 = vmatprep.subr.mxu0 0.0
        %2819 = vmatpush1.msra.mxu0 %v2763
        %2820 = vmatprep.subr.mxu0 0.0
        %2821 = vmatpush1.msra.mxu0 %v2762
        %2822 = vmatprep.subr.mxu0 0.0
        %2823 = vmatpush1.msra.mxu0 %v2761
        %2824 = vmatprep.subr.mxu0 0.0
        %2825 = vmatpush1.msra.mxu0 %v2760
        %2826 = vmatprep.subr.mxu0 0.0
        %2827 = vmatpush1.msra.mxu0 %v2759
        %2828 = vmatprep.subr.mxu0 0.0
        %2829 = vmatpush1.msra.mxu0 %v2758
        %2830 = vmatprep.subr.mxu0 0.0
        %2831 = vmatpush2.msra.mxu0 0.0
        %2832 = vmatprep.subr.mxu0 0.0
        %2833 = vmatpush2.msra.mxu0 0.0
        %2834 = vmatprep.subr.mxu0 0.0
        %2835 = vmatpush2.msra.mxu0 0.0
        %2836 = vmatprep.subr.mxu0 0.0
        %2837 = vmatpush2.msra.mxu0 0.0
        %2838 = vmatprep.subr.mxu0 0.0
        %2839 = vmatpush2.msra.mxu0 0.0
        %2840 = vmatprep.subr.mxu0 0.0
        %2841 = vmatpush2.msra.mxu0 0.0
        %2842 = vmatprep.subr.mxu0 0.0
        %2843 = vmatpush2.msra.mxu0 0.0
        %2844 = vmatprep.subr.mxu0 0.0
        %2845 = vmatpush2.msra.mxu0 0.0
        %2846 = vmatprep.subr.mxu0 0.0
        %2847 = vmatpush2.msra.mxu0 0.0
        %2848 = vmatprep.subr.mxu0 0.0
        %2849 = vmatpush2.msra.mxu0 0.0
        %2850 = vmatprep.subr.mxu0 0.0
        %2851 = vmatpush2.msra.mxu0 0.0
        %2852 = vmatprep.subr.mxu0 0.0
        %2853 = vmatpush2.msra.mxu0 0.0
        %2854 = vmatprep.subr.mxu0 0.0
        %2855 = vmatpush2.msra.mxu0 0.0
        %2856 = vmatprep.subr.mxu0 0.0
        %2857 = vmatpush2.msra.mxu0 0.0
        %2858 = vmatprep.subr.mxu0 0.0
        %2859 = vmatpush2.msra.mxu0 0.0
        %2860 = vmatprep.subr.mxu0 0.0
        %2861 = vmatpush2.msra.mxu0 0.0
        %2862 = vmatprep.mubr.f32.mxu0 0.0
        %2863 = vmatmul.mubr.f32.gmra.mxu0 %v2775
        %v2864 = vpop.f32.mrf.mxu0
        %v2865 = vadd.f32 0.0, %v2864
        %v2866 = vpop.f32.mrf.mxu0
        %2867 = vmatprep.mubr.f32.mxu0 0.0
        %2868 = vmatmul.mubr.f32.gmra.mxu0 %v2778
        %v2869 = vpop.f32.mrf.mxu0
        %v2870 = vadd.f32 0.0, %v2869
        %v2871 = vpop.f32.mrf.mxu0
        %2872 = vmatprep.mubr.f32.mxu0 0.0
        %2873 = vmatmul.mubr.f32.gmra.mxu0 %v2781
        %v2874 = vpop.f32.mrf.mxu0
        %v2875 = vadd.f32 0.0, %v2874
        %v2876 = vpop.f32.mrf.mxu0
        %2877 = vmatprep.mubr.f32.mxu0 0.0
        %2878 = vmatmul.mubr.f32.gmra.mxu0 %v2784
        %v2879 = vpop.f32.mrf.mxu0
        %v2880 = vadd.f32 0.0, %v2879
        %v2881 = vpop.f32.mrf.mxu0
        %2882 = vmatprep.mubr.f32.mxu0 0.0
        %2883 = vmatmul.mubr.f32.gmra.mxu0 %v2787
        %v2884 = vpop.f32.mrf.mxu0
        %v2885 = vadd.f32 0.0, %v2884
        %v2886 = vpop.f32.mrf.mxu0
        %2887 = vmatprep.mubr.f32.mxu0 0.0
        %2888 = vmatmul.mubr.f32.gmra.mxu0 %v2790
        %v2889 = vpop.f32.mrf.mxu0
        %v2890 = vadd.f32 0.0, %v2889
        %v2891 = vpop.f32.mrf.mxu0
        %2892 = vmatprep.mubr.f32.mxu0 0.0
        %2893 = vmatmul.mubr.f32.gmra.mxu0 %v2793
        %v2894 = vpop.f32.mrf.mxu0
        %v2895 = vadd.f32 0.0, %v2894
        %v2896 = vpop.f32.mrf.mxu0
        %2897 = vmatprep.mubr.f32.mxu0 0.0
        %2898 = vmatmul.mubr.f32.gmra.mxu0 %v2796
        %v2899 = vpop.f32.mrf.mxu0
        %v2900 = vadd.f32 0.0, %v2899
        %v2901 = vpop.f32.mrf.mxu0
        %2902 = vdwg.mxu0
        %v2904 = vsel %vm2773, %v2715, 0
        %2906 = vmatprep.subr.mxu0 0.0
        %2907 = vmatpush1.msra.mxu0 0.0
        %2908 = vmatprep.subr.mxu0 0.0
        %2909 = vmatpush1.msra.mxu0 %v2741
        %2910 = vmatprep.subr.mxu0 0.0
        %2911 = vmatpush1.msra.mxu0 %v2740
        %2912 = vmatprep.subr.mxu0 0.0
        %2913 = vmatpush1.msra.mxu0 %v2739
        %2914 = vmatprep.subr.mxu0 0.0
        %2915 = vmatpush1.msra.mxu0 %v2738
        %2916 = vmatprep.subr.mxu0 0.0
        %2917 = vmatpush1.msra.mxu0 %v2737
        %2918 = vmatprep.subr.mxu0 0.0
        %2919 = vmatpush1.msra.mxu0 %v2736
        %2920 = vmatprep.subr.mxu0 0.0
        %2921 = vmatpush1.msra.mxu0 %v2735
        %2922 = vmatprep.subr.mxu0 0.0
        %2923 = vmatpush1.msra.mxu0 %v2734
        %2924 = vmatprep.subr.mxu0 0.0
        %2925 = vmatpush1.msra.mxu0 %v2733
        %2926 = vmatprep.subr.mxu0 0.0
        %2927 = vmatpush1.msra.mxu0 %v2732
        %2928 = vmatprep.subr.mxu0 0.0
        %2929 = vmatpush1.msra.mxu0 %v2731
        %2930 = vmatprep.subr.mxu0 0.0
        %2931 = vmatpush1.msra.mxu0 %v2730
        %2932 = vmatprep.subr.mxu0 0.0
        %2933 = vmatpush1.msra.mxu0 %v2729
        %2934 = vmatprep.subr.mxu0 0.0
        %2935 = vmatpush1.msra.mxu0 %v2728
        %2936 = vmatprep.subr.mxu0 0.0
        %2937 = vmatpush1.msra.mxu0 %v2727
        %2938 = vmatprep.subr.mxu0 0.0
        %2939 = vmatpush2.msra.mxu0 0.0
        %2940 = vmatprep.subr.mxu0 0.0
        %2941 = vmatpush2.msra.mxu0 0.0
        %2942 = vmatprep.subr.mxu0 0.0
        %2943 = vmatpush2.msra.mxu0 0.0
        %2944 = vmatprep.subr.mxu0 0.0
        %2945 = vmatpush2.msra.mxu0 0.0
        %2946 = vmatprep.subr.mxu0 0.0
        %2947 = vmatpush2.msra.mxu0 0.0
        %2948 = vmatprep.subr.mxu0 0.0
        %2949 = vmatpush2.msra.mxu0 0.0
        %2950 = vmatprep.subr.mxu0 0.0
        %2951 = vmatpush2.msra.mxu0 0.0
        %2952 = vmatprep.subr.mxu0 0.0
        %2953 = vmatpush2.msra.mxu0 0.0
        %2954 = vmatprep.subr.mxu0 0.0
        %2955 = vmatpush2.msra.mxu0 0.0
        %2956 = vmatprep.subr.mxu0 0.0
        %2957 = vmatpush2.msra.mxu0 0.0
        %2958 = vmatprep.subr.mxu0 0.0
        %2959 = vmatpush2.msra.mxu0 0.0
        %2960 = vmatprep.subr.mxu0 0.0
        %2961 = vmatpush2.msra.mxu0 0.0
        %2962 = vmatprep.subr.mxu0 0.0
        %2963 = vmatpush2.msra.mxu0 0.0
        %2964 = vmatprep.subr.mxu0 0.0
        %2965 = vmatpush2.msra.mxu0 0.0
        %2966 = vmatprep.subr.mxu0 0.0
        %2967 = vmatpush2.msra.mxu0 0.0
        %2968 = vmatprep.subr.mxu0 0.0
        %2969 = vmatpush2.msra.mxu0 0.0
        %2970 = vmatprep.mubr.f32.mxu0 0.0
        %2971 = vmatmul.mubr.f32.gmra.mxu0 %v2904
        %v2972 = vpop.f32.mrf.mxu0
        %v2973 = vadd.f32 %v2865, %v2972
        %v2974 = vpop.f32.mrf.mxu0
        %2975 = vmatprep.mubr.f32.mxu0 0.0
        %2976 = vmatmul.mubr.f32.gmra.mxu0 %v2775
        %v2977 = vpop.f32.mrf.mxu0
        %v2978 = vadd.f32 %v2870, %v2977
        %v2979 = vpop.f32.mrf.mxu0
        %2980 = vmatprep.mubr.f32.mxu0 0.0
        %2981 = vmatmul.mubr.f32.gmra.mxu0 %v2778
        %v2982 = vpop.f32.mrf.mxu0
        %v2983 = vadd.f32 %v2875, %v2982
        %v2984 = vpop.f32.mrf.mxu0
        %2985 = vmatprep.mubr.f32.mxu0 0.0
        %2986 = vmatmul.mubr.f32.gmra.mxu0 %v2781
        %v2987 = vpop.f32.mrf.mxu0
        %v2988 = vadd.f32 %v2880, %v2987
        %v2989 = vpop.f32.mrf.mxu0
        %2990 = vmatprep.mubr.f32.mxu0 0.0
        %2991 = vmatmul.mubr.f32.gmra.mxu0 %v2784
        %v2992 = vpop.f32.mrf.mxu0
        %v2993 = vadd.f32 %v2885, %v2992
        %v2994 = vpop.f32.mrf.mxu0
        %2995 = vmatprep.mubr.f32.mxu0 0.0
        %2996 = vmatmul.mubr.f32.gmra.mxu0 %v2787
        %v2997 = vpop.f32.mrf.mxu0
        %v2998 = vadd.f32 %v2890, %v2997
        %v2999 = vpop.f32.mrf.mxu0
        %3000 = vmatprep.mubr.f32.mxu0 0.0
        %3001 = vmatmul.mubr.f32.gmra.mxu0 %v2790
        %v3002 = vpop.f32.mrf.mxu0
        %v3003 = vadd.f32 %v2895, %v3002
        %v3004 = vpop.f32.mrf.mxu0
        %3005 = vmatprep.mubr.f32.mxu0 0.0
        %3006 = vmatmul.mubr.f32.gmra.mxu0 %v2793
        %v3007 = vpop.f32.mrf.mxu0
        %v3008 = vadd.f32 %v2900, %v3007
        %v3009 = vpop.f32.mrf.mxu0
        %3010 = vdwg.mxu0
        %s3011 = scalar_lea.vmem %s5, 120
        %v3012 = vld [vmem:[%s3011] sm:$0xff]
        %v3013 = vld [vmem:[%s3011 + $0x8] sm:$0xff]
        %v3014 = vld [vmem:[%s3011 + $0x10] sm:$0xff]
        %v3015 = vld [vmem:[%s3011 + $0x18] sm:$0xff]
        %v3016 = vld [vmem:[%s3011 + $0x20] sm:$0xff]
        %v3017 = vld [vmem:[%s3011 + $0x28] sm:$0xff]
        %v3018 = vld [vmem:[%s3011 + $0x30] sm:$0xff]
        %v3019 = vld [vmem:[%s3011 + $0x38] sm:$0xff]
        %v3020 = vld [vmem:[%s3011 + $0x40] sm:$0xff]
        %v3021 = vld [vmem:[%s3011 + $0x48] sm:$0xff]
        %v3022 = vld [vmem:[%s3011 + $0x50] sm:$0xff]
        %v3023 = vld [vmem:[%s3011 + $0x58] sm:$0xff]
        %v3024 = vld [vmem:[%s3011 + $0x60] sm:$0xff]
        %v3025 = vld [vmem:[%s3011 + $0x68] sm:$0xff]
        %v3026 = vld [vmem:[%s3011 + $0x70] sm:$0xff]
        %3027 = vmatprep.subr.mxu0 0.0
        %3028 = vmatpush1.msra.mxu0 0.0
        %3029 = vmatprep.subr.mxu0 0.0
        %3030 = vmatpush1.msra.mxu0 %v3026
        %3031 = vmatprep.subr.mxu0 0.0
        %3032 = vmatpush1.msra.mxu0 %v3025
        %3033 = vmatprep.subr.mxu0 0.0
        %3034 = vmatpush1.msra.mxu0 %v3024
        %3035 = vmatprep.subr.mxu0 0.0
        %3036 = vmatpush1.msra.mxu0 %v3023
        %3037 = vmatprep.subr.mxu0 0.0
        %3038 = vmatpush1.msra.mxu0 %v3022
        %3039 = vmatprep.subr.mxu0 0.0
        %3040 = vmatpush1.msra.mxu0 %v3021
        %3041 = vmatprep.subr.mxu0 0.0
        %3042 = vmatpush1.msra.mxu0 %v3020
        %3043 = vmatprep.subr.mxu0 0.0
        %3044 = vmatpush1.msra.mxu0 %v3019
        %3045 = vmatprep.subr.mxu0 0.0
        %3046 = vmatpush1.msra.mxu0 %v3018
        %3047 = vmatprep.subr.mxu0 0.0
        %3048 = vmatpush1.msra.mxu0 %v3017
        %3049 = vmatprep.subr.mxu0 0.0
        %3050 = vmatpush1.msra.mxu0 %v3016
        %3051 = vmatprep.subr.mxu0 0.0
        %3052 = vmatpush1.msra.mxu0 %v3015
        %3053 = vmatprep.subr.mxu0 0.0
        %3054 = vmatpush1.msra.mxu0 %v3014
        %3055 = vmatprep.subr.mxu0 0.0
        %3056 = vmatpush1.msra.mxu0 %v3013
        %3057 = vmatprep.subr.mxu0 0.0
        %3058 = vmatpush1.msra.mxu0 %v3012
        %3059 = vmatprep.subr.mxu0 0.0
        %3060 = vmatpush2.msra.mxu0 0.0
        %3061 = vmatprep.subr.mxu0 0.0
        %3062 = vmatpush2.msra.mxu0 0.0
        %3063 = vmatprep.subr.mxu0 0.0
        %3064 = vmatpush2.msra.mxu0 0.0
        %3065 = vmatprep.subr.mxu0 0.0
        %3066 = vmatpush2.msra.mxu0 0.0
        %3067 = vmatprep.subr.mxu0 0.0
        %3068 = vmatpush2.msra.mxu0 0.0
        %3069 = vmatprep.subr.mxu0 0.0
        %3070 = vmatpush2.msra.mxu0 0.0
        %3071 = vmatprep.subr.mxu0 0.0
        %3072 = vmatpush2.msra.mxu0 0.0
        %3073 = vmatprep.subr.mxu0 0.0
        %3074 = vmatpush2.msra.mxu0 0.0
        %3075 = vmatprep.subr.mxu0 0.0
        %3076 = vmatpush2.msra.mxu0 0.0
        %3077 = vmatprep.subr.mxu0 0.0
        %3078 = vmatpush2.msra.mxu0 0.0
        %3079 = vmatprep.subr.mxu0 0.0
        %3080 = vmatpush2.msra.mxu0 0.0
        %3081 = vmatprep.subr.mxu0 0.0
        %3082 = vmatpush2.msra.mxu0 0.0
        %3083 = vmatprep.subr.mxu0 0.0
        %3084 = vmatpush2.msra.mxu0 0.0
        %3085 = vmatprep.subr.mxu0 0.0
        %3086 = vmatpush2.msra.mxu0 0.0
        %3087 = vmatprep.subr.mxu0 0.0
        %3088 = vmatpush2.msra.mxu0 0.0
        %3089 = vmatprep.subr.mxu0 0.0
        %3090 = vmatpush2.msra.mxu0 0.0
        %3091 = vmatprep.mubr.f32.mxu0 0.0
        %3092 = vmatmul.mubr.f32.gmra.mxu0 %v2775
        %v3093 = vpop.f32.mrf.mxu0
        %v3094 = vadd.f32 0.0, %v3093
        %v3095 = vpop.f32.mrf.mxu0
        %3096 = vmatprep.mubr.f32.mxu0 0.0
        %3097 = vmatmul.mubr.f32.gmra.mxu0 %v2778
        %v3098 = vpop.f32.mrf.mxu0
        %v3099 = vadd.f32 0.0, %v3098
        %v3100 = vpop.f32.mrf.mxu0
        %3101 = vmatprep.mubr.f32.mxu0 0.0
        %3102 = vmatmul.mubr.f32.gmra.mxu0 %v2781
        %v3103 = vpop.f32.mrf.mxu0
        %v3104 = vadd.f32 0.0, %v3103
        %v3105 = vpop.f32.mrf.mxu0
        %3106 = vmatprep.mubr.f32.mxu0 0.0
        %3107 = vmatmul.mubr.f32.gmra.mxu0 %v2784
        %v3108 = vpop.f32.mrf.mxu0
        %v3109 = vadd.f32 0.0, %v3108
        %v3110 = vpop.f32.mrf.mxu0
        %3111 = vmatprep.mubr.f32.mxu0 0.0
        %3112 = vmatmul.mubr.f32.gmra.mxu0 %v2787
        %v3113 = vpop.f32.mrf.mxu0
        %v3114 = vadd.f32 0.0, %v3113
        %v3115 = vpop.f32.mrf.mxu0
        %3116 = vmatprep.mubr.f32.mxu0 0.0
        %3117 = vmatmul.mubr.f32.gmra.mxu0 %v2790
        %v3118 = vpop.f32.mrf.mxu0
        %v3119 = vadd.f32 0.0, %v3118
        %v3120 = vpop.f32.mrf.mxu0
        %3121 = vmatprep.mubr.f32.mxu0 0.0
        %3122 = vmatmul.mubr.f32.gmra.mxu0 %v2793
        %v3123 = vpop.f32.mrf.mxu0
        %v3124 = vadd.f32 0.0, %v3123
        %v3125 = vpop.f32.mrf.mxu0
        %3126 = vmatprep.mubr.f32.mxu0 0.0
        %3127 = vmatmul.mubr.f32.gmra.mxu0 %v2796
        %v3128 = vpop.f32.mrf.mxu0
        %v3129 = vadd.f32 0.0, %v3128
        %v3130 = vpop.f32.mrf.mxu0
        %3131 = vdwg.mxu0
        %3132 = vmatprep.subr.mxu0 0.0
        %3133 = vmatpush1.msra.mxu0 0.0
        %3134 = vmatprep.subr.mxu0 0.0
        %3135 = vmatpush1.msra.mxu0 %v2756
        %3136 = vmatprep.subr.mxu0 0.0
        %3137 = vmatpush1.msra.mxu0 %v2755
        %3138 = vmatprep.subr.mxu0 0.0
        %3139 = vmatpush1.msra.mxu0 %v2754
        %3140 = vmatprep.subr.mxu0 0.0
        %3141 = vmatpush1.msra.mxu0 %v2753
        %3142 = vmatprep.subr.mxu0 0.0
        %3143 = vmatpush1.msra.mxu0 %v2752
        %3144 = vmatprep.subr.mxu0 0.0
        %3145 = vmatpush1.msra.mxu0 %v2751
        %3146 = vmatprep.subr.mxu0 0.0
        %3147 = vmatpush1.msra.mxu0 %v2750
        %3148 = vmatprep.subr.mxu0 0.0
        %3149 = vmatpush1.msra.mxu0 %v2749
        %3150 = vmatprep.subr.mxu0 0.0
        %3151 = vmatpush1.msra.mxu0 %v2748
        %3152 = vmatprep.subr.mxu0 0.0
        %3153 = vmatpush1.msra.mxu0 %v2747
        %3154 = vmatprep.subr.mxu0 0.0
        %3155 = vmatpush1.msra.mxu0 %v2746
        %3156 = vmatprep.subr.mxu0 0.0
        %3157 = vmatpush1.msra.mxu0 %v2745
        %3158 = vmatprep.subr.mxu0 0.0
        %3159 = vmatpush1.msra.mxu0 %v2744
        %3160 = vmatprep.subr.mxu0 0.0
        %3161 = vmatpush1.msra.mxu0 %v2743
        %3162 = vmatprep.subr.mxu0 0.0
        %3163 = vmatpush1.msra.mxu0 %v2742
        %3164 = vmatprep.subr.mxu0 0.0
        %3165 = vmatpush2.msra.mxu0 0.0
        %3166 = vmatprep.subr.mxu0 0.0
        %3167 = vmatpush2.msra.mxu0 0.0
        %3168 = vmatprep.subr.mxu0 0.0
        %3169 = vmatpush2.msra.mxu0 0.0
        %3170 = vmatprep.subr.mxu0 0.0
        %3171 = vmatpush2.msra.mxu0 0.0
        %3172 = vmatprep.subr.mxu0 0.0
        %3173 = vmatpush2.msra.mxu0 0.0
        %3174 = vmatprep.subr.mxu0 0.0
        %3175 = vmatpush2.msra.mxu0 0.0
        %3176 = vmatprep.subr.mxu0 0.0
        %3177 = vmatpush2.msra.mxu0 0.0
        %3178 = vmatprep.subr.mxu0 0.0
        %3179 = vmatpush2.msra.mxu0 0.0
        %3180 = vmatprep.subr.mxu0 0.0
        %3181 = vmatpush2.msra.mxu0 0.0
        %3182 = vmatprep.subr.mxu0 0.0
        %3183 = vmatpush2.msra.mxu0 0.0
        %3184 = vmatprep.subr.mxu0 0.0
        %3185 = vmatpush2.msra.mxu0 0.0
        %3186 = vmatprep.subr.mxu0 0.0
        %3187 = vmatpush2.msra.mxu0 0.0
        %3188 = vmatprep.subr.mxu0 0.0
        %3189 = vmatpush2.msra.mxu0 0.0
        %3190 = vmatprep.subr.mxu0 0.0
        %3191 = vmatpush2.msra.mxu0 0.0
        %3192 = vmatprep.subr.mxu0 0.0
        %3193 = vmatpush2.msra.mxu0 0.0
        %3194 = vmatprep.subr.mxu0 0.0
        %3195 = vmatpush2.msra.mxu0 0.0
        %3196 = vmatprep.mubr.f32.mxu0 0.0
        %3197 = vmatmul.mubr.f32.gmra.mxu0 %v2904
        %v3198 = vpop.f32.mrf.mxu0
        %v3199 = vadd.f32 %v3094, %v3198
        %v3200 = vpop.f32.mrf.mxu0
        %3201 = vmatprep.mubr.f32.mxu0 0.0
        %3202 = vmatmul.mubr.f32.gmra.mxu0 %v2775
        %v3203 = vpop.f32.mrf.mxu0
        %v3204 = vadd.f32 %v3099, %v3203
        %v3205 = vpop.f32.mrf.mxu0
        %3206 = vmatprep.mubr.f32.mxu0 0.0
        %3207 = vmatmul.mubr.f32.gmra.mxu0 %v2778
        %v3208 = vpop.f32.mrf.mxu0
        %v3209 = vadd.f32 %v3104, %v3208
        %v3210 = vpop.f32.mrf.mxu0
        %3211 = vmatprep.mubr.f32.mxu0 0.0
        %3212 = vmatmul.mubr.f32.gmra.mxu0 %v2781
        %v3213 = vpop.f32.mrf.mxu0
        %v3214 = vadd.f32 %v3109, %v3213
        %v3215 = vpop.f32.mrf.mxu0
        %3216 = vmatprep.mubr.f32.mxu0 0.0
        %3217 = vmatmul.mubr.f32.gmra.mxu0 %v2784
        %v3218 = vpop.f32.mrf.mxu0
        %v3219 = vadd.f32 %v3114, %v3218
        %v3220 = vpop.f32.mrf.mxu0
        %3221 = vmatprep.mubr.f32.mxu0 0.0
        %3222 = vmatmul.mubr.f32.gmra.mxu0 %v2787
        %v3223 = vpop.f32.mrf.mxu0
        %v3224 = vadd.f32 %v3119, %v3223
        %v3225 = vpop.f32.mrf.mxu0
        %3226 = vmatprep.mubr.f32.mxu0 0.0
        %3227 = vmatmul.mubr.f32.gmra.mxu0 %v2790
        %v3228 = vpop.f32.mrf.mxu0
        %v3229 = vadd.f32 %v3124, %v3228
        %v3230 = vpop.f32.mrf.mxu0
        %3231 = vmatprep.mubr.f32.mxu0 0.0
        %3232 = vmatmul.mubr.f32.gmra.mxu0 %v2793
        %v3233 = vpop.f32.mrf.mxu0
        %v3234 = vadd.f32 %v3129, %v3233
        %v3235 = vpop.f32.mrf.mxu0
        %3236 = vdwg.mxu0
        %s3237 = scalar_lea.vmem %s4, 240
        %v3238 = vld [vmem:[%s3237] sm:$0xff]
        %v3239 = vld [vmem:[%s3237 + $0x8] sm:$0xff]
        %v3240 = vld [vmem:[%s3237 + $0x10] sm:$0xff]
        %v3241 = vld [vmem:[%s3237 + $0x18] sm:$0xff]
        %v3242 = vld [vmem:[%s3237 + $0x20] sm:$0xff]
        %v3243 = vld [vmem:[%s3237 + $0x28] sm:$0xff]
        %v3244 = vld [vmem:[%s3237 + $0x30] sm:$0xff]
        %v3245 = vld [vmem:[%s3237 + $0x38] sm:$0xff]
        %v3246 = vld [vmem:[%s3237 + $0x40] sm:$0xff]
        %v3247 = vld [vmem:[%s3237 + $0x48] sm:$0xff]
        %v3248 = vld [vmem:[%s3237 + $0x50] sm:$0xff]
        %v3249 = vld [vmem:[%s3237 + $0x58] sm:$0xff]
        %v3250 = vld [vmem:[%s3237 + $0x60] sm:$0xff]
        %v3251 = vld [vmem:[%s3237 + $0x68] sm:$0xff]
        %v3252 = vld [vmem:[%s3237 + $0x70] sm:$0xff]
        %v3254 = vsel %vm2773, %v2724, 0
        %3256 = vmatprep.subr.mxu0 0.0
        %3257 = vmatpush1.msra.mxu0 0.0
        %3258 = vmatprep.subr.mxu0 0.0
        %3259 = vmatpush1.msra.mxu0 %v3252
        %3260 = vmatprep.subr.mxu0 0.0
        %3261 = vmatpush1.msra.mxu0 %v3251
        %3262 = vmatprep.subr.mxu0 0.0
        %3263 = vmatpush1.msra.mxu0 %v3250
        %3264 = vmatprep.subr.mxu0 0.0
        %3265 = vmatpush1.msra.mxu0 %v3249
        %3266 = vmatprep.subr.mxu0 0.0
        %3267 = vmatpush1.msra.mxu0 %v3248
        %3268 = vmatprep.subr.mxu0 0.0
        %3269 = vmatpush1.msra.mxu0 %v3247
        %3270 = vmatprep.subr.mxu0 0.0
        %3271 = vmatpush1.msra.mxu0 %v3246
        %3272 = vmatprep.subr.mxu0 0.0
        %3273 = vmatpush1.msra.mxu0 %v3245
        %3274 = vmatprep.subr.mxu0 0.0
        %3275 = vmatpush1.msra.mxu0 %v3244
        %3276 = vmatprep.subr.mxu0 0.0
        %3277 = vmatpush1.msra.mxu0 %v3243
        %3278 = vmatprep.subr.mxu0 0.0
        %3279 = vmatpush1.msra.mxu0 %v3242
        %3280 = vmatprep.subr.mxu0 0.0
        %3281 = vmatpush1.msra.mxu0 %v3241
        %3282 = vmatprep.subr.mxu0 0.0
        %3283 = vmatpush1.msra.mxu0 %v3240
        %3284 = vmatprep.subr.mxu0 0.0
        %3285 = vmatpush1.msra.mxu0 %v3239
        %3286 = vmatprep.subr.mxu0 0.0
        %3287 = vmatpush1.msra.mxu0 %v3238
        %3288 = vmatprep.subr.mxu0 0.0
        %3289 = vmatpush2.msra.mxu0 0.0
        %3290 = vmatprep.subr.mxu0 0.0
        %3291 = vmatpush2.msra.mxu0 0.0
        %3292 = vmatprep.subr.mxu0 0.0
        %3293 = vmatpush2.msra.mxu0 0.0
        %3294 = vmatprep.subr.mxu0 0.0
        %3295 = vmatpush2.msra.mxu0 0.0
        %3296 = vmatprep.subr.mxu0 0.0
        %3297 = vmatpush2.msra.mxu0 0.0
        %3298 = vmatprep.subr.mxu0 0.0
        %3299 = vmatpush2.msra.mxu0 0.0
        %3300 = vmatprep.subr.mxu0 0.0
        %3301 = vmatpush2.msra.mxu0 0.0
        %3302 = vmatprep.subr.mxu0 0.0
        %3303 = vmatpush2.msra.mxu0 0.0
        %3304 = vmatprep.subr.mxu0 0.0
        %3305 = vmatpush2.msra.mxu0 0.0
        %3306 = vmatprep.subr.mxu0 0.0
        %3307 = vmatpush2.msra.mxu0 0.0
        %3308 = vmatprep.subr.mxu0 0.0
        %3309 = vmatpush2.msra.mxu0 0.0
        %3310 = vmatprep.subr.mxu0 0.0
        %3311 = vmatpush2.msra.mxu0 0.0
        %3312 = vmatprep.subr.mxu0 0.0
        %3313 = vmatpush2.msra.mxu0 0.0
        %3314 = vmatprep.subr.mxu0 0.0
        %3315 = vmatpush2.msra.mxu0 0.0
        %3316 = vmatprep.subr.mxu0 0.0
        %3317 = vmatpush2.msra.mxu0 0.0
        %3318 = vmatprep.subr.mxu0 0.0
        %3319 = vmatpush2.msra.mxu0 0.0
        %3320 = vmatprep.mubr.f32.mxu0 0.0
        %3321 = vmatmul.mubr.f32.gmra.mxu0 %v2778
        %v3322 = vpop.f32.mrf.mxu0
        %v3323 = vadd.f32 0.0, %v3322
        %v3324 = vpop.f32.mrf.mxu0
        %3325 = vmatprep.mubr.f32.mxu0 0.0
        %3326 = vmatmul.mubr.f32.gmra.mxu0 %v2781
        %v3327 = vpop.f32.mrf.mxu0
        %v3328 = vadd.f32 0.0, %v3327
        %v3329 = vpop.f32.mrf.mxu0
        %3330 = vmatprep.mubr.f32.mxu0 0.0
        %3331 = vmatmul.mubr.f32.gmra.mxu0 %v2784
        %v3332 = vpop.f32.mrf.mxu0
        %v3333 = vadd.f32 0.0, %v3332
        %v3334 = vpop.f32.mrf.mxu0
        %3335 = vmatprep.mubr.f32.mxu0 0.0
        %3336 = vmatmul.mubr.f32.gmra.mxu0 %v2787
        %v3337 = vpop.f32.mrf.mxu0
        %v3338 = vadd.f32 0.0, %v3337
        %v3339 = vpop.f32.mrf.mxu0
        %3340 = vmatprep.mubr.f32.mxu0 0.0
        %3341 = vmatmul.mubr.f32.gmra.mxu0 %v2790
        %v3342 = vpop.f32.mrf.mxu0
        %v3343 = vadd.f32 0.0, %v3342
        %v3344 = vpop.f32.mrf.mxu0
        %3345 = vmatprep.mubr.f32.mxu0 0.0
        %3346 = vmatmul.mubr.f32.gmra.mxu0 %v2793
        %v3347 = vpop.f32.mrf.mxu0
        %v3348 = vadd.f32 0.0, %v3347
        %v3349 = vpop.f32.mrf.mxu0
        %3350 = vmatprep.mubr.f32.mxu0 0.0
        %3351 = vmatmul.mubr.f32.gmra.mxu0 %v2796
        %v3352 = vpop.f32.mrf.mxu0
        %v3353 = vadd.f32 0.0, %v3352
        %v3354 = vpop.f32.mrf.mxu0
        %3355 = vmatprep.mubr.f32.mxu0 0.0
        %3356 = vmatmul.mubr.f32.gmra.mxu0 %v3254
        %v3357 = vpop.f32.mrf.mxu0
        %v3358 = vadd.f32 0.0, %v3357
        %v3359 = vpop.f32.mrf.mxu0
        %3360 = vdwg.mxu0
        %v3361 = vadd.f32 %v2973, %v3323
        %v3362 = vadd.f32 %v2978, %v3328
        %v3363 = vadd.f32 %v2983, %v3333
        %v3364 = vadd.f32 %v2988, %v3338
        %v3365 = vadd.f32 %v2993, %v3343
        %v3366 = vadd.f32 %v2998, %v3348
        %v3367 = vadd.f32 %v3003, %v3353
        %v3368 = vadd.f32 %v3008, %v3358
        %s3369 = scalar_lea.vmem %s5, 240
        %v3370 = vld [vmem:[%s3369] sm:$0xff]
        %v3371 = vld [vmem:[%s3369 + $0x8] sm:$0xff]
        %v3372 = vld [vmem:[%s3369 + $0x10] sm:$0xff]
        %v3373 = vld [vmem:[%s3369 + $0x18] sm:$0xff]
        %v3374 = vld [vmem:[%s3369 + $0x20] sm:$0xff]
        %v3375 = vld [vmem:[%s3369 + $0x28] sm:$0xff]
        %v3376 = vld [vmem:[%s3369 + $0x30] sm:$0xff]
        %v3377 = vld [vmem:[%s3369 + $0x38] sm:$0xff]
        %v3378 = vld [vmem:[%s3369 + $0x40] sm:$0xff]
        %v3379 = vld [vmem:[%s3369 + $0x48] sm:$0xff]
        %v3380 = vld [vmem:[%s3369 + $0x50] sm:$0xff]
        %v3381 = vld [vmem:[%s3369 + $0x58] sm:$0xff]
        %v3382 = vld [vmem:[%s3369 + $0x60] sm:$0xff]
        %v3383 = vld [vmem:[%s3369 + $0x68] sm:$0xff]
        %v3384 = vld [vmem:[%s3369 + $0x70] sm:$0xff]
        %3385 = vmatprep.subr.mxu0 0.0
        %3386 = vmatpush1.msra.mxu0 0.0
        %3387 = vmatprep.subr.mxu0 0.0
        %3388 = vmatpush1.msra.mxu0 %v3384
        %3389 = vmatprep.subr.mxu0 0.0
        %3390 = vmatpush1.msra.mxu0 %v3383
        %3391 = vmatprep.subr.mxu0 0.0
        %3392 = vmatpush1.msra.mxu0 %v3382
        %3393 = vmatprep.subr.mxu0 0.0
        %3394 = vmatpush1.msra.mxu0 %v3381
        %3395 = vmatprep.subr.mxu0 0.0
        %3396 = vmatpush1.msra.mxu0 %v3380
        %3397 = vmatprep.subr.mxu0 0.0
        %3398 = vmatpush1.msra.mxu0 %v3379
        %3399 = vmatprep.subr.mxu0 0.0
        %3400 = vmatpush1.msra.mxu0 %v3378
        %3401 = vmatprep.subr.mxu0 0.0
        %3402 = vmatpush1.msra.mxu0 %v3377
        %3403 = vmatprep.subr.mxu0 0.0
        %3404 = vmatpush1.msra.mxu0 %v3376
        %3405 = vmatprep.subr.mxu0 0.0
        %3406 = vmatpush1.msra.mxu0 %v3375
        %3407 = vmatprep.subr.mxu0 0.0
        %3408 = vmatpush1.msra.mxu0 %v3374
        %3409 = vmatprep.subr.mxu0 0.0
        %3410 = vmatpush1.msra.mxu0 %v3373
        %3411 = vmatprep.subr.mxu0 0.0
        %3412 = vmatpush1.msra.mxu0 %v3372
        %3413 = vmatprep.subr.mxu0 0.0
        %3414 = vmatpush1.msra.mxu0 %v3371
        %3415 = vmatprep.subr.mxu0 0.0
        %3416 = vmatpush1.msra.mxu0 %v3370
        %3417 = vmatprep.subr.mxu0 0.0
        %3418 = vmatpush2.msra.mxu0 0.0
        %3419 = vmatprep.subr.mxu0 0.0
        %3420 = vmatpush2.msra.mxu0 0.0
        %3421 = vmatprep.subr.mxu0 0.0
        %3422 = vmatpush2.msra.mxu0 0.0
        %3423 = vmatprep.subr.mxu0 0.0
        %3424 = vmatpush2.msra.mxu0 0.0
        %3425 = vmatprep.subr.mxu0 0.0
        %3426 = vmatpush2.msra.mxu0 0.0
        %3427 = vmatprep.subr.mxu0 0.0
        %3428 = vmatpush2.msra.mxu0 0.0
        %3429 = vmatprep.subr.mxu0 0.0
        %3430 = vmatpush2.msra.mxu0 0.0
        %3431 = vmatprep.subr.mxu0 0.0
        %3432 = vmatpush2.msra.mxu0 0.0
        %3433 = vmatprep.subr.mxu0 0.0
        %3434 = vmatpush2.msra.mxu0 0.0
        %3435 = vmatprep.subr.mxu0 0.0
        %3436 = vmatpush2.msra.mxu0 0.0
        %3437 = vmatprep.subr.mxu0 0.0
        %3438 = vmatpush2.msra.mxu0 0.0
        %3439 = vmatprep.subr.mxu0 0.0
        %3440 = vmatpush2.msra.mxu0 0.0
        %3441 = vmatprep.subr.mxu0 0.0
        %3442 = vmatpush2.msra.mxu0 0.0
        %3443 = vmatprep.subr.mxu0 0.0
        %3444 = vmatpush2.msra.mxu0 0.0
        %3445 = vmatprep.subr.mxu0 0.0
        %3446 = vmatpush2.msra.mxu0 0.0
        %3447 = vmatprep.subr.mxu0 0.0
        %3448 = vmatpush2.msra.mxu0 0.0
        %3449 = vmatprep.mubr.f32.mxu0 0.0
        %3450 = vmatmul.mubr.f32.gmra.mxu0 %v2778
        %v3451 = vpop.f32.mrf.mxu0
        %v3452 = vadd.f32 0.0, %v3451
        %v3453 = vpop.f32.mrf.mxu0
        %3454 = vmatprep.mubr.f32.mxu0 0.0
        %3455 = vmatmul.mubr.f32.gmra.mxu0 %v2781
        %v3456 = vpop.f32.mrf.mxu0
        %v3457 = vadd.f32 0.0, %v3456
        %v3458 = vpop.f32.mrf.mxu0
        %3459 = vmatprep.mubr.f32.mxu0 0.0
        %3460 = vmatmul.mubr.f32.gmra.mxu0 %v2784
        %v3461 = vpop.f32.mrf.mxu0
        %v3462 = vadd.f32 0.0, %v3461
        %v3463 = vpop.f32.mrf.mxu0
        %3464 = vmatprep.mubr.f32.mxu0 0.0
        %3465 = vmatmul.mubr.f32.gmra.mxu0 %v2787
        %v3466 = vpop.f32.mrf.mxu0
        %v3467 = vadd.f32 0.0, %v3466
        %v3468 = vpop.f32.mrf.mxu0
        %3469 = vmatprep.mubr.f32.mxu0 0.0
        %3470 = vmatmul.mubr.f32.gmra.mxu0 %v2790
        %v3471 = vpop.f32.mrf.mxu0
        %v3472 = vadd.f32 0.0, %v3471
        %v3473 = vpop.f32.mrf.mxu0
        %3474 = vmatprep.mubr.f32.mxu0 0.0
        %3475 = vmatmul.mubr.f32.gmra.mxu0 %v2793
        %v3476 = vpop.f32.mrf.mxu0
        %v3477 = vadd.f32 0.0, %v3476
        %v3478 = vpop.f32.mrf.mxu0
        %3479 = vmatprep.mubr.f32.mxu0 0.0
        %3480 = vmatmul.mubr.f32.gmra.mxu0 %v2796
        %v3481 = vpop.f32.mrf.mxu0
        %v3482 = vadd.f32 0.0, %v3481
        %v3483 = vpop.f32.mrf.mxu0
        %3484 = vmatprep.mubr.f32.mxu0 0.0
        %3485 = vmatmul.mubr.f32.gmra.mxu0 %v3254
        %v3486 = vpop.f32.mrf.mxu0
        %v3487 = vadd.f32 0.0, %v3486
        %v3488 = vpop.f32.mrf.mxu0
        %3489 = vdwg.mxu0
        %v3490 = vadd.f32 %v3199, %v3452
        %v3491 = vadd.f32 %v3204, %v3457
        %v3492 = vadd.f32 %v3209, %v3462
        %v3493 = vadd.f32 %v3214, %v3467
        %v3494 = vadd.f32 %v3219, %v3472
        %v3495 = vadd.f32 %v3224, %v3477
        %v3496 = vadd.f32 %v3229, %v3482
        %v3497 = vadd.f32 %v3234, %v3487
        %s3498 = scalar_lea.vmem %s4, 360
        %v3499 = vld [vmem:[%s3498] sm:$0xff]
        %v3500 = vld [vmem:[%s3498 + $0x8] sm:$0xff]
        %v3501 = vld [vmem:[%s3498 + $0x10] sm:$0xff]
        %v3502 = vld [vmem:[%s3498 + $0x18] sm:$0xff]
        %v3503 = vld [vmem:[%s3498 + $0x20] sm:$0xff]
        %v3504 = vld [vmem:[%s3498 + $0x28] sm:$0xff]
        %v3505 = vld [vmem:[%s3498 + $0x30] sm:$0xff]
        %v3506 = vld [vmem:[%s3498 + $0x38] sm:$0xff]
        %v3507 = vld [vmem:[%s3498 + $0x40] sm:$0xff]
        %v3508 = vld [vmem:[%s3498 + $0x48] sm:$0xff]
        %v3509 = vld [vmem:[%s3498 + $0x50] sm:$0xff]
        %v3510 = vld [vmem:[%s3498 + $0x58] sm:$0xff]
        %v3511 = vld [vmem:[%s3498 + $0x60] sm:$0xff]
        %v3512 = vld [vmem:[%s3498 + $0x68] sm:$0xff]
        %v3513 = vld [vmem:[%s3498 + $0x70] sm:$0xff]
        %v3515 = vsel %vm2773, %v2725, 0
        %3517 = vmatprep.subr.mxu0 0.0
        %3518 = vmatpush1.msra.mxu0 0.0
        %3519 = vmatprep.subr.mxu0 0.0
        %3520 = vmatpush1.msra.mxu0 %v3513
        %3521 = vmatprep.subr.mxu0 0.0
        %3522 = vmatpush1.msra.mxu0 %v3512
        %3523 = vmatprep.subr.mxu0 0.0
        %3524 = vmatpush1.msra.mxu0 %v3511
        %3525 = vmatprep.subr.mxu0 0.0
        %3526 = vmatpush1.msra.mxu0 %v3510
        %3527 = vmatprep.subr.mxu0 0.0
        %3528 = vmatpush1.msra.mxu0 %v3509
        %3529 = vmatprep.subr.mxu0 0.0
        %3530 = vmatpush1.msra.mxu0 %v3508
        %3531 = vmatprep.subr.mxu0 0.0
        %3532 = vmatpush1.msra.mxu0 %v3507
        %3533 = vmatprep.subr.mxu0 0.0
        %3534 = vmatpush1.msra.mxu0 %v3506
        %3535 = vmatprep.subr.mxu0 0.0
        %3536 = vmatpush1.msra.mxu0 %v3505
        %3537 = vmatprep.subr.mxu0 0.0
        %3538 = vmatpush1.msra.mxu0 %v3504
        %3539 = vmatprep.subr.mxu0 0.0
        %3540 = vmatpush1.msra.mxu0 %v3503
        %3541 = vmatprep.subr.mxu0 0.0
        %3542 = vmatpush1.msra.mxu0 %v3502
        %3543 = vmatprep.subr.mxu0 0.0
        %3544 = vmatpush1.msra.mxu0 %v3501
        %3545 = vmatprep.subr.mxu0 0.0
        %3546 = vmatpush1.msra.mxu0 %v3500
        %3547 = vmatprep.subr.mxu0 0.0
        %3548 = vmatpush1.msra.mxu0 %v3499
        %3549 = vmatprep.subr.mxu0 0.0
        %3550 = vmatpush2.msra.mxu0 0.0
        %3551 = vmatprep.subr.mxu0 0.0
        %3552 = vmatpush2.msra.mxu0 0.0
        %3553 = vmatprep.subr.mxu0 0.0
        %3554 = vmatpush2.msra.mxu0 0.0
        %3555 = vmatprep.subr.mxu0 0.0
        %3556 = vmatpush2.msra.mxu0 0.0
        %3557 = vmatprep.subr.mxu0 0.0
        %3558 = vmatpush2.msra.mxu0 0.0
        %3559 = vmatprep.subr.mxu0 0.0
        %3560 = vmatpush2.msra.mxu0 0.0
        %3561 = vmatprep.subr.mxu0 0.0
        %3562 = vmatpush2.msra.mxu0 0.0
        %3563 = vmatprep.subr.mxu0 0.0
        %3564 = vmatpush2.msra.mxu0 0.0
        %3565 = vmatprep.subr.mxu0 0.0
        %3566 = vmatpush2.msra.mxu0 0.0
        %3567 = vmatprep.subr.mxu0 0.0
        %3568 = vmatpush2.msra.mxu0 0.0
        %3569 = vmatprep.subr.mxu0 0.0
        %3570 = vmatpush2.msra.mxu0 0.0
        %3571 = vmatprep.subr.mxu0 0.0
        %3572 = vmatpush2.msra.mxu0 0.0
        %3573 = vmatprep.subr.mxu0 0.0
        %3574 = vmatpush2.msra.mxu0 0.0
        %3575 = vmatprep.subr.mxu0 0.0
        %3576 = vmatpush2.msra.mxu0 0.0
        %3577 = vmatprep.subr.mxu0 0.0
        %3578 = vmatpush2.msra.mxu0 0.0
        %3579 = vmatprep.subr.mxu0 0.0
        %3580 = vmatpush2.msra.mxu0 0.0
        %3581 = vmatprep.mubr.f32.mxu0 0.0
        %3582 = vmatmul.mubr.f32.gmra.mxu0 %v2781
        %v3583 = vpop.f32.mrf.mxu0
        %v3584 = vadd.f32 0.0, %v3583
        %v3585 = vpop.f32.mrf.mxu0
        %3586 = vmatprep.mubr.f32.mxu0 0.0
        %3587 = vmatmul.mubr.f32.gmra.mxu0 %v2784
        %v3588 = vpop.f32.mrf.mxu0
        %v3589 = vadd.f32 0.0, %v3588
        %v3590 = vpop.f32.mrf.mxu0
        %3591 = vmatprep.mubr.f32.mxu0 0.0
        %3592 = vmatmul.mubr.f32.gmra.mxu0 %v2787
        %v3593 = vpop.f32.mrf.mxu0
        %v3594 = vadd.f32 0.0, %v3593
        %v3595 = vpop.f32.mrf.mxu0
        %3596 = vmatprep.mubr.f32.mxu0 0.0
        %3597 = vmatmul.mubr.f32.gmra.mxu0 %v2790
        %v3598 = vpop.f32.mrf.mxu0
        %v3599 = vadd.f32 0.0, %v3598
        %v3600 = vpop.f32.mrf.mxu0
        %3601 = vmatprep.mubr.f32.mxu0 0.0
        %3602 = vmatmul.mubr.f32.gmra.mxu0 %v2793
        %v3603 = vpop.f32.mrf.mxu0
        %v3604 = vadd.f32 0.0, %v3603
        %v3605 = vpop.f32.mrf.mxu0
        %3606 = vmatprep.mubr.f32.mxu0 0.0
        %3607 = vmatmul.mubr.f32.gmra.mxu0 %v2796
        %v3608 = vpop.f32.mrf.mxu0
        %v3609 = vadd.f32 0.0, %v3608
        %v3610 = vpop.f32.mrf.mxu0
        %3611 = vmatprep.mubr.f32.mxu0 0.0
        %3612 = vmatmul.mubr.f32.gmra.mxu0 %v3254
        %v3613 = vpop.f32.mrf.mxu0
        %v3614 = vadd.f32 0.0, %v3613
        %v3615 = vpop.f32.mrf.mxu0
        %3616 = vmatprep.mubr.f32.mxu0 0.0
        %3617 = vmatmul.mubr.f32.gmra.mxu0 %v3515
        %v3618 = vpop.f32.mrf.mxu0
        %v3619 = vadd.f32 0.0, %v3618
        %v3620 = vpop.f32.mrf.mxu0
        %3621 = vdwg.mxu0
        %v3622 = vadd.f32 %v3361, %v3584
        %v3623 = vadd.f32 %v3362, %v3589
        %v3624 = vadd.f32 %v3363, %v3594
        %v3625 = vadd.f32 %v3364, %v3599
        %v3626 = vadd.f32 %v3365, %v3604
        %v3627 = vadd.f32 %v3366, %v3609
        %v3628 = vadd.f32 %v3367, %v3614
        %v3629 = vadd.f32 %v3368, %v3619
        %s3630 = scalar_lea.vmem %s5, 360
        %v3631 = vld [vmem:[%s3630] sm:$0xff]
        %v3632 = vld [vmem:[%s3630 + $0x8] sm:$0xff]
        %v3633 = vld [vmem:[%s3630 + $0x10] sm:$0xff]
        %v3634 = vld [vmem:[%s3630 + $0x18] sm:$0xff]
        %v3635 = vld [vmem:[%s3630 + $0x20] sm:$0xff]
        %v3636 = vld [vmem:[%s3630 + $0x28] sm:$0xff]
        %v3637 = vld [vmem:[%s3630 + $0x30] sm:$0xff]
        %v3638 = vld [vmem:[%s3630 + $0x38] sm:$0xff]
        %v3639 = vld [vmem:[%s3630 + $0x40] sm:$0xff]
        %v3640 = vld [vmem:[%s3630 + $0x48] sm:$0xff]
        %v3641 = vld [vmem:[%s3630 + $0x50] sm:$0xff]
        %v3642 = vld [vmem:[%s3630 + $0x58] sm:$0xff]
        %v3643 = vld [vmem:[%s3630 + $0x60] sm:$0xff]
        %v3644 = vld [vmem:[%s3630 + $0x68] sm:$0xff]
        %v3645 = vld [vmem:[%s3630 + $0x70] sm:$0xff]
        %3646 = vmatprep.subr.mxu0 0.0
        %3647 = vmatpush1.msra.mxu0 0.0
        %3648 = vmatprep.subr.mxu0 0.0
        %3649 = vmatpush1.msra.mxu0 %v3645
        %3650 = vmatprep.subr.mxu0 0.0
        %3651 = vmatpush1.msra.mxu0 %v3644
        %3652 = vmatprep.subr.mxu0 0.0
        %3653 = vmatpush1.msra.mxu0 %v3643
        %3654 = vmatprep.subr.mxu0 0.0
        %3655 = vmatpush1.msra.mxu0 %v3642
        %3656 = vmatprep.subr.mxu0 0.0
        %3657 = vmatpush1.msra.mxu0 %v3641
        %3658 = vmatprep.subr.mxu0 0.0
        %3659 = vmatpush1.msra.mxu0 %v3640
        %3660 = vmatprep.subr.mxu0 0.0
        %3661 = vmatpush1.msra.mxu0 %v3639
        %3662 = vmatprep.subr.mxu0 0.0
        %3663 = vmatpush1.msra.mxu0 %v3638
        %3664 = vmatprep.subr.mxu0 0.0
        %3665 = vmatpush1.msra.mxu0 %v3637
        %3666 = vmatprep.subr.mxu0 0.0
        %3667 = vmatpush1.msra.mxu0 %v3636
        %3668 = vmatprep.subr.mxu0 0.0
        %3669 = vmatpush1.msra.mxu0 %v3635
        %3670 = vmatprep.subr.mxu0 0.0
        %3671 = vmatpush1.msra.mxu0 %v3634
        %3672 = vmatprep.subr.mxu0 0.0
        %3673 = vmatpush1.msra.mxu0 %v3633
        %3674 = vmatprep.subr.mxu0 0.0
        %3675 = vmatpush1.msra.mxu0 %v3632
        %3676 = vmatprep.subr.mxu0 0.0
        %3677 = vmatpush1.msra.mxu0 %v3631
        %3678 = vmatprep.subr.mxu0 0.0
        %3679 = vmatpush2.msra.mxu0 0.0
        %3680 = vmatprep.subr.mxu0 0.0
        %3681 = vmatpush2.msra.mxu0 0.0
        %3682 = vmatprep.subr.mxu0 0.0
        %3683 = vmatpush2.msra.mxu0 0.0
        %3684 = vmatprep.subr.mxu0 0.0
        %3685 = vmatpush2.msra.mxu0 0.0
        %3686 = vmatprep.subr.mxu0 0.0
        %3687 = vmatpush2.msra.mxu0 0.0
        %3688 = vmatprep.subr.mxu0 0.0
        %3689 = vmatpush2.msra.mxu0 0.0
        %3690 = vmatprep.subr.mxu0 0.0
        %3691 = vmatpush2.msra.mxu0 0.0
        %3692 = vmatprep.subr.mxu0 0.0
        %3693 = vmatpush2.msra.mxu0 0.0
        %3694 = vmatprep.subr.mxu0 0.0
        %3695 = vmatpush2.msra.mxu0 0.0
        %3696 = vmatprep.subr.mxu0 0.0
        %3697 = vmatpush2.msra.mxu0 0.0
        %3698 = vmatprep.subr.mxu0 0.0
        %3699 = vmatpush2.msra.mxu0 0.0
        %3700 = vmatprep.subr.mxu0 0.0
        %3701 = vmatpush2.msra.mxu0 0.0
        %3702 = vmatprep.subr.mxu0 0.0
        %3703 = vmatpush2.msra.mxu0 0.0
        %3704 = vmatprep.subr.mxu0 0.0
        %3705 = vmatpush2.msra.mxu0 0.0
        %3706 = vmatprep.subr.mxu0 0.0
        %3707 = vmatpush2.msra.mxu0 0.0
        %3708 = vmatprep.subr.mxu0 0.0
        %3709 = vmatpush2.msra.mxu0 0.0
        %3710 = vmatprep.mubr.f32.mxu0 0.0
        %3711 = vmatmul.mubr.f32.gmra.mxu0 %v2781
        %v3712 = vpop.f32.mrf.mxu0
        %v3713 = vadd.f32 0.0, %v3712
        %v3714 = vpop.f32.mrf.mxu0
        %3715 = vmatprep.mubr.f32.mxu0 0.0
        %3716 = vmatmul.mubr.f32.gmra.mxu0 %v2784
        %v3717 = vpop.f32.mrf.mxu0
        %v3718 = vadd.f32 0.0, %v3717
        %v3719 = vpop.f32.mrf.mxu0
        %3720 = vmatprep.mubr.f32.mxu0 0.0
        %3721 = vmatmul.mubr.f32.gmra.mxu0 %v2787
        %v3722 = vpop.f32.mrf.mxu0
        %v3723 = vadd.f32 0.0, %v3722
        %v3724 = vpop.f32.mrf.mxu0
        %3725 = vmatprep.mubr.f32.mxu0 0.0
        %3726 = vmatmul.mubr.f32.gmra.mxu0 %v2790
        %v3727 = vpop.f32.mrf.mxu0
        %v3728 = vadd.f32 0.0, %v3727
        %v3729 = vpop.f32.mrf.mxu0
        %3730 = vmatprep.mubr.f32.mxu0 0.0
        %3731 = vmatmul.mubr.f32.gmra.mxu0 %v2793
        %v3732 = vpop.f32.mrf.mxu0
        %v3733 = vadd.f32 0.0, %v3732
        %v3734 = vpop.f32.mrf.mxu0
        %3735 = vmatprep.mubr.f32.mxu0 0.0
        %3736 = vmatmul.mubr.f32.gmra.mxu0 %v2796
        %v3737 = vpop.f32.mrf.mxu0
        %v3738 = vadd.f32 0.0, %v3737
        %v3739 = vpop.f32.mrf.mxu0
        %3740 = vmatprep.mubr.f32.mxu0 0.0
        %3741 = vmatmul.mubr.f32.gmra.mxu0 %v3254
        %v3742 = vpop.f32.mrf.mxu0
        %v3743 = vadd.f32 0.0, %v3742
        %v3744 = vpop.f32.mrf.mxu0
        %3745 = vmatprep.mubr.f32.mxu0 0.0
        %3746 = vmatmul.mubr.f32.gmra.mxu0 %v3515
        %v3747 = vpop.f32.mrf.mxu0
        %v3748 = vadd.f32 0.0, %v3747
        %v3749 = vpop.f32.mrf.mxu0
        %3750 = vdwg.mxu0
        %v3751 = vadd.f32 %v3490, %v3713
        %v3752 = vadd.f32 %v3491, %v3718
        %v3753 = vadd.f32 %v3492, %v3723
        %v3754 = vadd.f32 %v3493, %v3728
        %v3755 = vadd.f32 %v3494, %v3733
        %v3756 = vadd.f32 %v3495, %v3738
        %v3757 = vadd.f32 %v3496, %v3743
        %v3758 = vadd.f32 %v3497, %v3748
        %s3759 = scalar_lea.vmem %s4, 480
        %v3760 = vld [vmem:[%s3759] sm:$0xff]
        %v3761 = vld [vmem:[%s3759 + $0x8] sm:$0xff]
        %v3762 = vld [vmem:[%s3759 + $0x10] sm:$0xff]
        %v3763 = vld [vmem:[%s3759 + $0x18] sm:$0xff]
        %v3764 = vld [vmem:[%s3759 + $0x20] sm:$0xff]
        %v3765 = vld [vmem:[%s3759 + $0x28] sm:$0xff]
        %v3766 = vld [vmem:[%s3759 + $0x30] sm:$0xff]
        %v3767 = vld [vmem:[%s3759 + $0x38] sm:$0xff]
        %v3768 = vld [vmem:[%s3759 + $0x40] sm:$0xff]
        %v3769 = vld [vmem:[%s3759 + $0x48] sm:$0xff]
        %v3770 = vld [vmem:[%s3759 + $0x50] sm:$0xff]
        %v3771 = vld [vmem:[%s3759 + $0x58] sm:$0xff]
        %v3772 = vld [vmem:[%s3759 + $0x60] sm:$0xff]
        %v3773 = vld [vmem:[%s3759 + $0x68] sm:$0xff]
        %v3774 = vld [vmem:[%s3759 + $0x70] sm:$0xff]
        %v3776 = vsel %vm2773, %v2726, 0
        %3778 = vmatprep.subr.mxu0 0.0
        %3779 = vmatpush1.msra.mxu0 0.0
        %3780 = vmatprep.subr.mxu0 0.0
        %3781 = vmatpush1.msra.mxu0 %v3774
        %3782 = vmatprep.subr.mxu0 0.0
        %3783 = vmatpush1.msra.mxu0 %v3773
        %3784 = vmatprep.subr.mxu0 0.0
        %3785 = vmatpush1.msra.mxu0 %v3772
        %3786 = vmatprep.subr.mxu0 0.0
        %3787 = vmatpush1.msra.mxu0 %v3771
        %3788 = vmatprep.subr.mxu0 0.0
        %3789 = vmatpush1.msra.mxu0 %v3770
        %3790 = vmatprep.subr.mxu0 0.0
        %3791 = vmatpush1.msra.mxu0 %v3769
        %3792 = vmatprep.subr.mxu0 0.0
        %3793 = vmatpush1.msra.mxu0 %v3768
        %3794 = vmatprep.subr.mxu0 0.0
        %3795 = vmatpush1.msra.mxu0 %v3767
        %3796 = vmatprep.subr.mxu0 0.0
        %3797 = vmatpush1.msra.mxu0 %v3766
        %3798 = vmatprep.subr.mxu0 0.0
        %3799 = vmatpush1.msra.mxu0 %v3765
        %3800 = vmatprep.subr.mxu0 0.0
        %3801 = vmatpush1.msra.mxu0 %v3764
        %3802 = vmatprep.subr.mxu0 0.0
        %3803 = vmatpush1.msra.mxu0 %v3763
        %3804 = vmatprep.subr.mxu0 0.0
        %3805 = vmatpush1.msra.mxu0 %v3762
        %3806 = vmatprep.subr.mxu0 0.0
        %3807 = vmatpush1.msra.mxu0 %v3761
        %3808 = vmatprep.subr.mxu0 0.0
        %3809 = vmatpush1.msra.mxu0 %v3760
        %3810 = vmatprep.subr.mxu0 0.0
        %3811 = vmatpush2.msra.mxu0 0.0
        %3812 = vmatprep.subr.mxu0 0.0
        %3813 = vmatpush2.msra.mxu0 0.0
        %3814 = vmatprep.subr.mxu0 0.0
        %3815 = vmatpush2.msra.mxu0 0.0
        %3816 = vmatprep.subr.mxu0 0.0
        %3817 = vmatpush2.msra.mxu0 0.0
        %3818 = vmatprep.subr.mxu0 0.0
        %3819 = vmatpush2.msra.mxu0 0.0
        %3820 = vmatprep.subr.mxu0 0.0
        %3821 = vmatpush2.msra.mxu0 0.0
        %3822 = vmatprep.subr.mxu0 0.0
        %3823 = vmatpush2.msra.mxu0 0.0
        %3824 = vmatprep.subr.mxu0 0.0
        %3825 = vmatpush2.msra.mxu0 0.0
        %3826 = vmatprep.subr.mxu0 0.0
        %3827 = vmatpush2.msra.mxu0 0.0
        %3828 = vmatprep.subr.mxu0 0.0
        %3829 = vmatpush2.msra.mxu0 0.0
        %3830 = vmatprep.subr.mxu0 0.0
        %3831 = vmatpush2.msra.mxu0 0.0
        %3832 = vmatprep.subr.mxu0 0.0
        %3833 = vmatpush2.msra.mxu0 0.0
        %3834 = vmatprep.subr.mxu0 0.0
        %3835 = vmatpush2.msra.mxu0 0.0
        %3836 = vmatprep.subr.mxu0 0.0
        %3837 = vmatpush2.msra.mxu0 0.0
        %3838 = vmatprep.subr.mxu0 0.0
        %3839 = vmatpush2.msra.mxu0 0.0
        %3840 = vmatprep.subr.mxu0 0.0
        %3841 = vmatpush2.msra.mxu0 0.0
        %3842 = vmatprep.mubr.f32.mxu0 0.0
        %3843 = vmatmul.mubr.f32.gmra.mxu0 %v2784
        %v3844 = vpop.f32.mrf.mxu0
        %v3845 = vadd.f32 0.0, %v3844
        %v3846 = vpop.f32.mrf.mxu0
        %3847 = vmatprep.mubr.f32.mxu0 0.0
        %3848 = vmatmul.mubr.f32.gmra.mxu0 %v2787
        %v3849 = vpop.f32.mrf.mxu0
        %v3850 = vadd.f32 0.0, %v3849
        %v3851 = vpop.f32.mrf.mxu0
        %3852 = vmatprep.mubr.f32.mxu0 0.0
        %3853 = vmatmul.mubr.f32.gmra.mxu0 %v2790
        %v3854 = vpop.f32.mrf.mxu0
        %v3855 = vadd.f32 0.0, %v3854
        %v3856 = vpop.f32.mrf.mxu0
        %3857 = vmatprep.mubr.f32.mxu0 0.0
        %3858 = vmatmul.mubr.f32.gmra.mxu0 %v2793
        %v3859 = vpop.f32.mrf.mxu0
        %v3860 = vadd.f32 0.0, %v3859
        %v3861 = vpop.f32.mrf.mxu0
        %3862 = vmatprep.mubr.f32.mxu0 0.0
        %3863 = vmatmul.mubr.f32.gmra.mxu0 %v2796
        %v3864 = vpop.f32.mrf.mxu0
        %v3865 = vadd.f32 0.0, %v3864
        %v3866 = vpop.f32.mrf.mxu0
        %3867 = vmatprep.mubr.f32.mxu0 0.0
        %3868 = vmatmul.mubr.f32.gmra.mxu0 %v3254
        %v3869 = vpop.f32.mrf.mxu0
        %v3870 = vadd.f32 0.0, %v3869
        %v3871 = vpop.f32.mrf.mxu0
        %3872 = vmatprep.mubr.f32.mxu0 0.0
        %3873 = vmatmul.mubr.f32.gmra.mxu0 %v3515
        %v3874 = vpop.f32.mrf.mxu0
        %v3875 = vadd.f32 0.0, %v3874
        %v3876 = vpop.f32.mrf.mxu0
        %3877 = vmatprep.mubr.f32.mxu0 0.0
        %3878 = vmatmul.mubr.f32.gmra.mxu0 %v3776
        %v3879 = vpop.f32.mrf.mxu0
        %v3880 = vadd.f32 0.0, %v3879
        %v3881 = vpop.f32.mrf.mxu0
        %3882 = vdwg.mxu0
        %v3883 = vadd.f32 %v3622, %v3845
        %v3884 = vadd.f32 %v3623, %v3850
        %v3885 = vadd.f32 %v3624, %v3855
        %v3886 = vadd.f32 %v3625, %v3860
        %v3887 = vadd.f32 %v3626, %v3865
        %v3888 = vadd.f32 %v3627, %v3870
        %v3889 = vadd.f32 %v3628, %v3875
        %v3890 = vadd.f32 %v3629, %v3880
        %s3891 = scalar_lea.vmem %s5, 480
        %v3892 = vld [vmem:[%s3891] sm:$0xff]
        %v3893 = vld [vmem:[%s3891 + $0x8] sm:$0xff]
        %v3894 = vld [vmem:[%s3891 + $0x10] sm:$0xff]
        %v3895 = vld [vmem:[%s3891 + $0x18] sm:$0xff]
        %v3896 = vld [vmem:[%s3891 + $0x20] sm:$0xff]
        %v3897 = vld [vmem:[%s3891 + $0x28] sm:$0xff]
        %v3898 = vld [vmem:[%s3891 + $0x30] sm:$0xff]
        %v3899 = vld [vmem:[%s3891 + $0x38] sm:$0xff]
        %v3900 = vld [vmem:[%s3891 + $0x40] sm:$0xff]
        %v3901 = vld [vmem:[%s3891 + $0x48] sm:$0xff]
        %v3902 = vld [vmem:[%s3891 + $0x50] sm:$0xff]
        %v3903 = vld [vmem:[%s3891 + $0x58] sm:$0xff]
        %v3904 = vld [vmem:[%s3891 + $0x60] sm:$0xff]
        %v3905 = vld [vmem:[%s3891 + $0x68] sm:$0xff]
        %v3906 = vld [vmem:[%s3891 + $0x70] sm:$0xff]
        %3907 = vmatprep.subr.mxu0 0.0
        %3908 = vmatpush1.msra.mxu0 0.0
        %3909 = vmatprep.subr.mxu0 0.0
        %3910 = vmatpush1.msra.mxu0 %v3906
        %3911 = vmatprep.subr.mxu0 0.0
        %3912 = vmatpush1.msra.mxu0 %v3905
        %3913 = vmatprep.subr.mxu0 0.0
        %3914 = vmatpush1.msra.mxu0 %v3904
        %3915 = vmatprep.subr.mxu0 0.0
        %3916 = vmatpush1.msra.mxu0 %v3903
        %3917 = vmatprep.subr.mxu0 0.0
        %3918 = vmatpush1.msra.mxu0 %v3902
        %3919 = vmatprep.subr.mxu0 0.0
        %3920 = vmatpush1.msra.mxu0 %v3901
        %3921 = vmatprep.subr.mxu0 0.0
        %3922 = vmatpush1.msra.mxu0 %v3900
        %3923 = vmatprep.subr.mxu0 0.0
        %3924 = vmatpush1.msra.mxu0 %v3899
        %3925 = vmatprep.subr.mxu0 0.0
        %3926 = vmatpush1.msra.mxu0 %v3898
        %3927 = vmatprep.subr.mxu0 0.0
        %3928 = vmatpush1.msra.mxu0 %v3897
        %3929 = vmatprep.subr.mxu0 0.0
        %3930 = vmatpush1.msra.mxu0 %v3896
        %3931 = vmatprep.subr.mxu0 0.0
        %3932 = vmatpush1.msra.mxu0 %v3895
        %3933 = vmatprep.subr.mxu0 0.0
        %3934 = vmatpush1.msra.mxu0 %v3894
        %3935 = vmatprep.subr.mxu0 0.0
        %3936 = vmatpush1.msra.mxu0 %v3893
        %3937 = vmatprep.subr.mxu0 0.0
        %3938 = vmatpush1.msra.mxu0 %v3892
        %3939 = vmatprep.subr.mxu0 0.0
        %3940 = vmatpush2.msra.mxu0 0.0
        %3941 = vmatprep.subr.mxu0 0.0
        %3942 = vmatpush2.msra.mxu0 0.0
        %3943 = vmatprep.subr.mxu0 0.0
        %3944 = vmatpush2.msra.mxu0 0.0
        %3945 = vmatprep.subr.mxu0 0.0
        %3946 = vmatpush2.msra.mxu0 0.0
        %3947 = vmatprep.subr.mxu0 0.0
        %3948 = vmatpush2.msra.mxu0 0.0
        %3949 = vmatprep.subr.mxu0 0.0
        %3950 = vmatpush2.msra.mxu0 0.0
        %3951 = vmatprep.subr.mxu0 0.0
        %3952 = vmatpush2.msra.mxu0 0.0
        %3953 = vmatprep.subr.mxu0 0.0
        %3954 = vmatpush2.msra.mxu0 0.0
        %3955 = vmatprep.subr.mxu0 0.0
        %3956 = vmatpush2.msra.mxu0 0.0
        %3957 = vmatprep.subr.mxu0 0.0
        %3958 = vmatpush2.msra.mxu0 0.0
        %3959 = vmatprep.subr.mxu0 0.0
        %3960 = vmatpush2.msra.mxu0 0.0
        %3961 = vmatprep.subr.mxu0 0.0
        %3962 = vmatpush2.msra.mxu0 0.0
        %3963 = vmatprep.subr.mxu0 0.0
        %3964 = vmatpush2.msra.mxu0 0.0
        %3965 = vmatprep.subr.mxu0 0.0
        %3966 = vmatpush2.msra.mxu0 0.0
        %3967 = vmatprep.subr.mxu0 0.0
        %3968 = vmatpush2.msra.mxu0 0.0
        %3969 = vmatprep.subr.mxu0 0.0
        %3970 = vmatpush2.msra.mxu0 0.0
        %3971 = vmatprep.mubr.f32.mxu0 0.0
        %3972 = vmatmul.mubr.f32.gmra.mxu0 %v2784
        %v3973 = vpop.f32.mrf.mxu0
        %v3974 = vadd.f32 0.0, %v3973
        %v3975 = vpop.f32.mrf.mxu0
        %3976 = vmatprep.mubr.f32.mxu0 0.0
        %3977 = vmatmul.mubr.f32.gmra.mxu0 %v2787
        %v3978 = vpop.f32.mrf.mxu0
        %v3979 = vadd.f32 0.0, %v3978
        %v3980 = vpop.f32.mrf.mxu0
        %3981 = vmatprep.mubr.f32.mxu0 0.0
        %3982 = vmatmul.mubr.f32.gmra.mxu0 %v2790
        %v3983 = vpop.f32.mrf.mxu0
        %v3984 = vadd.f32 0.0, %v3983
        %v3985 = vpop.f32.mrf.mxu0
        %3986 = vmatprep.mubr.f32.mxu0 0.0
        %3987 = vmatmul.mubr.f32.gmra.mxu0 %v2793
        %v3988 = vpop.f32.mrf.mxu0
        %v3989 = vadd.f32 0.0, %v3988
        %v3990 = vpop.f32.mrf.mxu0
        %3991 = vmatprep.mubr.f32.mxu0 0.0
        %3992 = vmatmul.mubr.f32.gmra.mxu0 %v2796
        %v3993 = vpop.f32.mrf.mxu0
        %v3994 = vadd.f32 0.0, %v3993
        %v3995 = vpop.f32.mrf.mxu0
        %3996 = vmatprep.mubr.f32.mxu0 0.0
        %3997 = vmatmul.mubr.f32.gmra.mxu0 %v3254
        %v3998 = vpop.f32.mrf.mxu0
        %v3999 = vadd.f32 0.0, %v3998
        %v4000 = vpop.f32.mrf.mxu0
        %4001 = vmatprep.mubr.f32.mxu0 0.0
        %4002 = vmatmul.mubr.f32.gmra.mxu0 %v3515
        %v4003 = vpop.f32.mrf.mxu0
        %v4004 = vadd.f32 0.0, %v4003
        %v4005 = vpop.f32.mrf.mxu0
        %4006 = vmatprep.mubr.f32.mxu0 0.0
        %4007 = vmatmul.mubr.f32.gmra.mxu0 %v3776
        %v4008 = vpop.f32.mrf.mxu0
        %v4009 = vadd.f32 0.0, %v4008
        %v4010 = vpop.f32.mrf.mxu0
        %4011 = vdwg.mxu0
        %v4012 = vadd.f32 %v3751, %v3974
        %v4013 = vadd.f32 %v3752, %v3979
        %v4014 = vadd.f32 %v3753, %v3984
        %v4015 = vadd.f32 %v3754, %v3989
        %v4016 = vadd.f32 %v3755, %v3994
        %v4017 = vadd.f32 %v3756, %v3999
        %v4018 = vadd.f32 %v3757, %v4004
        %v4019 = vadd.f32 %v3758, %v4009
        %v4020 = vmax.f32 %v3883, %v4012
        %v4021 = vmax.f32 %v3884, %v4013
        %v4022 = vmax.f32 %v3885, %v4014
        %v4023 = vmax.f32 %v3886, %v4015
        %v4024 = vmax.f32 %v3887, %v4016
        %v4025 = vmax.f32 %v3888, %v4017
        %v4026 = vmax.f32 %v3889, %v4018
        %v4027 = vmax.f32 %v3890, %v4019
        %v4028 = vmax.f32 %v4020, %v4021
        %v4029 = vmax.f32 %v4022, %v4023
        %v4030 = vmax.f32 %v4024, %v4025
        %v4031 = vmax.f32 %v4026, %v4027
        %v4032 = vld [vmem:[%s6] sm:$0x1]
        %v4034 = vlaneseq
        %v4035 = vshrl.u32 %v4034, 7
        %v4036 = vsub.s32 0, %v4035
        %v4037 = vrot.slane %v4032, %v4036
        %v4039 = vadd.f32 %v4028, %v4037
        %v4040 = vadd.f32 %v4029, %v4037
        %v4041 = vadd.f32 %v4030, %v4037
        %v4042 = vadd.f32 %v4031, %v4037
        %v4043 = vmax.f32 %v4039, 0.0
        %v4044 = vmax.f32 %v4040, 0.0
        %v4045 = vmax.f32 %v4041, 0.0
        %v4046 = vmax.f32 %v4042, 0.0
        %v4047 = vld [vmem:[%s7] sm:$0xff]
        %v4048 = vld [vmem:[%s7 + $0x8] sm:$0xff]
        %v4049 = vld [vmem:[%s7 + $0x10] sm:$0xff]
        %v4050 = vld [vmem:[%s7 + $0x18] sm:$0xff]
        %v4051 = vld [vmem:[%s7 + $0x20] sm:$0xff]
        %v4052 = vld [vmem:[%s7 + $0x28] sm:$0xff]
        %v4053 = vld [vmem:[%s7 + $0x30] sm:$0xff]
        %v4054 = vld [vmem:[%s7 + $0x38] sm:$0xff]
        %v4055 = vld [vmem:[%s7 + $0x40] sm:$0xff]
        %v4056 = vld [vmem:[%s7 + $0x48] sm:$0xff]
        %s4057 = scalar_lea.vmem %s7, 80
        %v4058 = vld [vmem:[%s4057] sm:$0xff]
        %v4059 = vld [vmem:[%s4057 + $0x8] sm:$0xff]
        %v4060 = vld [vmem:[%s4057 + $0x10] sm:$0xff]
        %v4061 = vld [vmem:[%s4057 + $0x18] sm:$0xff]
        %v4062 = vld [vmem:[%s4057 + $0x20] sm:$0xff]
        %v4063 = vld [vmem:[%s4057 + $0x28] sm:$0xff]
        %v4064 = vld [vmem:[%s4057 + $0x30] sm:$0xff]
        %v4065 = vld [vmem:[%s4057 + $0x38] sm:$0xff]
        %v4066 = vld [vmem:[%s4057 + $0x40] sm:$0xff]
        %v4067 = vld [vmem:[%s4057 + $0x48] sm:$0xff]
        %vm4068 = vcmask 654336
        %v4070 = vsel %vm4068, %v4044, 0
        %4072 = vmatprep.subr.mxu0 0.0
        %4073 = vmatpush1.msra.mxu0 0.0
        %4074 = vmatprep.subr.mxu0 0.0
        %4075 = vmatpush1.msra.mxu0 0.0
        %4076 = vmatprep.subr.mxu0 0.0
        %4077 = vmatpush1.msra.mxu0 0.0
        %4078 = vmatprep.subr.mxu0 0.0
        %4079 = vmatpush1.msra.mxu0 0.0
        %4080 = vmatprep.subr.mxu0 0.0
        %4081 = vmatpush1.msra.mxu0 0.0
        %4082 = vmatprep.subr.mxu0 0.0
        %4083 = vmatpush1.msra.mxu0 0.0
        %4084 = vmatprep.subr.mxu0 0.0
        %4085 = vmatpush1.msra.mxu0 %v4067
        %4086 = vmatprep.subr.mxu0 0.0
        %4087 = vmatpush1.msra.mxu0 %v4066
        %4088 = vmatprep.subr.mxu0 0.0
        %4089 = vmatpush1.msra.mxu0 %v4065
        %4090 = vmatprep.subr.mxu0 0.0
        %4091 = vmatpush1.msra.mxu0 %v4064
        %4092 = vmatprep.subr.mxu0 0.0
        %4093 = vmatpush1.msra.mxu0 %v4063
        %4094 = vmatprep.subr.mxu0 0.0
        %4095 = vmatpush1.msra.mxu0 %v4062
        %4096 = vmatprep.subr.mxu0 0.0
        %4097 = vmatpush1.msra.mxu0 %v4061
        %4098 = vmatprep.subr.mxu0 0.0
        %4099 = vmatpush1.msra.mxu0 %v4060
        %4100 = vmatprep.subr.mxu0 0.0
        %4101 = vmatpush1.msra.mxu0 %v4059
        %4102 = vmatprep.subr.mxu0 0.0
        %4103 = vmatpush1.msra.mxu0 %v4058
        %4104 = vmatprep.subr.mxu0 0.0
        %4105 = vmatpush2.msra.mxu0 0.0
        %4106 = vmatprep.subr.mxu0 0.0
        %4107 = vmatpush2.msra.mxu0 0.0
        %4108 = vmatprep.subr.mxu0 0.0
        %4109 = vmatpush2.msra.mxu0 0.0
        %4110 = vmatprep.subr.mxu0 0.0
        %4111 = vmatpush2.msra.mxu0 0.0
        %4112 = vmatprep.subr.mxu0 0.0
        %4113 = vmatpush2.msra.mxu0 0.0
        %4114 = vmatprep.subr.mxu0 0.0
        %4115 = vmatpush2.msra.mxu0 0.0
        %4116 = vmatprep.subr.mxu0 0.0
        %4117 = vmatpush2.msra.mxu0 0.0
        %4118 = vmatprep.subr.mxu0 0.0
        %4119 = vmatpush2.msra.mxu0 0.0
        %4120 = vmatprep.subr.mxu0 0.0
        %4121 = vmatpush2.msra.mxu0 0.0
        %4122 = vmatprep.subr.mxu0 0.0
        %4123 = vmatpush2.msra.mxu0 0.0
        %4124 = vmatprep.subr.mxu0 0.0
        %4125 = vmatpush2.msra.mxu0 0.0
        %4126 = vmatprep.subr.mxu0 0.0
        %4127 = vmatpush2.msra.mxu0 0.0
        %4128 = vmatprep.subr.mxu0 0.0
        %4129 = vmatpush2.msra.mxu0 0.0
        %4130 = vmatprep.subr.mxu0 0.0
        %4131 = vmatpush2.msra.mxu0 0.0
        %4132 = vmatprep.subr.mxu0 0.0
        %4133 = vmatpush2.msra.mxu0 0.0
        %4134 = vmatprep.subr.mxu0 0.0
        %4135 = vmatpush2.msra.mxu0 0.0
        %4136 = vmatprep.mubr.f32.mxu0 0.0
        %4137 = vmatmul.mubr.f32.gmra.mxu0 %v4070
        %v4138 = vpop.f32.mrf.mxu0
        %v4139 = vadd.f32 0.0, %v4138
        %v4140 = vpop.f32.mrf.mxu0
        %4141 = vdwg.mxu0
        %v4143 = vsel %vm4068, %v4043, 0
        %4145 = vmatprep.subr.mxu0 0.0
        %4146 = vmatpush1.msra.mxu0 0.0
        %4147 = vmatprep.subr.mxu0 0.0
        %4148 = vmatpush1.msra.mxu0 0.0
        %4149 = vmatprep.subr.mxu0 0.0
        %4150 = vmatpush1.msra.mxu0 0.0
        %4151 = vmatprep.subr.mxu0 0.0
        %4152 = vmatpush1.msra.mxu0 0.0
        %4153 = vmatprep.subr.mxu0 0.0
        %4154 = vmatpush1.msra.mxu0 0.0
        %4155 = vmatprep.subr.mxu0 0.0
        %4156 = vmatpush1.msra.mxu0 0.0
        %4157 = vmatprep.subr.mxu0 0.0
        %4158 = vmatpush1.msra.mxu0 %v4056
        %4159 = vmatprep.subr.mxu0 0.0
        %4160 = vmatpush1.msra.mxu0 %v4055
        %4161 = vmatprep.subr.mxu0 0.0
        %4162 = vmatpush1.msra.mxu0 %v4054
        %4163 = vmatprep.subr.mxu0 0.0
        %4164 = vmatpush1.msra.mxu0 %v4053
        %4165 = vmatprep.subr.mxu0 0.0
        %4166 = vmatpush1.msra.mxu0 %v4052
        %4167 = vmatprep.subr.mxu0 0.0
        %4168 = vmatpush1.msra.mxu0 %v4051
        %4169 = vmatprep.subr.mxu0 0.0
        %4170 = vmatpush1.msra.mxu0 %v4050
        %4171 = vmatprep.subr.mxu0 0.0
        %4172 = vmatpush1.msra.mxu0 %v4049
        %4173 = vmatprep.subr.mxu0 0.0
        %4174 = vmatpush1.msra.mxu0 %v4048
        %4175 = vmatprep.subr.mxu0 0.0
        %4176 = vmatpush1.msra.mxu0 %v4047
        %4177 = vmatprep.subr.mxu0 0.0
        %4178 = vmatpush2.msra.mxu0 0.0
        %4179 = vmatprep.subr.mxu0 0.0
        %4180 = vmatpush2.msra.mxu0 0.0
        %4181 = vmatprep.subr.mxu0 0.0
        %4182 = vmatpush2.msra.mxu0 0.0
        %4183 = vmatprep.subr.mxu0 0.0
        %4184 = vmatpush2.msra.mxu0 0.0
        %4185 = vmatprep.subr.mxu0 0.0
        %4186 = vmatpush2.msra.mxu0 0.0
        %4187 = vmatprep.subr.mxu0 0.0
        %4188 = vmatpush2.msra.mxu0 0.0
        %4189 = vmatprep.subr.mxu0 0.0
        %4190 = vmatpush2.msra.mxu0 0.0
        %4191 = vmatprep.subr.mxu0 0.0
        %4192 = vmatpush2.msra.mxu0 0.0
        %4193 = vmatprep.subr.mxu0 0.0
        %4194 = vmatpush2.msra.mxu0 0.0
        %4195 = vmatprep.subr.mxu0 0.0
        %4196 = vmatpush2.msra.mxu0 0.0
        %4197 = vmatprep.subr.mxu0 0.0
        %4198 = vmatpush2.msra.mxu0 0.0
        %4199 = vmatprep.subr.mxu0 0.0
        %4200 = vmatpush2.msra.mxu0 0.0
        %4201 = vmatprep.subr.mxu0 0.0
        %4202 = vmatpush2.msra.mxu0 0.0
        %4203 = vmatprep.subr.mxu0 0.0
        %4204 = vmatpush2.msra.mxu0 0.0
        %4205 = vmatprep.subr.mxu0 0.0
        %4206 = vmatpush2.msra.mxu0 0.0
        %4207 = vmatprep.subr.mxu0 0.0
        %4208 = vmatpush2.msra.mxu0 0.0
        %4209 = vmatprep.mubr.f32.mxu0 0.0
        %4210 = vmatmul.mubr.f32.gmra.mxu0 %v4143
        %v4211 = vpop.f32.mrf.mxu0
        %v4212 = vadd.f32 %v4139, %v4211
        %v4213 = vpop.f32.mrf.mxu0
        %4214 = vdwg.mxu0
        %s4215 = scalar_lea.vmem %s7, 160
        %v4216 = vld [vmem:[%s4215] sm:$0xff]
        %v4217 = vld [vmem:[%s4215 + $0x8] sm:$0xff]
        %v4218 = vld [vmem:[%s4215 + $0x10] sm:$0xff]
        %v4219 = vld [vmem:[%s4215 + $0x18] sm:$0xff]
        %v4220 = vld [vmem:[%s4215 + $0x20] sm:$0xff]
        %v4221 = vld [vmem:[%s4215 + $0x28] sm:$0xff]
        %v4222 = vld [vmem:[%s4215 + $0x30] sm:$0xff]
        %v4223 = vld [vmem:[%s4215 + $0x38] sm:$0xff]
        %v4224 = vld [vmem:[%s4215 + $0x40] sm:$0xff]
        %v4225 = vld [vmem:[%s4215 + $0x48] sm:$0xff]
        %v4227 = vsel %vm4068, %v4045, 0
        %4229 = vmatprep.subr.mxu0 0.0
        %4230 = vmatpush1.msra.mxu0 0.0
        %4231 = vmatprep.subr.mxu0 0.0
        %4232 = vmatpush1.msra.mxu0 0.0
        %4233 = vmatprep.subr.mxu0 0.0
        %4234 = vmatpush1.msra.mxu0 0.0
        %4235 = vmatprep.subr.mxu0 0.0
        %4236 = vmatpush1.msra.mxu0 0.0
        %4237 = vmatprep.subr.mxu0 0.0
        %4238 = vmatpush1.msra.mxu0 0.0
        %4239 = vmatprep.subr.mxu0 0.0
        %4240 = vmatpush1.msra.mxu0 0.0
        %4241 = vmatprep.subr.mxu0 0.0
        %4242 = vmatpush1.msra.mxu0 %v4225
        %4243 = vmatprep.subr.mxu0 0.0
        %4244 = vmatpush1.msra.mxu0 %v4224
        %4245 = vmatprep.subr.mxu0 0.0
        %4246 = vmatpush1.msra.mxu0 %v4223
        %4247 = vmatprep.subr.mxu0 0.0
        %4248 = vmatpush1.msra.mxu0 %v4222
        %4249 = vmatprep.subr.mxu0 0.0
        %4250 = vmatpush1.msra.mxu0 %v4221
        %4251 = vmatprep.subr.mxu0 0.0
        %4252 = vmatpush1.msra.mxu0 %v4220
        %4253 = vmatprep.subr.mxu0 0.0
        %4254 = vmatpush1.msra.mxu0 %v4219
        %4255 = vmatprep.subr.mxu0 0.0
        %4256 = vmatpush1.msra.mxu0 %v4218
        %4257 = vmatprep.subr.mxu0 0.0
        %4258 = vmatpush1.msra.mxu0 %v4217
        %4259 = vmatprep.subr.mxu0 0.0
        %4260 = vmatpush1.msra.mxu0 %v4216
        %4261 = vmatprep.subr.mxu0 0.0
        %4262 = vmatpush2.msra.mxu0 0.0
        %4263 = vmatprep.subr.mxu0 0.0
        %4264 = vmatpush2.msra.mxu0 0.0
        %4265 = vmatprep.subr.mxu0 0.0
        %4266 = vmatpush2.msra.mxu0 0.0
        %4267 = vmatprep.subr.mxu0 0.0
        %4268 = vmatpush2.msra.mxu0 0.0
        %4269 = vmatprep.subr.mxu0 0.0
        %4270 = vmatpush2.msra.mxu0 0.0
        %4271 = vmatprep.subr.mxu0 0.0
        %4272 = vmatpush2.msra.mxu0 0.0
        %4273 = vmatprep.subr.mxu0 0.0
        %4274 = vmatpush2.msra.mxu0 0.0
        %4275 = vmatprep.subr.mxu0 0.0
        %4276 = vmatpush2.msra.mxu0 0.0
        %4277 = vmatprep.subr.mxu0 0.0
        %4278 = vmatpush2.msra.mxu0 0.0
        %4279 = vmatprep.subr.mxu0 0.0
        %4280 = vmatpush2.msra.mxu0 0.0
        %4281 = vmatprep.subr.mxu0 0.0
        %4282 = vmatpush2.msra.mxu0 0.0
        %4283 = vmatprep.subr.mxu0 0.0
        %4284 = vmatpush2.msra.mxu0 0.0
        %4285 = vmatprep.subr.mxu0 0.0
        %4286 = vmatpush2.msra.mxu0 0.0
        %4287 = vmatprep.subr.mxu0 0.0
        %4288 = vmatpush2.msra.mxu0 0.0
        %4289 = vmatprep.subr.mxu0 0.0
        %4290 = vmatpush2.msra.mxu0 0.0
        %4291 = vmatprep.subr.mxu0 0.0
        %4292 = vmatpush2.msra.mxu0 0.0
        %4293 = vmatprep.mubr.f32.mxu0 0.0
        %4294 = vmatmul.mubr.f32.gmra.mxu0 %v4227
        %v4295 = vpop.f32.mrf.mxu0
        %v4296 = vadd.f32 0.0, %v4295
        %v4297 = vpop.f32.mrf.mxu0
        %4298 = vdwg.mxu0
        %v4299 = vadd.f32 %v4212, %v4296
        %s4300 = scalar_lea.vmem %s7, 240
        %v4301 = vld [vmem:[%s4300] sm:$0xff]
        %v4302 = vld [vmem:[%s4300 + $0x8] sm:$0xff]
        %v4303 = vld [vmem:[%s4300 + $0x10] sm:$0xff]
        %v4304 = vld [vmem:[%s4300 + $0x18] sm:$0xff]
        %v4305 = vld [vmem:[%s4300 + $0x20] sm:$0xff]
        %v4306 = vld [vmem:[%s4300 + $0x28] sm:$0xff]
        %v4307 = vld [vmem:[%s4300 + $0x30] sm:$0xff]
        %v4308 = vld [vmem:[%s4300 + $0x38] sm:$0xff]
        %v4309 = vld [vmem:[%s4300 + $0x40] sm:$0xff]
        %v4310 = vld [vmem:[%s4300 + $0x48] sm:$0xff]
        %v4312 = vsel %vm4068, %v4046, 0
        %4314 = vmatprep.subr.mxu0 0.0
        %4315 = vmatpush1.msra.mxu0 0.0
        %4316 = vmatprep.subr.mxu0 0.0
        %4317 = vmatpush1.msra.mxu0 0.0
        %4318 = vmatprep.subr.mxu0 0.0
        %4319 = vmatpush1.msra.mxu0 0.0
        %4320 = vmatprep.subr.mxu0 0.0
        %4321 = vmatpush1.msra.mxu0 0.0
        %4322 = vmatprep.subr.mxu0 0.0
        %4323 = vmatpush1.msra.mxu0 0.0
        %4324 = vmatprep.subr.mxu0 0.0
        %4325 = vmatpush1.msra.mxu0 0.0
        %4326 = vmatprep.subr.mxu0 0.0
        %4327 = vmatpush1.msra.mxu0 %v4310
        %4328 = vmatprep.subr.mxu0 0.0
        %4329 = vmatpush1.msra.mxu0 %v4309
        %4330 = vmatprep.subr.mxu0 0.0
        %4331 = vmatpush1.msra.mxu0 %v4308
        %4332 = vmatprep.subr.mxu0 0.0
        %4333 = vmatpush1.msra.mxu0 %v4307
        %4334 = vmatprep.subr.mxu0 0.0
        %4335 = vmatpush1.msra.mxu0 %v4306
        %4336 = vmatprep.subr.mxu0 0.0
        %4337 = vmatpush1.msra.mxu0 %v4305
        %4338 = vmatprep.subr.mxu0 0.0
        %4339 = vmatpush1.msra.mxu0 %v4304
        %4340 = vmatprep.subr.mxu0 0.0
        %4341 = vmatpush1.msra.mxu0 %v4303
        %4342 = vmatprep.subr.mxu0 0.0
        %4343 = vmatpush1.msra.mxu0 %v4302
        %4344 = vmatprep.subr.mxu0 0.0
        %4345 = vmatpush1.msra.mxu0 %v4301
        %4346 = vmatprep.subr.mxu0 0.0
        %4347 = vmatpush2.msra.mxu0 0.0
        %4348 = vmatprep.subr.mxu0 0.0
        %4349 = vmatpush2.msra.mxu0 0.0
        %4350 = vmatprep.subr.mxu0 0.0
        %4351 = vmatpush2.msra.mxu0 0.0
        %4352 = vmatprep.subr.mxu0 0.0
        %4353 = vmatpush2.msra.mxu0 0.0
        %4354 = vmatprep.subr.mxu0 0.0
        %4355 = vmatpush2.msra.mxu0 0.0
        %4356 = vmatprep.subr.mxu0 0.0
        %4357 = vmatpush2.msra.mxu0 0.0
        %4358 = vmatprep.subr.mxu0 0.0
        %4359 = vmatpush2.msra.mxu0 0.0
        %4360 = vmatprep.subr.mxu0 0.0
        %4361 = vmatpush2.msra.mxu0 0.0
        %4362 = vmatprep.subr.mxu0 0.0
        %4363 = vmatpush2.msra.mxu0 0.0
        %4364 = vmatprep.subr.mxu0 0.0
        %4365 = vmatpush2.msra.mxu0 0.0
        %4366 = vmatprep.subr.mxu0 0.0
        %4367 = vmatpush2.msra.mxu0 0.0
        %4368 = vmatprep.subr.mxu0 0.0
        %4369 = vmatpush2.msra.mxu0 0.0
        %4370 = vmatprep.subr.mxu0 0.0
        %4371 = vmatpush2.msra.mxu0 0.0
        %4372 = vmatprep.subr.mxu0 0.0
        %4373 = vmatpush2.msra.mxu0 0.0
        %4374 = vmatprep.subr.mxu0 0.0
        %4375 = vmatpush2.msra.mxu0 0.0
        %4376 = vmatprep.subr.mxu0 0.0
        %4377 = vmatpush2.msra.mxu0 0.0
        %4378 = vmatprep.mubr.f32.mxu0 0.0
        %4379 = vmatmul.mubr.f32.gmra.mxu0 %v4312
        %v4380 = vpop.f32.mrf.mxu0
        %v4381 = vadd.f32 0.0, %v4380
        %v4382 = vpop.f32.mrf.mxu0
        %4383 = vdwg.mxu0
        %v4384 = vadd.f32 %v4299, %v4381
        %v4385 = vld [vmem:[%s8] sm:$0x1]
        %v4387 = vlaneseq
        %v4388 = vshrl.u32 %v4387, 7
        %v4389 = vsub.s32 0, %v4388
        %v4390 = vrot.slane %v4385, %v4389
        %v4392 = vadd.f32 %v4384, %v4390
        %vm4393 = vcmask 80896
        %4394 = vst.msk [vmem:[%s473] sm:$0xff] %vm4393, %v4392
        %p4395 = scmp.lt.s32.totalorder %s20, 7
        %s4396 = scalar_select %p4395, %s20, 7
        %s4397 = smul.addr %s4396, 8
        %s4398 = scalar_lea.vmem %s9, %s4397
        // Predicated region
        $region95: #{tpu_custom_call.1} parent=89 // pred_check
          %p4399 = pneg %p232
        $region96: #{tpu_custom_call.1} parent=89 // pred_check_branch
          %4401 = sbr.rel (%p4399) target = $region98
        $region97: #{tpu_custom_call.1} parent=89 // pred_region
          _
        $region98: #{tpu_custom_call.1} parent=89 // pred_fallthru
          _
      $region90: #{tpu_custom_call.1} parent=5 // pred_fallthru
        _
      %p4402 = scmp.le.s32.totalorder 2, %s15
      // Predicated region
      $region99: #{tpu_custom_call.1} parent=5 // pred_check
        %p4403 = pneg %p4402
      $region100: #{tpu_custom_call.1} parent=5 // pred_check_branch
        %4405 = sbr.rel (%p4403) target = $region102
      $region101: #{tpu_custom_call.1} parent=5 // pred_region
        %s4406 = ssub.s32 %s15, 2
        // Predicated region
        $region103: #{tpu_custom_call.1} parent=101 // pred_check
          %p4407 = pneg %p238
        $region104: #{tpu_custom_call.1} parent=101 // pred_check_branch
          %4409 = sbr.rel (%p4407) target = $region106
        $region105: #{tpu_custom_call.1} parent=101 // pred_region
          %p4410 = scmp.lt.s32.totalorder %s21, 7
          %s4411 = scalar_select %p4410, %s21, 7
          %s4412 = smul.addr %s4411, 8
          %s4413 = scalar_lea.vmem %s9, %s4412
        $region106: #{tpu_custom_call.1} parent=101 // pred_fallthru
          _
      $region102: #{tpu_custom_call.1} parent=5 // pred_fallthru
        _
    $region6: #{tpu_custom_call.1} parent=1 // loop_footer
      %s19 = sadd.s32 1, %s15
    $region7: #{tpu_custom_call.1} parent=1 // loop_footer_branch
      %14 = sbr.rel target = $region3
    $region8: #{tpu_custom_call.1} parent=1 // loop_exit
      _

</llo_original>
